<compile_context>
chip_gen: v7x
topology: tpu7x:2x2x1
jax: 0.10.0
libtpu: 0.0.40
codegen_flags: <defaults>
</compile_context>

<pallas_src>
import math

import numpy as np

import jax
import jax.numpy as jnp
from jax.experimental import pallas as pl
from jax.experimental.pallas import tpu as pltpu

# ----------------------------------------------------------------------------
# Model hyper-parameters (small, consistent with the module's __init__)
# ----------------------------------------------------------------------------
ENC_DIM = 32
DEC_DIM = 32
ENC_HEADS = 4
DEC_HEADS = 4
ENC_FFN = 64
DEC_FFN = 64
ENC_LAYERS = 2
DEC_LAYERS = 1

IMG_SIZE = 16
IMG_CHANNEL = 3
PATCH_SIZE = 4
MASK_RATIO = 0.5
BATCH = 2

GRID_SIZE = IMG_SIZE // PATCH_SIZE
NUM_PATCHES = GRID_SIZE * GRID_SIZE                          # 16
SEQ_NUM = NUM_PATCHES + 1                                    # 17
LEN_KEEP = NUM_PATCHES - int(NUM_PATCHES * MASK_RATIO)       # 8
SEQ_NUM_KEEP = SEQ_NUM - int((SEQ_NUM - 1) * MASK_RATIO)     # 9
PATCH_DIM = PATCH_SIZE * PATCH_SIZE * IMG_CHANNEL            # 48
PRED_LANES = 128                                             # lane-dense recon output


# ----------------------------------------------------------------------------
# In-kernel building blocks (pure functions on VMEM-resident values)
# ----------------------------------------------------------------------------
def _layernorm(x, g, b):
    # Variance via E[x^2] - mean^2: two independent reductions (opt 3).
    mean = jnp.mean(x, axis=-1, keepdims=True)
    mean_sq = jnp.mean(x * x, axis=-1, keepdims=True)
    var = mean_sq - mean * mean
    inv = jax.lax.rsqrt(var + 1e-5)
    return (x - mean) * inv * g + b


def _attention(x, w_qkv, b_qkv, w_proj, b_proj, rep, rep_t, hmask, bbias, dim):
    """Batch+head fused multi-head self-attention on x: (B*S, D).

    rep   : (H*B*S, B*S)  one-hot row-replication matrix
    rep_t : (B*S, H*B*S)  its transpose (head combine)
    hmask : (H*B*S, D)    0/1 head lane mask  -> block-diagonal Q
    bbias : (H*B*S, B*S)  0 / -1e30 additive cross-batch attention bias
    The 1/sqrt(Dh) scale is already folded into the Q columns of w_qkv/b_qkv.
    """
    qkv = jnp.dot(x, w_qkv, preferred_element_type=jnp.float32) + b_qkv   # (N, 3D)
    q = qkv[:, :dim]
    k = qkv[:, dim:2 * dim]
    v = qkv[:, 2 * dim:]

    # Block-diagonal Q: replicate rows across heads (MXU) then mask lanes.
    q_bd = jnp.dot(rep, q, preferred_element_type=jnp.float32) * hmask    # (HN, D)
    # ONE QK matmul + ONE softmax for all (batch, head) pairs.
    s = jnp.dot(q_bd, k.T, preferred_element_type=jnp.float32) + bbias    # (HN, N)
    s = s - jnp.max(s, axis=-1, keepdims=True)
    p = jnp.exp(s)
    p = p * pl.reciprocal(jnp.sum(p, axis=-1, keepdims=True), approx=True)
    # PV, zero the cross-head columns, then head-concat via rep^T (MXU).
    o = jnp.dot(p, v, preferred_element_type=jnp.float32) * hmask         # (HN, D)
    heads = jnp.dot(rep_t, o, preferred_element_type=jnp.float32)         # (N, D)
    return jnp.dot(heads, w_proj, preferred_element_type=jnp.float32) + b_proj


def _block(x, ln1_g, ln1_b, w_qkv, b_qkv, w_proj, b_proj,
           ln2_g, ln2_b, w_fc1, b_fc1, w_fc2, b_fc2,
           rep, rep_t, hmask, bbias, dim):
    """Pre-LN transformer block on the row-batched activations x: (B*S, D)."""
    h = _layernorm(x, ln1_g, ln1_b)
    x = x + _attention(h, w_qkv, b_qkv, w_proj, b_proj, rep, rep_t, hmask, bbias, dim)
    h = _layernorm(x, ln2_g, ln2_b)
    h = jnp.dot(h, w_fc1, preferred_element_type=jnp.float32) + b_fc1
    # TODO(synk): PyTorch's default nn.GELU is exact-erf; tanh approx used here.
    h = jax.nn.gelu(h, approximate=True)
    h = jnp.dot(h, w_fc2, preferred_element_type=jnp.float32) + b_fc2
    return x + h


# ----------------------------------------------------------------------------
# The single fused MAE kernel: patch-embed -> encoder -> decoder_embed ->
# un-shuffle (one-hot matmul) -> decoder -> recon -> masked-MSE loss.
# ----------------------------------------------------------------------------
def _mae_kernel(
    # ---- encoder stage ----
    patch_ref, pos_ref, patch_w_ref,
    e_ln1g_ref, e_ln1b_ref, e_wqkv_ref, e_bqkv_ref, e_wproj_ref, e_bproj_ref,
    e_ln2g_ref, e_ln2b_ref, e_wfc1_ref, e_bfc1_ref, e_wfc2_ref, e_bfc2_ref,
    e_rep_ref, e_rept_ref, e_hmask_ref, e_bbias_ref,
    encln_g_ref, encln_b_ref, dembed_w_ref, dembed_b_ref,
    # ---- decoder stage ----
    bigr_ref, decadd_ref,
    d_ln1g_ref, d_ln1b_ref, d_wqkv_ref, d_bqkv_ref, d_wproj_ref, d_bproj_ref,
    d_ln2g_ref, d_ln2b_ref, d_wfc1_ref, d_bfc1_ref, d_wfc2_ref, d_bfc2_ref,
    d_rep_ref, d_rept_ref, d_hmask_ref, d_bbias_ref,
    decln_g_ref, decln_b_ref, reconw_ref, reconb_ref,
    target_ref, maskw_ref,
    # ---- outputs ----
    pred_ref, loss_ref,
):
    # --------------------------- encoder ----------------------------------
    e_rep, e_rept = e_rep_ref[...], e_rept_ref[...]
    e_hmask, e_bbias = e_hmask_ref[...], e_bbias_ref[...]

    # Patch embed on all B*Sk rows at once; cls token, pos embed and the
    # patch-embed bias are pre-folded into pos_ref.
    x = jnp.dot(patch_ref[...], patch_w_ref[...],
                preferred_element_type=jnp.float32) + pos_ref[...]        # (B*Sk, md)

    for l in range(ENC_LAYERS):                                           # unrolled
        x = _block(x,
                   e_ln1g_ref[l], e_ln1b_ref[l], e_wqkv_ref[l], e_bqkv_ref[l],
                   e_wproj_ref[l], e_bproj_ref[l], e_ln2g_ref[l], e_ln2b_ref[l],
                   e_wfc1_ref[l], e_bfc1_ref[l], e_wfc2_ref[l], e_bfc2_ref[l],
                   e_rep, e_rept, e_hmask, e_bbias, ENC_DIM)

    x = _layernorm(x, encln_g_ref[...], encln_b_ref[...])
    y = jnp.dot(x, dembed_w_ref[...],
                preferred_element_type=jnp.float32) + dembed_b_ref[...]   # (B*Sk, dd)

    # ------- un-shuffle + mask-token fill + decoder pos (fused, opt 5) -----
    # big_r is the batch-block-diagonal one-hot restore matrix; decadd already
    # contains pos_embed_decoder plus the mask token at masked positions.
    z = jnp.dot(bigr_ref[...], y,
                preferred_element_type=jnp.float32) + decadd_ref[...]     # (B*S, dd)

    # --------------------------- decoder ----------------------------------
    d_rep, d_rept = d_rep_ref[...], d_rept_ref[...]
    d_hmask, d_bbias = d_hmask_ref[...], d_bbias_ref[...]
    for l in range(DEC_LAYERS):                                           # unrolled
        z = _block(z,
                   d_ln1g_ref[l], d_ln1b_ref[l], d_wqkv_ref[l], d_bqkv_ref[l],
                   d_wproj_ref[l], d_bproj_ref[l], d_ln2g_ref[l], d_ln2b_ref[l],
                   d_wfc1_ref[l], d_bfc1_ref[l], d_wfc2_ref[l], d_bfc2_ref[l],
                   d_rep, d_rept, d_hmask, d_bbias, DEC_DIM)

    z = _layernorm(z, decln_g_ref[...], decln_b_ref[...])
    # recon weights padded to 128 lanes -> lane-dense output store.
    pred = jnp.dot(z, reconw_ref[...],
                   preferred_element_type=jnp.float32) + reconb_ref[...]  # (B*S, 128)
    pred_ref[...] = pred

    # Masked-MSE: mask already broadcast over lanes and pre-divided by
    # (PATCH_DIM * mask.sum()) in glue -> one multiply + one full reduction.
    err = target_ref[...] - pred
    loss_ref[...] = jnp.broadcast_to(jnp.sum(err * err * maskw_ref[...]), (1, 1))


# ----------------------------------------------------------------------------
# pallas_call wrapper (single invocation, no grid, everything VMEM-resident)
# ----------------------------------------------------------------------------
def _mae_call(inputs, n_dec_rows):
    out_shape = (jax.ShapeDtypeStruct((n_dec_rows, PRED_LANES), jnp.float32),
                 jax.ShapeDtypeStruct((1, 1), jnp.float32))
    return pl.pallas_call(
        _mae_kernel,
        out_shape=out_shape,
        in_specs=[pl.BlockSpec(memory_space=pltpu.MemorySpace.VMEM)] * len(inputs),
        out_specs=(pl.BlockSpec(memory_space=pltpu.MemorySpace.VMEM),
                   pl.BlockSpec(memory_space=pltpu.MemorySpace.VMEM)),
    )(*inputs)


# ----------------------------------------------------------------------------
# Static attention constants (rep / head-mask / cross-batch bias)
# ----------------------------------------------------------------------------
def _attn_constants(batch, seq, dim, heads):
    n_rows = batch * seq
    dh = dim // heads
    idx = np.arange(n_rows)
    rep = np.zeros((heads * n_rows, n_rows), np.float32)
    rep[np.arange(heads * n_rows), np.tile(idx, heads)] = 1.0
    head_of_row = np.repeat(np.arange(heads), n_rows)
    head_of_col = np.arange(dim) // dh
    hmask = (head_of_row[:, None] == head_of_col[None, :]).astype(np.float32)
    batch_of_row = np.tile(idx // seq, heads)
    batch_of_col = idx // seq
    bbias = np.where(batch_of_row[:, None] == batch_of_col[None, :],
                     0.0, -1e30).astype(np.float32)
    return (jnp.asarray(rep), jnp.asarray(np.ascontiguousarray(rep.T)),
            jnp.asarray(hmask), jnp.asarray(bbias))


# ----------------------------------------------------------------------------
# Plain-JAX glue (patchify / unpatchify)
# ----------------------------------------------------------------------------
def img_to_patch(imgs, p):
    # imgs: (B, C, H, W) -> (B, h*w, p*p*C)
    B, C, H, W = imgs.shape
    h, w = H // p, W // p
    x = imgs.reshape(B, C, h, p, w, p)
    x = jnp.transpose(x, (0, 2, 4, 3, 5, 1))        # B, h, w, p, p, C
    return x.reshape(B, h * w, p * p * C)


def patch_to_img(x, p, C, H, W):
    # (B, h*w, p*p*C) -> (B, C, H, W); inverse of img_to_patch
    B = x.shape[0]
    h, w = H // p, W // p
    x = x.reshape(B, h, w, p, p, C)
    x = jnp.transpose(x, (0, 5, 1, 3, 2, 4))        # B, C, h, p, w, p
    return x.reshape(B, C, H, W)


# ----------------------------------------------------------------------------
# Parameter initialization (deterministic, synthetic; per-layer stacked)
# ----------------------------------------------------------------------------
def _dense_init(key, shape, std=0.02):
    return (std * jax.random.normal(key, shape)).astype(jnp.float32)


def _init_block_stack(key, num_layers, dim, ffn_dim):
    ks = jax.random.split(key, 4)
    return dict(
        ln1_g=jnp.ones((num_layers, 1, dim), jnp.float32),
        ln1_b=jnp.zeros((num_layers, 1, dim), jnp.float32),
        w_qkv=_dense_init(ks[0], (num_layers, dim, 3 * dim)),
        b_qkv=jnp.zeros((num_layers, 1, 3 * dim), jnp.float32),
        w_proj=_dense_init(ks[1], (num_layers, dim, dim)),
        b_proj=jnp.zeros((num_layers, 1, dim), jnp.float32),
        ln2_g=jnp.ones((num_layers, 1, dim), jnp.float32),
        ln2_b=jnp.zeros((num_layers, 1, dim), jnp.float32),
        w_fc1=_dense_init(ks[2], (num_layers, dim, ffn_dim)),
        b_fc1=jnp.zeros((num_layers, 1, ffn_dim), jnp.float32),
        w_fc2=_dense_init(ks[3], (num_layers, ffn_dim, dim)),
        b_fc2=jnp.zeros((num_layers, 1, dim), jnp.float32),
    )


def init_params(key):
    md, dd = ENC_DIM, DEC_DIM
    keys = jax.random.split(key, 8)
    return dict(
        cls_token=jnp.zeros((1, 1, md), jnp.float32),
        mask_token=jnp.zeros((1, 1, dd), jnp.float32),
        pos_embed=_dense_init(keys[0], (1, SEQ_NUM, md)),
        pos_embed_decoder=_dense_init(keys[1], (1, SEQ_NUM, dd)),
        patch_w=_dense_init(keys[2], (PATCH_DIM, md)),     # PatchEmbed conv as matmul
        patch_b=jnp.zeros((1, 1, md), jnp.float32),
        dec_embed_w=_dense_init(keys[3], (md, dd)),
        dec_embed_b=jnp.zeros((1, dd), jnp.float32),
        recon_w=_dense_init(keys[4], (dd, PATCH_DIM)),     # ImgEmbed linear
        recon_b=jnp.zeros((1, PATCH_DIM), jnp.float32),
        enc_ln_g=jnp.ones((1, md), jnp.float32),
        enc_ln_b=jnp.zeros((1, md), jnp.float32),
        dec_ln_g=jnp.ones((1, dd), jnp.float32),
        dec_ln_b=jnp.zeros((1, dd), jnp.float32),
        enc_blocks=_init_block_stack(keys[5], ENC_LAYERS, md, ENC_FFN),
        dec_blocks=_init_block_stack(keys[6], DEC_LAYERS, dd, DEC_FFN),
    )


def _fold_q_scale(w_qkv, b_qkv, dim, heads):
    # Fold 1/sqrt(Dh) into the Q columns (weights + bias) at param-prep time.
    scale = 1.0 / math.sqrt(dim // heads)
    return (w_qkv.at[:, :, :dim].multiply(scale),
            b_qkv.at[:, :, :dim].multiply(scale))


# ----------------------------------------------------------------------------
# MAE forward
# ----------------------------------------------------------------------------
def mae_forward(params, imgs, mask_key):
    B = imgs.shape[0]
    md, dd = ENC_DIM, DEC_DIM
    n_enc = B * SEQ_NUM_KEEP
    n_dec = B * SEQ_NUM

    # ------ glue: patchify + random masking (argsort shuffle) ------
    patches = img_to_patch(imgs, PATCH_SIZE)                                 # (B, L, P)
    noise = jax.random.uniform(mask_key, (B, NUM_PATCHES))
    ids_shuffle = jnp.argsort(noise, axis=1)
    ids_restore = jnp.argsort(ids_shuffle, axis=1)
    ids_keep = ids_shuffle[:, :LEN_KEEP]
    kept = jnp.take_along_axis(patches, ids_keep[:, :, None], axis=1)        # (B, Lk, P)
    mask = jnp.ones((B, NUM_PATCHES), jnp.float32).at[:, :LEN_KEEP].set(0.0)
    mask = jnp.take_along_axis(mask, ids_restore, axis=1)                    # (B, L)

    # ------ encoder inputs, flattened to (B*Sk, .) ------
    pos_patch = jnp.broadcast_to(params["pos_embed"][:, 1:, :], (B, NUM_PATCHES, md))
    pos_vis = jnp.take_along_axis(pos_patch, ids_keep[:, :, None], axis=1)   # (B, Lk, md)
    patch_in = jnp.concatenate(
        [jnp.zeros((B, 1, PATCH_DIM), jnp.float32), kept], axis=1)
    patch_in = patch_in.reshape(n_enc, PATCH_DIM)
    cls_pos = jnp.broadcast_to(params["cls_token"] + params["pos_embed"][:, :1, :],
                               (B, 1, md))
    pos_in = jnp.concatenate([cls_pos, pos_vis + params["patch_b"]], axis=1)
    pos_in = pos_in.reshape(n_enc, md)

    # ------ un-shuffle as a one-hot restore matrix (consumed in-kernel) ------
    r_vis = jax.nn.one_hot(ids_restore, LEN_KEEP, dtype=jnp.float32)         # (B, L, Lk)
    r_full = jnp.concatenate(
        [jnp.zeros((B, NUM_PATCHES, 1), jnp.float32), r_vis], axis=2)        # (B, L, Sk)
    r_cls = jnp.concatenate(
        [jnp.ones((B, 1, 1), jnp.float32),
         jnp.zeros((B, 1, LEN_KEEP), jnp.float32)], axis=2)                  # (B, 1, Sk)
    r_seq = jnp.concatenate([r_cls, r_full], axis=1)                         # (B, S, Sk)
    big_r = jnp.zeros((n_dec, n_enc), jnp.float32)
    for b in range(B):
        big_r = big_r.at[b * SEQ_NUM:(b + 1) * SEQ_NUM,
                         b * SEQ_NUM_KEEP:(b + 1) * SEQ_NUM_KEEP].set(r_seq[b])

    pos_dec = jnp.broadcast_to(params["pos_embed_decoder"], (B, SEQ_NUM, dd))
    add_rest = pos_dec[:, 1:, :] + mask[:, :, None] * params["mask_token"]
    dec_add = jnp.concatenate([pos_dec[:, :1, :], add_rest], axis=1).reshape(n_dec, dd)

    # ------ loss tensors (mask pre-broadcast & pre-normalized, lane-padded) ------
    target = jnp.concatenate(
        [jnp.zeros((B, 1, PATCH_DIM), jnp.float32), patches], axis=1)        # (B, S, P)
    target = jnp.pad(target, ((0, 0), (0, 0), (0, PRED_LANES - PATCH_DIM)))
    target = target.reshape(n_dec, PRED_LANES)
    mask_sum = float(B * (NUM_PATCHES - LEN_KEEP))      # exact: masking keeps LEN_KEEP
    w_seq = jnp.concatenate(
        [jnp.zeros((B, 1), jnp.float32), mask / (PATCH_DIM * mask_sum)], axis=1)
    mask_w = jnp.broadcast_to(w_seq[:, :, None], (B, SEQ_NUM, PATCH_DIM))
    mask_w = jnp.pad(mask_w, ((0, 0), (0, 0), (0, PRED_LANES - PATCH_DIM)))
    mask_w = mask_w.reshape(n_dec, PRED_LANES)

    # ------ recon weights padded to 128 lanes (lane-dense output) ------
    recon_w_pad = jnp.pad(params["recon_w"], ((0, 0), (0, PRED_LANES - PATCH_DIM)))
    recon_b_pad = jnp.pad(params["recon_b"], ((0, 0), (0, PRED_LANES - PATCH_DIM)))

    # ------ static attention constants ------
    rep_e, rep_e_t, hmask_e, bbias_e = _attn_constants(B, SEQ_NUM_KEEP, ENC_DIM, ENC_HEADS)
    rep_d, rep_d_t, hmask_d, bbias_d = _attn_constants(B, SEQ_NUM, DEC_DIM, DEC_HEADS)

    # ------ fold 1/sqrt(Dh) into Q projections ------
    e = params["enc_blocks"]
    d = params["dec_blocks"]
    e_wqkv, e_bqkv = _fold_q_scale(e["w_qkv"], e["b_qkv"], ENC_DIM, ENC_HEADS)
    d_wqkv, d_bqkv = _fold_q_scale(d["w_qkv"], d["b_qkv"], DEC_DIM, DEC_HEADS)

    inputs = [
        # encoder stage
        patch_in, pos_in, params["patch_w"],
        e["ln1_g"], e["ln1_b"], e_wqkv, e_bqkv, e["w_proj"], e["b_proj"],
        e["ln2_g"], e["ln2_b"], e["w_fc1"], e["b_fc1"], e["w_fc2"], e["b_fc2"],
        rep_e, rep_e_t, hmask_e, bbias_e,
        params["enc_ln_g"], params["enc_ln_b"],
        params["dec_embed_w"], params["dec_embed_b"],
        # decoder stage
        big_r, dec_add,
        d["ln1_g"], d["ln1_b"], d_wqkv, d_bqkv, d["w_proj"], d["b_proj"],
        d["ln2_g"], d["ln2_b"], d["w_fc1"], d["b_fc1"], d["w_fc2"], d["b_fc2"],
        rep_d, rep_d_t, hmask_d, bbias_d,
        params["dec_ln_g"], params["dec_ln_b"],
        recon_w_pad, recon_b_pad,
        target, mask_w,
    ]

    # ------ the single fused MAE kernel ------
    pred_flat, loss_arr = _mae_call(inputs, n_dec)

    pred_patch = pred_flat.reshape(B, SEQ_NUM, PRED_LANES)[:, 1:, :PATCH_DIM]  # (B, L, P)
    imgs_restore = patch_to_img(pred_patch, PATCH_SIZE, IMG_CHANNEL, IMG_SIZE, IMG_SIZE)
    loss = loss_arr[0, 0]
    return imgs_restore, loss


# ----------------------------------------------------------------------------
# Main
# ----------------------------------------------------------------------------
if __name__ == "__main__":
    root = jax.random.PRNGKey(0)
    pkey, ikey, mkey = jax.random.split(root, 3)

    params = init_params(pkey)
    imgs = jax.random.normal(ikey, (BATCH, IMG_CHANNEL, IMG_SIZE, IMG_SIZE),
                             dtype=jnp.float32)

    fwd = jax.jit(mae_forward)
    imgs_restore, loss = fwd(params, imgs, mkey)
    jax.block_until_ready((imgs_restore, loss))

    assert imgs_restore.shape == imgs.shape
    assert loss.shape == ()
    assert bool(jnp.isfinite(loss))
    print("KERNEL_OK")
</pallas_src>

<mosaic_0001>
module attributes {stable_mosaic.version = 11 : i64} {
  func.func @_mae_kernel(%arg0: memref<18x48xf32, #tpu.memory_space<vmem>>, %arg1: memref<18x32xf32, #tpu.memory_space<vmem>>, %arg2: memref<48x32xf32, #tpu.memory_space<vmem>>, %arg3: memref<2x1x32xf32, #tpu.memory_space<vmem>>, %arg4: memref<2x1x32xf32, #tpu.memory_space<vmem>>, %arg5: memref<2x32x96xf32, #tpu.memory_space<vmem>>, %arg6: memref<2x1x96xf32, #tpu.memory_space<vmem>>, %arg7: memref<2x32x32xf32, #tpu.memory_space<vmem>>, %arg8: memref<2x1x32xf32, #tpu.memory_space<vmem>>, %arg9: memref<2x1x32xf32, #tpu.memory_space<vmem>>, %arg10: memref<2x1x32xf32, #tpu.memory_space<vmem>>, %arg11: memref<2x32x64xf32, #tpu.memory_space<vmem>>, %arg12: memref<2x1x64xf32, #tpu.memory_space<vmem>>, %arg13: memref<2x64x32xf32, #tpu.memory_space<vmem>>, %arg14: memref<2x1x32xf32, #tpu.memory_space<vmem>>, %arg15: memref<72x18xf32, #tpu.memory_space<vmem>>, %arg16: memref<18x72xf32, #tpu.memory_space<vmem>>, %arg17: memref<72x32xf32, #tpu.memory_space<vmem>>, %arg18: memref<72x18xf32, #tpu.memory_space<vmem>>, %arg19: memref<1x32xf32, #tpu.memory_space<vmem>>, %arg20: memref<1x32xf32, #tpu.memory_space<vmem>>, %arg21: memref<32x32xf32, #tpu.memory_space<vmem>>, %arg22: memref<1x32xf32, #tpu.memory_space<vmem>>, %arg23: memref<34x18xf32, #tpu.memory_space<vmem>>, %arg24: memref<34x32xf32, #tpu.memory_space<vmem>>, %arg25: memref<1x1x32xf32, #tpu.memory_space<vmem>>, %arg26: memref<1x1x32xf32, #tpu.memory_space<vmem>>, %arg27: memref<1x32x96xf32, #tpu.memory_space<vmem>>, %arg28: memref<1x1x96xf32, #tpu.memory_space<vmem>>, %arg29: memref<1x32x32xf32, #tpu.memory_space<vmem>>, %arg30: memref<1x1x32xf32, #tpu.memory_space<vmem>>, %arg31: memref<1x1x32xf32, #tpu.memory_space<vmem>>, %arg32: memref<1x1x32xf32, #tpu.memory_space<vmem>>, %arg33: memref<1x32x64xf32, #tpu.memory_space<vmem>>, %arg34: memref<1x1x64xf32, #tpu.memory_space<vmem>>, %arg35: memref<1x64x32xf32, #tpu.memory_space<vmem>>, %arg36: memref<1x1x32xf32, #tpu.memory_space<vmem>>, %arg37: memref<136x34xf32, #tpu.memory_space<vmem>>, %arg38: memref<34x136xf32, #tpu.memory_space<vmem>>, %arg39: memref<136x32xf32, #tpu.memory_space<vmem>>, %arg40: memref<136x34xf32, #tpu.memory_space<vmem>>, %arg41: memref<1x32xf32, #tpu.memory_space<vmem>>, %arg42: memref<1x32xf32, #tpu.memory_space<vmem>>, %arg43: memref<32x128xf32, #tpu.memory_space<vmem>>, %arg44: memref<1x128xf32, #tpu.memory_space<vmem>>, %arg45: memref<34x128xf32, #tpu.memory_space<vmem>>, %arg46: memref<34x128xf32, #tpu.memory_space<vmem>>, %arg47: memref<34x128xf32, #tpu.memory_space<vmem>>, %arg48: memref<1x1xf32, #tpu.memory_space<vmem>>) attributes {dimension_semantics = [], scalar_prefetch = 0 : i64, scratch_operands = 0 : i64, tpu.core_type = #tpu.core_type<tc>} {
    %c0 = arith.constant 0 : index
    %c0_0 = arith.constant 0 : index
    %0 = vector.load %arg15[%c0, %c0_0] : memref<72x18xf32, #tpu.memory_space<vmem>>, vector<72x18xf32>
    %c0_1 = arith.constant 0 : index
    %c0_2 = arith.constant 0 : index
    %1 = vector.load %arg16[%c0_1, %c0_2] : memref<18x72xf32, #tpu.memory_space<vmem>>, vector<18x72xf32>
    %c0_3 = arith.constant 0 : index
    %c0_4 = arith.constant 0 : index
    %2 = vector.load %arg17[%c0_3, %c0_4] : memref<72x32xf32, #tpu.memory_space<vmem>>, vector<72x32xf32>
    %c0_5 = arith.constant 0 : index
    %c0_6 = arith.constant 0 : index
    %3 = vector.load %arg18[%c0_5, %c0_6] : memref<72x18xf32, #tpu.memory_space<vmem>>, vector<72x18xf32>
    %c0_7 = arith.constant 0 : index
    %c0_8 = arith.constant 0 : index
    %4 = vector.load %arg0[%c0_7, %c0_8] : memref<18x48xf32, #tpu.memory_space<vmem>>, vector<18x48xf32>
    %c0_9 = arith.constant 0 : index
    %c0_10 = arith.constant 0 : index
    %5 = vector.load %arg2[%c0_9, %c0_10] : memref<48x32xf32, #tpu.memory_space<vmem>>, vector<48x32xf32>
    %cst = arith.constant dense<0.000000e+00> : vector<18x32xf32>
    %6 = tpu.matmul %4, %5, %cst {dimension_numbers = #tpu.dot_dimension_numbers<[1], [0], [0], [1], [0, 0, 1, 1], [], []>} : vector<18x48xf32>, vector<48x32xf32>, vector<18x32xf32> -> vector<18x32xf32>
    %c0_11 = arith.constant 0 : index
    %c0_12 = arith.constant 0 : index
    %7 = vector.load %arg1[%c0_11, %c0_12] : memref<18x32xf32, #tpu.memory_space<vmem>>, vector<18x32xf32>
    %8 = arith.addf %6, %7 : vector<18x32xf32>
    %c0_13 = arith.constant 0 : index
    %c0_14 = arith.constant 0 : index
    %c0_15 = arith.constant 0 : index
    %9 = vector.load %arg3[%c0_13, %c0_14, %c0_15] : memref<2x1x32xf32, #tpu.memory_space<vmem>>, vector<1x1x32xf32>
    %10 = vector.shape_cast %9 : vector<1x1x32xf32> to vector<1x32xf32>
    %c0_16 = arith.constant 0 : index
    %c0_17 = arith.constant 0 : index
    %c0_18 = arith.constant 0 : index
    %11 = vector.load %arg4[%c0_16, %c0_17, %c0_18] : memref<2x1x32xf32, #tpu.memory_space<vmem>>, vector<1x1x32xf32>
    %12 = vector.shape_cast %11 : vector<1x1x32xf32> to vector<1x32xf32>
    %c0_19 = arith.constant 0 : index
    %c0_20 = arith.constant 0 : index
    %c0_21 = arith.constant 0 : index
    %13 = vector.load %arg5[%c0_19, %c0_20, %c0_21] : memref<2x32x96xf32, #tpu.memory_space<vmem>>, vector<1x32x96xf32>
    %14 = vector.shape_cast %13 : vector<1x32x96xf32> to vector<32x96xf32>
    %c0_22 = arith.constant 0 : index
    %c0_23 = arith.constant 0 : index
    %c0_24 = arith.constant 0 : index
    %15 = vector.load %arg6[%c0_22, %c0_23, %c0_24] : memref<2x1x96xf32, #tpu.memory_space<vmem>>, vector<1x1x96xf32>
    %16 = vector.shape_cast %15 : vector<1x1x96xf32> to vector<1x96xf32>
    %c0_25 = arith.constant 0 : index
    %c0_26 = arith.constant 0 : index
    %c0_27 = arith.constant 0 : index
    %17 = vector.load %arg7[%c0_25, %c0_26, %c0_27] : memref<2x32x32xf32, #tpu.memory_space<vmem>>, vector<1x32x32xf32>
    %18 = vector.shape_cast %17 : vector<1x32x32xf32> to vector<32x32xf32>
    %c0_28 = arith.constant 0 : index
    %c0_29 = arith.constant 0 : index
    %c0_30 = arith.constant 0 : index
    %19 = vector.load %arg8[%c0_28, %c0_29, %c0_30] : memref<2x1x32xf32, #tpu.memory_space<vmem>>, vector<1x1x32xf32>
    %20 = vector.shape_cast %19 : vector<1x1x32xf32> to vector<1x32xf32>
    %c0_31 = arith.constant 0 : index
    %c0_32 = arith.constant 0 : index
    %c0_33 = arith.constant 0 : index
    %21 = vector.load %arg9[%c0_31, %c0_32, %c0_33] : memref<2x1x32xf32, #tpu.memory_space<vmem>>, vector<1x1x32xf32>
    %22 = vector.shape_cast %21 : vector<1x1x32xf32> to vector<1x32xf32>
    %c0_34 = arith.constant 0 : index
    %c0_35 = arith.constant 0 : index
    %c0_36 = arith.constant 0 : index
    %23 = vector.load %arg10[%c0_34, %c0_35, %c0_36] : memref<2x1x32xf32, #tpu.memory_space<vmem>>, vector<1x1x32xf32>
    %24 = vector.shape_cast %23 : vector<1x1x32xf32> to vector<1x32xf32>
    %c0_37 = arith.constant 0 : index
    %c0_38 = arith.constant 0 : index
    %c0_39 = arith.constant 0 : index
    %25 = vector.load %arg11[%c0_37, %c0_38, %c0_39] : memref<2x32x64xf32, #tpu.memory_space<vmem>>, vector<1x32x64xf32>
    %26 = vector.shape_cast %25 : vector<1x32x64xf32> to vector<32x64xf32>
    %c0_40 = arith.constant 0 : index
    %c0_41 = arith.constant 0 : index
    %c0_42 = arith.constant 0 : index
    %27 = vector.load %arg12[%c0_40, %c0_41, %c0_42] : memref<2x1x64xf32, #tpu.memory_space<vmem>>, vector<1x1x64xf32>
    %28 = vector.shape_cast %27 : vector<1x1x64xf32> to vector<1x64xf32>
    %c0_43 = arith.constant 0 : index
    %c0_44 = arith.constant 0 : index
    %c0_45 = arith.constant 0 : index
    %29 = vector.load %arg13[%c0_43, %c0_44, %c0_45] : memref<2x64x32xf32, #tpu.memory_space<vmem>>, vector<1x64x32xf32>
    %30 = vector.shape_cast %29 : vector<1x64x32xf32> to vector<64x32xf32>
    %c0_46 = arith.constant 0 : index
    %c0_47 = arith.constant 0 : index
    %c0_48 = arith.constant 0 : index
    %31 = vector.load %arg14[%c0_46, %c0_47, %c0_48] : memref<2x1x32xf32, #tpu.memory_space<vmem>>, vector<1x1x32xf32>
    %32 = vector.shape_cast %31 : vector<1x1x32xf32> to vector<1x32xf32>
    %cst_49 = arith.constant dense<0.000000e+00> : vector<18xf32>
    %33 = vector.multi_reduction <add>, %8, %cst_49 [1] : vector<18x32xf32> to vector<18xf32>
    %34 = vector.shape_cast %33 : vector<18xf32> to vector<18x1xf32>
    %cst_50 = arith.constant 3.200000e+01 : f32
    %35 = vector.broadcast %cst_50 : f32 to vector<18x1xf32>
    %36 = arith.divf %34, %35 : vector<18x1xf32>
    %37 = arith.mulf %8, %8 : vector<18x32xf32>
    %cst_51 = arith.constant dense<0.000000e+00> : vector<18xf32>
    %38 = vector.multi_reduction <add>, %37, %cst_51 [1] : vector<18x32xf32> to vector<18xf32>
    %39 = vector.shape_cast %38 : vector<18xf32> to vector<18x1xf32>
    %cst_52 = arith.constant 3.200000e+01 : f32
    %40 = vector.broadcast %cst_52 : f32 to vector<18x1xf32>
    %41 = arith.divf %39, %40 : vector<18x1xf32>
    %42 = arith.mulf %36, %36 : vector<18x1xf32>
    %43 = arith.subf %41, %42 : vector<18x1xf32>
    %cst_53 = arith.constant 9.99999974E-6 : f32
    %44 = vector.broadcast %cst_53 : f32 to vector<18x1xf32>
    %45 = arith.addf %43, %44 : vector<18x1xf32>
    %46 = math.rsqrt %45 : vector<18x1xf32>
    %47 = vector.broadcast %36 : vector<18x1xf32> to vector<18x32xf32>
    %48 = arith.subf %8, %47 : vector<18x32xf32>
    %49 = vector.broadcast %46 : vector<18x1xf32> to vector<18x32xf32>
    %50 = arith.mulf %48, %49 : vector<18x32xf32>
    %51 = vector.broadcast %10 : vector<1x32xf32> to vector<18x32xf32>
    %52 = arith.mulf %50, %51 : vector<18x32xf32>
    %53 = vector.broadcast %12 : vector<1x32xf32> to vector<18x32xf32>
    %54 = arith.addf %52, %53 : vector<18x32xf32>
    %cst_54 = arith.constant dense<0.000000e+00> : vector<18x96xf32>
    %55 = tpu.matmul %54, %14, %cst_54 {dimension_numbers = #tpu.dot_dimension_numbers<[1], [0], [0], [1], [0, 0, 1, 1], [], []>} : vector<18x32xf32>, vector<32x96xf32>, vector<18x96xf32> -> vector<18x96xf32>
    %56 = vector.broadcast %16 : vector<1x96xf32> to vector<18x96xf32>
    %57 = arith.addf %55, %56 : vector<18x96xf32>
    %58 = vector.extract_strided_slice %57 {offsets = [0, 0], sizes = [18, 32], strides = [1, 1]} : vector<18x96xf32> to vector<18x32xf32>
    %59 = vector.extract_strided_slice %57 {offsets = [0, 32], sizes = [18, 32], strides = [1, 1]} : vector<18x96xf32> to vector<18x32xf32>
    %60 = vector.extract_strided_slice %57 {offsets = [0, 64], sizes = [18, 32], strides = [1, 1]} : vector<18x96xf32> to vector<18x32xf32>
    %cst_55 = arith.constant dense<0.000000e+00> : vector<72x32xf32>
    %61 = tpu.matmul %0, %58, %cst_55 {dimension_numbers = #tpu.dot_dimension_numbers<[1], [0], [0], [1], [0, 0, 1, 1], [], []>} : vector<72x18xf32>, vector<18x32xf32>, vector<72x32xf32> -> vector<72x32xf32>
    %62 = arith.mulf %61, %2 : vector<72x32xf32>
    %63 = tpu.transpose %59, [1, 0] : vector<18x32xf32> -> vector<32x18xf32>
    %cst_56 = arith.constant dense<0.000000e+00> : vector<72x18xf32>
    %64 = tpu.matmul %62, %63, %cst_56 {dimension_numbers = #tpu.dot_dimension_numbers<[1], [0], [0], [1], [0, 0, 1, 1], [], []>} : vector<72x32xf32>, vector<32x18xf32>, vector<72x18xf32> -> vector<72x18xf32>
    %65 = arith.addf %64, %3 : vector<72x18xf32>
    %cst_57 = arith.constant dense<0xFF800000> : vector<72xf32>
    %66 = vector.multi_reduction <maximumf>, %65, %cst_57 [1] : vector<72x18xf32> to vector<72xf32>
    %67 = vector.shape_cast %66 : vector<72xf32> to vector<72x1xf32>
    %68 = vector.broadcast %67 : vector<72x1xf32> to vector<72x18xf32>
    %69 = arith.subf %65, %68 : vector<72x18xf32>
    %70 = math.exp %69 : vector<72x18xf32>
    %cst_58 = arith.constant dense<0.000000e+00> : vector<72xf32>
    %71 = vector.multi_reduction <add>, %70, %cst_58 [1] : vector<72x18xf32> to vector<72xf32>
    %72 = vector.shape_cast %71 : vector<72xf32> to vector<72x1xf32>
    %73 = tpu.reciprocal %72 {approx = true} : vector<72x1xf32> -> vector<72x1xf32>
    %74 = vector.broadcast %73 : vector<72x1xf32> to vector<72x18xf32>
    %75 = arith.mulf %70, %74 : vector<72x18xf32>
    %cst_59 = arith.constant dense<0.000000e+00> : vector<72x32xf32>
    %76 = tpu.matmul %75, %60, %cst_59 {dimension_numbers = #tpu.dot_dimension_numbers<[1], [0], [0], [1], [0, 0, 1, 1], [], []>} : vector<72x18xf32>, vector<18x32xf32>, vector<72x32xf32> -> vector<72x32xf32>
    %77 = arith.mulf %76, %2 : vector<72x32xf32>
    %cst_60 = arith.constant dense<0.000000e+00> : vector<18x32xf32>
    %78 = tpu.matmul %1, %77, %cst_60 {dimension_numbers = #tpu.dot_dimension_numbers<[1], [0], [0], [1], [0, 0, 1, 1], [], []>} : vector<18x72xf32>, vector<72x32xf32>, vector<18x32xf32> -> vector<18x32xf32>
    %cst_61 = arith.constant dense<0.000000e+00> : vector<18x32xf32>
    %79 = tpu.matmul %78, %18, %cst_61 {dimension_numbers = #tpu.dot_dimension_numbers<[1], [0], [0], [1], [0, 0, 1, 1], [], []>} : vector<18x32xf32>, vector<32x32xf32>, vector<18x32xf32> -> vector<18x32xf32>
    %80 = vector.broadcast %20 : vector<1x32xf32> to vector<18x32xf32>
    %81 = arith.addf %79, %80 : vector<18x32xf32>
    %82 = arith.addf %8, %81 : vector<18x32xf32>
    %cst_62 = arith.constant dense<0.000000e+00> : vector<18xf32>
    %83 = vector.multi_reduction <add>, %82, %cst_62 [1] : vector<18x32xf32> to vector<18xf32>
    %84 = vector.shape_cast %83 : vector<18xf32> to vector<18x1xf32>
    %cst_63 = arith.constant 3.200000e+01 : f32
    %85 = vector.broadcast %cst_63 : f32 to vector<18x1xf32>
    %86 = arith.divf %84, %85 : vector<18x1xf32>
    %87 = arith.mulf %82, %82 : vector<18x32xf32>
    %cst_64 = arith.constant dense<0.000000e+00> : vector<18xf32>
    %88 = vector.multi_reduction <add>, %87, %cst_64 [1] : vector<18x32xf32> to vector<18xf32>
    %89 = vector.shape_cast %88 : vector<18xf32> to vector<18x1xf32>
    %cst_65 = arith.constant 3.200000e+01 : f32
    %90 = vector.broadcast %cst_65 : f32 to vector<18x1xf32>
    %91 = arith.divf %89, %90 : vector<18x1xf32>
    %92 = arith.mulf %86, %86 : vector<18x1xf32>
    %93 = arith.subf %91, %92 : vector<18x1xf32>
    %cst_66 = arith.constant 9.99999974E-6 : f32
    %94 = vector.broadcast %cst_66 : f32 to vector<18x1xf32>
    %95 = arith.addf %93, %94 : vector<18x1xf32>
    %96 = math.rsqrt %95 : vector<18x1xf32>
    %97 = vector.broadcast %86 : vector<18x1xf32> to vector<18x32xf32>
    %98 = arith.subf %82, %97 : vector<18x32xf32>
    %99 = vector.broadcast %96 : vector<18x1xf32> to vector<18x32xf32>
    %100 = arith.mulf %98, %99 : vector<18x32xf32>
    %101 = vector.broadcast %22 : vector<1x32xf32> to vector<18x32xf32>
    %102 = arith.mulf %100, %101 : vector<18x32xf32>
    %103 = vector.broadcast %24 : vector<1x32xf32> to vector<18x32xf32>
    %104 = arith.addf %102, %103 : vector<18x32xf32>
    %cst_67 = arith.constant dense<0.000000e+00> : vector<18x64xf32>
    %105 = tpu.matmul %104, %26, %cst_67 {dimension_numbers = #tpu.dot_dimension_numbers<[1], [0], [0], [1], [0, 0, 1, 1], [], []>} : vector<18x32xf32>, vector<32x64xf32>, vector<18x64xf32> -> vector<18x64xf32>
    %106 = vector.broadcast %28 : vector<1x64xf32> to vector<18x64xf32>
    %107 = arith.addf %105, %106 : vector<18x64xf32>
    %108 = arith.mulf %107, %107 : vector<18x64xf32>
    %109 = arith.mulf %107, %108 : vector<18x64xf32>
    %cst_68 = arith.constant 4.471500e-02 : f32
    %110 = vector.broadcast %cst_68 : f32 to vector<18x64xf32>
    %111 = arith.mulf %110, %109 : vector<18x64xf32>
    %112 = arith.addf %107, %111 : vector<18x64xf32>
    %cst_69 = arith.constant 0.797884583 : f32
    %113 = vector.broadcast %cst_69 : f32 to vector<18x64xf32>
    %114 = arith.mulf %113, %112 : vector<18x64xf32>
    %115 = math.tanh %114 : vector<18x64xf32>
    %cst_70 = arith.constant 1.000000e+00 : f32
    %116 = vector.broadcast %cst_70 : f32 to vector<18x64xf32>
    %117 = arith.addf %116, %115 : vector<18x64xf32>
    %cst_71 = arith.constant 5.000000e-01 : f32
    %118 = vector.broadcast %cst_71 : f32 to vector<18x64xf32>
    %119 = arith.mulf %118, %117 : vector<18x64xf32>
    %120 = arith.mulf %107, %119 : vector<18x64xf32>
    %cst_72 = arith.constant dense<0.000000e+00> : vector<18x32xf32>
    %121 = tpu.matmul %120, %30, %cst_72 {dimension_numbers = #tpu.dot_dimension_numbers<[1], [0], [0], [1], [0, 0, 1, 1], [], []>} : vector<18x64xf32>, vector<64x32xf32>, vector<18x32xf32> -> vector<18x32xf32>
    %122 = vector.broadcast %32 : vector<1x32xf32> to vector<18x32xf32>
    %123 = arith.addf %121, %122 : vector<18x32xf32>
    %124 = arith.addf %82, %123 : vector<18x32xf32>
    %c1 = arith.constant 1 : index
    %c0_73 = arith.constant 0 : index
    %c0_74 = arith.constant 0 : index
    %125 = vector.load %arg3[%c1, %c0_73, %c0_74] : memref<2x1x32xf32, #tpu.memory_space<vmem>>, vector<1x1x32xf32>
    %126 = vector.shape_cast %125 : vector<1x1x32xf32> to vector<1x32xf32>
    %c1_75 = arith.constant 1 : index
    %c0_76 = arith.constant 0 : index
    %c0_77 = arith.constant 0 : index
    %127 = vector.load %arg4[%c1_75, %c0_76, %c0_77] : memref<2x1x32xf32, #tpu.memory_space<vmem>>, vector<1x1x32xf32>
    %128 = vector.shape_cast %127 : vector<1x1x32xf32> to vector<1x32xf32>
    %c1_78 = arith.constant 1 : index
    %c0_79 = arith.constant 0 : index
    %c0_80 = arith.constant 0 : index
    %129 = vector.load %arg5[%c1_78, %c0_79, %c0_80] : memref<2x32x96xf32, #tpu.memory_space<vmem>>, vector<1x32x96xf32>
    %130 = vector.shape_cast %129 : vector<1x32x96xf32> to vector<32x96xf32>
    %c1_81 = arith.constant 1 : index
    %c0_82 = arith.constant 0 : index
    %c0_83 = arith.constant 0 : index
    %131 = vector.load %arg6[%c1_81, %c0_82, %c0_83] : memref<2x1x96xf32, #tpu.memory_space<vmem>>, vector<1x1x96xf32>
    %132 = vector.shape_cast %131 : vector<1x1x96xf32> to vector<1x96xf32>
    %c1_84 = arith.constant 1 : index
    %c0_85 = arith.constant 0 : index
    %c0_86 = arith.constant 0 : index
    %133 = vector.load %arg7[%c1_84, %c0_85, %c0_86] : memref<2x32x32xf32, #tpu.memory_space<vmem>>, vector<1x32x32xf32>
    %134 = vector.shape_cast %133 : vector<1x32x32xf32> to vector<32x32xf32>
    %c1_87 = arith.constant 1 : index
    %c0_88 = arith.constant 0 : index
    %c0_89 = arith.constant 0 : index
    %135 = vector.load %arg8[%c1_87, %c0_88, %c0_89] : memref<2x1x32xf32, #tpu.memory_space<vmem>>, vector<1x1x32xf32>
    %136 = vector.shape_cast %135 : vector<1x1x32xf32> to vector<1x32xf32>
    %c1_90 = arith.constant 1 : index
    %c0_91 = arith.constant 0 : index
    %c0_92 = arith.constant 0 : index
    %137 = vector.load %arg9[%c1_90, %c0_91, %c0_92] : memref<2x1x32xf32, #tpu.memory_space<vmem>>, vector<1x1x32xf32>
    %138 = vector.shape_cast %137 : vector<1x1x32xf32> to vector<1x32xf32>
    %c1_93 = arith.constant 1 : index
    %c0_94 = arith.constant 0 : index
    %c0_95 = arith.constant 0 : index
    %139 = vector.load %arg10[%c1_93, %c0_94, %c0_95] : memref<2x1x32xf32, #tpu.memory_space<vmem>>, vector<1x1x32xf32>
    %140 = vector.shape_cast %139 : vector<1x1x32xf32> to vector<1x32xf32>
    %c1_96 = arith.constant 1 : index
    %c0_97 = arith.constant 0 : index
    %c0_98 = arith.constant 0 : index
    %141 = vector.load %arg11[%c1_96, %c0_97, %c0_98] : memref<2x32x64xf32, #tpu.memory_space<vmem>>, vector<1x32x64xf32>
    %142 = vector.shape_cast %141 : vector<1x32x64xf32> to vector<32x64xf32>
    %c1_99 = arith.constant 1 : index
    %c0_100 = arith.constant 0 : index
    %c0_101 = arith.constant 0 : index
    %143 = vector.load %arg12[%c1_99, %c0_100, %c0_101] : memref<2x1x64xf32, #tpu.memory_space<vmem>>, vector<1x1x64xf32>
    %144 = vector.shape_cast %143 : vector<1x1x64xf32> to vector<1x64xf32>
    %c1_102 = arith.constant 1 : index
    %c0_103 = arith.constant 0 : index
    %c0_104 = arith.constant 0 : index
    %145 = vector.load %arg13[%c1_102, %c0_103, %c0_104] : memref<2x64x32xf32, #tpu.memory_space<vmem>>, vector<1x64x32xf32>
    %146 = vector.shape_cast %145 : vector<1x64x32xf32> to vector<64x32xf32>
    %c1_105 = arith.constant 1 : index
    %c0_106 = arith.constant 0 : index
    %c0_107 = arith.constant 0 : index
    %147 = vector.load %arg14[%c1_105, %c0_106, %c0_107] : memref<2x1x32xf32, #tpu.memory_space<vmem>>, vector<1x1x32xf32>
    %148 = vector.shape_cast %147 : vector<1x1x32xf32> to vector<1x32xf32>
    %cst_108 = arith.constant dense<0.000000e+00> : vector<18xf32>
    %149 = vector.multi_reduction <add>, %124, %cst_108 [1] : vector<18x32xf32> to vector<18xf32>
    %150 = vector.shape_cast %149 : vector<18xf32> to vector<18x1xf32>
    %cst_109 = arith.constant 3.200000e+01 : f32
    %151 = vector.broadcast %cst_109 : f32 to vector<18x1xf32>
    %152 = arith.divf %150, %151 : vector<18x1xf32>
    %153 = arith.mulf %124, %124 : vector<18x32xf32>
    %cst_110 = arith.constant dense<0.000000e+00> : vector<18xf32>
    %154 = vector.multi_reduction <add>, %153, %cst_110 [1] : vector<18x32xf32> to vector<18xf32>
    %155 = vector.shape_cast %154 : vector<18xf32> to vector<18x1xf32>
    %cst_111 = arith.constant 3.200000e+01 : f32
    %156 = vector.broadcast %cst_111 : f32 to vector<18x1xf32>
    %157 = arith.divf %155, %156 : vector<18x1xf32>
    %158 = arith.mulf %152, %152 : vector<18x1xf32>
    %159 = arith.subf %157, %158 : vector<18x1xf32>
    %cst_112 = arith.constant 9.99999974E-6 : f32
    %160 = vector.broadcast %cst_112 : f32 to vector<18x1xf32>
    %161 = arith.addf %159, %160 : vector<18x1xf32>
    %162 = math.rsqrt %161 : vector<18x1xf32>
    %163 = vector.broadcast %152 : vector<18x1xf32> to vector<18x32xf32>
    %164 = arith.subf %124, %163 : vector<18x32xf32>
    %165 = vector.broadcast %162 : vector<18x1xf32> to vector<18x32xf32>
    %166 = arith.mulf %164, %165 : vector<18x32xf32>
    %167 = vector.broadcast %126 : vector<1x32xf32> to vector<18x32xf32>
    %168 = arith.mulf %166, %167 : vector<18x32xf32>
    %169 = vector.broadcast %128 : vector<1x32xf32> to vector<18x32xf32>
    %170 = arith.addf %168, %169 : vector<18x32xf32>
    %cst_113 = arith.constant dense<0.000000e+00> : vector<18x96xf32>
    %171 = tpu.matmul %170, %130, %cst_113 {dimension_numbers = #tpu.dot_dimension_numbers<[1], [0], [0], [1], [0, 0, 1, 1], [], []>} : vector<18x32xf32>, vector<32x96xf32>, vector<18x96xf32> -> vector<18x96xf32>
    %172 = vector.broadcast %132 : vector<1x96xf32> to vector<18x96xf32>
    %173 = arith.addf %171, %172 : vector<18x96xf32>
    %174 = vector.extract_strided_slice %173 {offsets = [0, 0], sizes = [18, 32], strides = [1, 1]} : vector<18x96xf32> to vector<18x32xf32>
    %175 = vector.extract_strided_slice %173 {offsets = [0, 32], sizes = [18, 32], strides = [1, 1]} : vector<18x96xf32> to vector<18x32xf32>
    %176 = vector.extract_strided_slice %173 {offsets = [0, 64], sizes = [18, 32], strides = [1, 1]} : vector<18x96xf32> to vector<18x32xf32>
    %cst_114 = arith.constant dense<0.000000e+00> : vector<72x32xf32>
    %177 = tpu.matmul %0, %174, %cst_114 {dimension_numbers = #tpu.dot_dimension_numbers<[1], [0], [0], [1], [0, 0, 1, 1], [], []>} : vector<72x18xf32>, vector<18x32xf32>, vector<72x32xf32> -> vector<72x32xf32>
    %178 = arith.mulf %177, %2 : vector<72x32xf32>
    %179 = tpu.transpose %175, [1, 0] : vector<18x32xf32> -> vector<32x18xf32>
    %cst_115 = arith.constant dense<0.000000e+00> : vector<72x18xf32>
    %180 = tpu.matmul %178, %179, %cst_115 {dimension_numbers = #tpu.dot_dimension_numbers<[1], [0], [0], [1], [0, 0, 1, 1], [], []>} : vector<72x32xf32>, vector<32x18xf32>, vector<72x18xf32> -> vector<72x18xf32>
    %181 = arith.addf %180, %3 : vector<72x18xf32>
    %cst_116 = arith.constant dense<0xFF800000> : vector<72xf32>
    %182 = vector.multi_reduction <maximumf>, %181, %cst_116 [1] : vector<72x18xf32> to vector<72xf32>
    %183 = vector.shape_cast %182 : vector<72xf32> to vector<72x1xf32>
    %184 = vector.broadcast %183 : vector<72x1xf32> to vector<72x18xf32>
    %185 = arith.subf %181, %184 : vector<72x18xf32>
    %186 = math.exp %185 : vector<72x18xf32>
    %cst_117 = arith.constant dense<0.000000e+00> : vector<72xf32>
    %187 = vector.multi_reduction <add>, %186, %cst_117 [1] : vector<72x18xf32> to vector<72xf32>
    %188 = vector.shape_cast %187 : vector<72xf32> to vector<72x1xf32>
    %189 = tpu.reciprocal %188 {approx = true} : vector<72x1xf32> -> vector<72x1xf32>
    %190 = vector.broadcast %189 : vector<72x1xf32> to vector<72x18xf32>
    %191 = arith.mulf %186, %190 : vector<72x18xf32>
    %cst_118 = arith.constant dense<0.000000e+00> : vector<72x32xf32>
    %192 = tpu.matmul %191, %176, %cst_118 {dimension_numbers = #tpu.dot_dimension_numbers<[1], [0], [0], [1], [0, 0, 1, 1], [], []>} : vector<72x18xf32>, vector<18x32xf32>, vector<72x32xf32> -> vector<72x32xf32>
    %193 = arith.mulf %192, %2 : vector<72x32xf32>
    %cst_119 = arith.constant dense<0.000000e+00> : vector<18x32xf32>
    %194 = tpu.matmul %1, %193, %cst_119 {dimension_numbers = #tpu.dot_dimension_numbers<[1], [0], [0], [1], [0, 0, 1, 1], [], []>} : vector<18x72xf32>, vector<72x32xf32>, vector<18x32xf32> -> vector<18x32xf32>
    %cst_120 = arith.constant dense<0.000000e+00> : vector<18x32xf32>
    %195 = tpu.matmul %194, %134, %cst_120 {dimension_numbers = #tpu.dot_dimension_numbers<[1], [0], [0], [1], [0, 0, 1, 1], [], []>} : vector<18x32xf32>, vector<32x32xf32>, vector<18x32xf32> -> vector<18x32xf32>
    %196 = vector.broadcast %136 : vector<1x32xf32> to vector<18x32xf32>
    %197 = arith.addf %195, %196 : vector<18x32xf32>
    %198 = arith.addf %124, %197 : vector<18x32xf32>
    %cst_121 = arith.constant dense<0.000000e+00> : vector<18xf32>
    %199 = vector.multi_reduction <add>, %198, %cst_121 [1] : vector<18x32xf32> to vector<18xf32>
    %200 = vector.shape_cast %199 : vector<18xf32> to vector<18x1xf32>
    %cst_122 = arith.constant 3.200000e+01 : f32
    %201 = vector.broadcast %cst_122 : f32 to vector<18x1xf32>
    %202 = arith.divf %200, %201 : vector<18x1xf32>
    %203 = arith.mulf %198, %198 : vector<18x32xf32>
    %cst_123 = arith.constant dense<0.000000e+00> : vector<18xf32>
    %204 = vector.multi_reduction <add>, %203, %cst_123 [1] : vector<18x32xf32> to vector<18xf32>
    %205 = vector.shape_cast %204 : vector<18xf32> to vector<18x1xf32>
    %cst_124 = arith.constant 3.200000e+01 : f32
    %206 = vector.broadcast %cst_124 : f32 to vector<18x1xf32>
    %207 = arith.divf %205, %206 : vector<18x1xf32>
    %208 = arith.mulf %202, %202 : vector<18x1xf32>
    %209 = arith.subf %207, %208 : vector<18x1xf32>
    %cst_125 = arith.constant 9.99999974E-6 : f32
    %210 = vector.broadcast %cst_125 : f32 to vector<18x1xf32>
    %211 = arith.addf %209, %210 : vector<18x1xf32>
    %212 = math.rsqrt %211 : vector<18x1xf32>
    %213 = vector.broadcast %202 : vector<18x1xf32> to vector<18x32xf32>
    %214 = arith.subf %198, %213 : vector<18x32xf32>
    %215 = vector.broadcast %212 : vector<18x1xf32> to vector<18x32xf32>
    %216 = arith.mulf %214, %215 : vector<18x32xf32>
    %217 = vector.broadcast %138 : vector<1x32xf32> to vector<18x32xf32>
    %218 = arith.mulf %216, %217 : vector<18x32xf32>
    %219 = vector.broadcast %140 : vector<1x32xf32> to vector<18x32xf32>
    %220 = arith.addf %218, %219 : vector<18x32xf32>
    %cst_126 = arith.constant dense<0.000000e+00> : vector<18x64xf32>
    %221 = tpu.matmul %220, %142, %cst_126 {dimension_numbers = #tpu.dot_dimension_numbers<[1], [0], [0], [1], [0, 0, 1, 1], [], []>} : vector<18x32xf32>, vector<32x64xf32>, vector<18x64xf32> -> vector<18x64xf32>
    %222 = vector.broadcast %144 : vector<1x64xf32> to vector<18x64xf32>
    %223 = arith.addf %221, %222 : vector<18x64xf32>
    %224 = arith.mulf %223, %223 : vector<18x64xf32>
    %225 = arith.mulf %223, %224 : vector<18x64xf32>
    %cst_127 = arith.constant 4.471500e-02 : f32
    %226 = vector.broadcast %cst_127 : f32 to vector<18x64xf32>
    %227 = arith.mulf %226, %225 : vector<18x64xf32>
    %228 = arith.addf %223, %227 : vector<18x64xf32>
    %cst_128 = arith.constant 0.797884583 : f32
    %229 = vector.broadcast %cst_128 : f32 to vector<18x64xf32>
    %230 = arith.mulf %229, %228 : vector<18x64xf32>
    %231 = math.tanh %230 : vector<18x64xf32>
    %cst_129 = arith.constant 1.000000e+00 : f32
    %232 = vector.broadcast %cst_129 : f32 to vector<18x64xf32>
    %233 = arith.addf %232, %231 : vector<18x64xf32>
    %cst_130 = arith.constant 5.000000e-01 : f32
    %234 = vector.broadcast %cst_130 : f32 to vector<18x64xf32>
    %235 = arith.mulf %234, %233 : vector<18x64xf32>
    %236 = arith.mulf %223, %235 : vector<18x64xf32>
    %cst_131 = arith.constant dense<0.000000e+00> : vector<18x32xf32>
    %237 = tpu.matmul %236, %146, %cst_131 {dimension_numbers = #tpu.dot_dimension_numbers<[1], [0], [0], [1], [0, 0, 1, 1], [], []>} : vector<18x64xf32>, vector<64x32xf32>, vector<18x32xf32> -> vector<18x32xf32>
    %238 = vector.broadcast %148 : vector<1x32xf32> to vector<18x32xf32>
    %239 = arith.addf %237, %238 : vector<18x32xf32>
    %240 = arith.addf %198, %239 : vector<18x32xf32>
    %c0_132 = arith.constant 0 : index
    %c0_133 = arith.constant 0 : index
    %241 = vector.load %arg19[%c0_132, %c0_133] : memref<1x32xf32, #tpu.memory_space<vmem>>, vector<1x32xf32>
    %c0_134 = arith.constant 0 : index
    %c0_135 = arith.constant 0 : index
    %242 = vector.load %arg20[%c0_134, %c0_135] : memref<1x32xf32, #tpu.memory_space<vmem>>, vector<1x32xf32>
    %cst_136 = arith.constant dense<0.000000e+00> : vector<18xf32>
    %243 = vector.multi_reduction <add>, %240, %cst_136 [1] : vector<18x32xf32> to vector<18xf32>
    %244 = vector.shape_cast %243 : vector<18xf32> to vector<18x1xf32>
    %cst_137 = arith.constant 3.200000e+01 : f32
    %245 = vector.broadcast %cst_137 : f32 to vector<18x1xf32>
    %246 = arith.divf %244, %245 : vector<18x1xf32>
    %247 = arith.mulf %240, %240 : vector<18x32xf32>
    %cst_138 = arith.constant dense<0.000000e+00> : vector<18xf32>
    %248 = vector.multi_reduction <add>, %247, %cst_138 [1] : vector<18x32xf32> to vector<18xf32>
    %249 = vector.shape_cast %248 : vector<18xf32> to vector<18x1xf32>
    %cst_139 = arith.constant 3.200000e+01 : f32
    %250 = vector.broadcast %cst_139 : f32 to vector<18x1xf32>
    %251 = arith.divf %249, %250 : vector<18x1xf32>
    %252 = arith.mulf %246, %246 : vector<18x1xf32>
    %253 = arith.subf %251, %252 : vector<18x1xf32>
    %cst_140 = arith.constant 9.99999974E-6 : f32
    %254 = vector.broadcast %cst_140 : f32 to vector<18x1xf32>
    %255 = arith.addf %253, %254 : vector<18x1xf32>
    %256 = math.rsqrt %255 : vector<18x1xf32>
    %257 = vector.broadcast %246 : vector<18x1xf32> to vector<18x32xf32>
    %258 = arith.subf %240, %257 : vector<18x32xf32>
    %259 = vector.broadcast %256 : vector<18x1xf32> to vector<18x32xf32>
    %260 = arith.mulf %258, %259 : vector<18x32xf32>
    %261 = vector.broadcast %241 : vector<1x32xf32> to vector<18x32xf32>
    %262 = arith.mulf %260, %261 : vector<18x32xf32>
    %263 = vector.broadcast %242 : vector<1x32xf32> to vector<18x32xf32>
    %264 = arith.addf %262, %263 : vector<18x32xf32>
    %c0_141 = arith.constant 0 : index
    %c0_142 = arith.constant 0 : index
    %265 = vector.load %arg21[%c0_141, %c0_142] : memref<32x32xf32, #tpu.memory_space<vmem>>, vector<32x32xf32>
    %cst_143 = arith.constant dense<0.000000e+00> : vector<18x32xf32>
    %266 = tpu.matmul %264, %265, %cst_143 {dimension_numbers = #tpu.dot_dimension_numbers<[1], [0], [0], [1], [0, 0, 1, 1], [], []>} : vector<18x32xf32>, vector<32x32xf32>, vector<18x32xf32> -> vector<18x32xf32>
    %c0_144 = arith.constant 0 : index
    %c0_145 = arith.constant 0 : index
    %267 = vector.load %arg22[%c0_144, %c0_145] : memref<1x32xf32, #tpu.memory_space<vmem>>, vector<1x32xf32>
    %268 = vector.broadcast %267 : vector<1x32xf32> to vector<18x32xf32>
    %269 = arith.addf %266, %268 : vector<18x32xf32>
    %c0_146 = arith.constant 0 : index
    %c0_147 = arith.constant 0 : index
    %270 = vector.load %arg23[%c0_146, %c0_147] : memref<34x18xf32, #tpu.memory_space<vmem>>, vector<34x18xf32>
    %cst_148 = arith.constant dense<0.000000e+00> : vector<34x32xf32>
    %271 = tpu.matmul %270, %269, %cst_148 {dimension_numbers = #tpu.dot_dimension_numbers<[1], [0], [0], [1], [0, 0, 1, 1], [], []>} : vector<34x18xf32>, vector<18x32xf32>, vector<34x32xf32> -> vector<34x32xf32>
    %c0_149 = arith.constant 0 : index
    %c0_150 = arith.constant 0 : index
    %272 = vector.load %arg24[%c0_149, %c0_150] : memref<34x32xf32, #tpu.memory_space<vmem>>, vector<34x32xf32>
    %273 = arith.addf %271, %272 : vector<34x32xf32>
    %c0_151 = arith.constant 0 : index
    %c0_152 = arith.constant 0 : index
    %274 = vector.load %arg37[%c0_151, %c0_152] : memref<136x34xf32, #tpu.memory_space<vmem>>, vector<136x34xf32>
    %c0_153 = arith.constant 0 : index
    %c0_154 = arith.constant 0 : index
    %275 = vector.load %arg38[%c0_153, %c0_154] : memref<34x136xf32, #tpu.memory_space<vmem>>, vector<34x136xf32>
    %c0_155 = arith.constant 0 : index
    %c0_156 = arith.constant 0 : index
    %276 = vector.load %arg39[%c0_155, %c0_156] : memref<136x32xf32, #tpu.memory_space<vmem>>, vector<136x32xf32>
    %c0_157 = arith.constant 0 : index
    %c0_158 = arith.constant 0 : index
    %277 = vector.load %arg40[%c0_157, %c0_158] : memref<136x34xf32, #tpu.memory_space<vmem>>, vector<136x34xf32>
    %c0_159 = arith.constant 0 : index
    %c0_160 = arith.constant 0 : index
    %c0_161 = arith.constant 0 : index
    %278 = vector.load %arg25[%c0_159, %c0_160, %c0_161] : memref<1x1x32xf32, #tpu.memory_space<vmem>>, vector<1x1x32xf32>
    %279 = vector.shape_cast %278 : vector<1x1x32xf32> to vector<1x32xf32>
    %c0_162 = arith.constant 0 : index
    %c0_163 = arith.constant 0 : index
    %c0_164 = arith.constant 0 : index
    %280 = vector.load %arg26[%c0_162, %c0_163, %c0_164] : memref<1x1x32xf32, #tpu.memory_space<vmem>>, vector<1x1x32xf32>
    %281 = vector.shape_cast %280 : vector<1x1x32xf32> to vector<1x32xf32>
    %c0_165 = arith.constant 0 : index
    %c0_166 = arith.constant 0 : index
    %c0_167 = arith.constant 0 : index
    %282 = vector.load %arg27[%c0_165, %c0_166, %c0_167] : memref<1x32x96xf32, #tpu.memory_space<vmem>>, vector<1x32x96xf32>
    %283 = vector.shape_cast %282 : vector<1x32x96xf32> to vector<32x96xf32>
    %c0_168 = arith.constant 0 : index
    %c0_169 = arith.constant 0 : index
    %c0_170 = arith.constant 0 : index
    %284 = vector.load %arg28[%c0_168, %c0_169, %c0_170] : memref<1x1x96xf32, #tpu.memory_space<vmem>>, vector<1x1x96xf32>
    %285 = vector.shape_cast %284 : vector<1x1x96xf32> to vector<1x96xf32>
    %c0_171 = arith.constant 0 : index
    %c0_172 = arith.constant 0 : index
    %c0_173 = arith.constant 0 : index
    %286 = vector.load %arg29[%c0_171, %c0_172, %c0_173] : memref<1x32x32xf32, #tpu.memory_space<vmem>>, vector<1x32x32xf32>
    %287 = vector.shape_cast %286 : vector<1x32x32xf32> to vector<32x32xf32>
    %c0_174 = arith.constant 0 : index
    %c0_175 = arith.constant 0 : index
    %c0_176 = arith.constant 0 : index
    %288 = vector.load %arg30[%c0_174, %c0_175, %c0_176] : memref<1x1x32xf32, #tpu.memory_space<vmem>>, vector<1x1x32xf32>
    %289 = vector.shape_cast %288 : vector<1x1x32xf32> to vector<1x32xf32>
    %c0_177 = arith.constant 0 : index
    %c0_178 = arith.constant 0 : index
    %c0_179 = arith.constant 0 : index
    %290 = vector.load %arg31[%c0_177, %c0_178, %c0_179] : memref<1x1x32xf32, #tpu.memory_space<vmem>>, vector<1x1x32xf32>
    %291 = vector.shape_cast %290 : vector<1x1x32xf32> to vector<1x32xf32>
    %c0_180 = arith.constant 0 : index
    %c0_181 = arith.constant 0 : index
    %c0_182 = arith.constant 0 : index
    %292 = vector.load %arg32[%c0_180, %c0_181, %c0_182] : memref<1x1x32xf32, #tpu.memory_space<vmem>>, vector<1x1x32xf32>
    %293 = vector.shape_cast %292 : vector<1x1x32xf32> to vector<1x32xf32>
    %c0_183 = arith.constant 0 : index
    %c0_184 = arith.constant 0 : index
    %c0_185 = arith.constant 0 : index
    %294 = vector.load %arg33[%c0_183, %c0_184, %c0_185] : memref<1x32x64xf32, #tpu.memory_space<vmem>>, vector<1x32x64xf32>
    %295 = vector.shape_cast %294 : vector<1x32x64xf32> to vector<32x64xf32>
    %c0_186 = arith.constant 0 : index
    %c0_187 = arith.constant 0 : index
    %c0_188 = arith.constant 0 : index
    %296 = vector.load %arg34[%c0_186, %c0_187, %c0_188] : memref<1x1x64xf32, #tpu.memory_space<vmem>>, vector<1x1x64xf32>
    %297 = vector.shape_cast %296 : vector<1x1x64xf32> to vector<1x64xf32>
    %c0_189 = arith.constant 0 : index
    %c0_190 = arith.constant 0 : index
    %c0_191 = arith.constant 0 : index
    %298 = vector.load %arg35[%c0_189, %c0_190, %c0_191] : memref<1x64x32xf32, #tpu.memory_space<vmem>>, vector<1x64x32xf32>
    %299 = vector.shape_cast %298 : vector<1x64x32xf32> to vector<64x32xf32>
    %c0_192 = arith.constant 0 : index
    %c0_193 = arith.constant 0 : index
    %c0_194 = arith.constant 0 : index
    %300 = vector.load %arg36[%c0_192, %c0_193, %c0_194] : memref<1x1x32xf32, #tpu.memory_space<vmem>>, vector<1x1x32xf32>
    %301 = vector.shape_cast %300 : vector<1x1x32xf32> to vector<1x32xf32>
    %cst_195 = arith.constant dense<0.000000e+00> : vector<34xf32>
    %302 = vector.multi_reduction <add>, %273, %cst_195 [1] : vector<34x32xf32> to vector<34xf32>
    %303 = vector.shape_cast %302 : vector<34xf32> to vector<34x1xf32>
    %cst_196 = arith.constant 3.200000e+01 : f32
    %304 = vector.broadcast %cst_196 : f32 to vector<34x1xf32>
    %305 = arith.divf %303, %304 : vector<34x1xf32>
    %306 = arith.mulf %273, %273 : vector<34x32xf32>
    %cst_197 = arith.constant dense<0.000000e+00> : vector<34xf32>
    %307 = vector.multi_reduction <add>, %306, %cst_197 [1] : vector<34x32xf32> to vector<34xf32>
    %308 = vector.shape_cast %307 : vector<34xf32> to vector<34x1xf32>
    %cst_198 = arith.constant 3.200000e+01 : f32
    %309 = vector.broadcast %cst_198 : f32 to vector<34x1xf32>
    %310 = arith.divf %308, %309 : vector<34x1xf32>
    %311 = arith.mulf %305, %305 : vector<34x1xf32>
    %312 = arith.subf %310, %311 : vector<34x1xf32>
    %cst_199 = arith.constant 9.99999974E-6 : f32
    %313 = vector.broadcast %cst_199 : f32 to vector<34x1xf32>
    %314 = arith.addf %312, %313 : vector<34x1xf32>
    %315 = math.rsqrt %314 : vector<34x1xf32>
    %316 = vector.broadcast %305 : vector<34x1xf32> to vector<34x32xf32>
    %317 = arith.subf %273, %316 : vector<34x32xf32>
    %318 = vector.broadcast %315 : vector<34x1xf32> to vector<34x32xf32>
    %319 = arith.mulf %317, %318 : vector<34x32xf32>
    %320 = vector.broadcast %279 : vector<1x32xf32> to vector<34x32xf32>
    %321 = arith.mulf %319, %320 : vector<34x32xf32>
    %322 = vector.broadcast %281 : vector<1x32xf32> to vector<34x32xf32>
    %323 = arith.addf %321, %322 : vector<34x32xf32>
    %cst_200 = arith.constant dense<0.000000e+00> : vector<34x96xf32>
    %324 = tpu.matmul %323, %283, %cst_200 {dimension_numbers = #tpu.dot_dimension_numbers<[1], [0], [0], [1], [0, 0, 1, 1], [], []>} : vector<34x32xf32>, vector<32x96xf32>, vector<34x96xf32> -> vector<34x96xf32>
    %325 = vector.broadcast %285 : vector<1x96xf32> to vector<34x96xf32>
    %326 = arith.addf %324, %325 : vector<34x96xf32>
    %327 = vector.extract_strided_slice %326 {offsets = [0, 0], sizes = [34, 32], strides = [1, 1]} : vector<34x96xf32> to vector<34x32xf32>
    %328 = vector.extract_strided_slice %326 {offsets = [0, 32], sizes = [34, 32], strides = [1, 1]} : vector<34x96xf32> to vector<34x32xf32>
    %329 = vector.extract_strided_slice %326 {offsets = [0, 64], sizes = [34, 32], strides = [1, 1]} : vector<34x96xf32> to vector<34x32xf32>
    %cst_201 = arith.constant dense<0.000000e+00> : vector<136x32xf32>
    %330 = tpu.matmul %274, %327, %cst_201 {dimension_numbers = #tpu.dot_dimension_numbers<[1], [0], [0], [1], [0, 0, 1, 1], [], []>} : vector<136x34xf32>, vector<34x32xf32>, vector<136x32xf32> -> vector<136x32xf32>
    %331 = arith.mulf %330, %276 : vector<136x32xf32>
    %332 = tpu.transpose %328, [1, 0] : vector<34x32xf32> -> vector<32x34xf32>
    %cst_202 = arith.constant dense<0.000000e+00> : vector<136x34xf32>
    %333 = tpu.matmul %331, %332, %cst_202 {dimension_numbers = #tpu.dot_dimension_numbers<[1], [0], [0], [1], [0, 0, 1, 1], [], []>} : vector<136x32xf32>, vector<32x34xf32>, vector<136x34xf32> -> vector<136x34xf32>
    %334 = arith.addf %333, %277 : vector<136x34xf32>
    %cst_203 = arith.constant dense<0xFF800000> : vector<136xf32>
    %335 = vector.multi_reduction <maximumf>, %334, %cst_203 [1] : vector<136x34xf32> to vector<136xf32>
    %336 = vector.shape_cast %335 : vector<136xf32> to vector<136x1xf32>
    %337 = vector.broadcast %336 : vector<136x1xf32> to vector<136x34xf32>
    %338 = arith.subf %334, %337 : vector<136x34xf32>
    %339 = math.exp %338 : vector<136x34xf32>
    %cst_204 = arith.constant dense<0.000000e+00> : vector<136xf32>
    %340 = vector.multi_reduction <add>, %339, %cst_204 [1] : vector<136x34xf32> to vector<136xf32>
    %341 = vector.shape_cast %340 : vector<136xf32> to vector<136x1xf32>
    %342 = tpu.reciprocal %341 {approx = true} : vector<136x1xf32> -> vector<136x1xf32>
    %343 = vector.broadcast %342 : vector<136x1xf32> to vector<136x34xf32>
    %344 = arith.mulf %339, %343 : vector<136x34xf32>
    %cst_205 = arith.constant dense<0.000000e+00> : vector<136x32xf32>
    %345 = tpu.matmul %344, %329, %cst_205 {dimension_numbers = #tpu.dot_dimension_numbers<[1], [0], [0], [1], [0, 0, 1, 1], [], []>} : vector<136x34xf32>, vector<34x32xf32>, vector<136x32xf32> -> vector<136x32xf32>
    %346 = arith.mulf %345, %276 : vector<136x32xf32>
    %cst_206 = arith.constant dense<0.000000e+00> : vector<34x32xf32>
    %347 = tpu.matmul %275, %346, %cst_206 {dimension_numbers = #tpu.dot_dimension_numbers<[1], [0], [0], [1], [0, 0, 1, 1], [], []>} : vector<34x136xf32>, vector<136x32xf32>, vector<34x32xf32> -> vector<34x32xf32>
    %cst_207 = arith.constant dense<0.000000e+00> : vector<34x32xf32>
    %348 = tpu.matmul %347, %287, %cst_207 {dimension_numbers = #tpu.dot_dimension_numbers<[1], [0], [0], [1], [0, 0, 1, 1], [], []>} : vector<34x32xf32>, vector<32x32xf32>, vector<34x32xf32> -> vector<34x32xf32>
    %349 = vector.broadcast %289 : vector<1x32xf32> to vector<34x32xf32>
    %350 = arith.addf %348, %349 : vector<34x32xf32>
    %351 = arith.addf %273, %350 : vector<34x32xf32>
    %cst_208 = arith.constant dense<0.000000e+00> : vector<34xf32>
    %352 = vector.multi_reduction <add>, %351, %cst_208 [1] : vector<34x32xf32> to vector<34xf32>
    %353 = vector.shape_cast %352 : vector<34xf32> to vector<34x1xf32>
    %cst_209 = arith.constant 3.200000e+01 : f32
    %354 = vector.broadcast %cst_209 : f32 to vector<34x1xf32>
    %355 = arith.divf %353, %354 : vector<34x1xf32>
    %356 = arith.mulf %351, %351 : vector<34x32xf32>
    %cst_210 = arith.constant dense<0.000000e+00> : vector<34xf32>
    %357 = vector.multi_reduction <add>, %356, %cst_210 [1] : vector<34x32xf32> to vector<34xf32>
    %358 = vector.shape_cast %357 : vector<34xf32> to vector<34x1xf32>
    %cst_211 = arith.constant 3.200000e+01 : f32
    %359 = vector.broadcast %cst_211 : f32 to vector<34x1xf32>
    %360 = arith.divf %358, %359 : vector<34x1xf32>
    %361 = arith.mulf %355, %355 : vector<34x1xf32>
    %362 = arith.subf %360, %361 : vector<34x1xf32>
    %cst_212 = arith.constant 9.99999974E-6 : f32
    %363 = vector.broadcast %cst_212 : f32 to vector<34x1xf32>
    %364 = arith.addf %362, %363 : vector<34x1xf32>
    %365 = math.rsqrt %364 : vector<34x1xf32>
    %366 = vector.broadcast %355 : vector<34x1xf32> to vector<34x32xf32>
    %367 = arith.subf %351, %366 : vector<34x32xf32>
    %368 = vector.broadcast %365 : vector<34x1xf32> to vector<34x32xf32>
    %369 = arith.mulf %367, %368 : vector<34x32xf32>
    %370 = vector.broadcast %291 : vector<1x32xf32> to vector<34x32xf32>
    %371 = arith.mulf %369, %370 : vector<34x32xf32>
    %372 = vector.broadcast %293 : vector<1x32xf32> to vector<34x32xf32>
    %373 = arith.addf %371, %372 : vector<34x32xf32>
    %cst_213 = arith.constant dense<0.000000e+00> : vector<34x64xf32>
    %374 = tpu.matmul %373, %295, %cst_213 {dimension_numbers = #tpu.dot_dimension_numbers<[1], [0], [0], [1], [0, 0, 1, 1], [], []>} : vector<34x32xf32>, vector<32x64xf32>, vector<34x64xf32> -> vector<34x64xf32>
    %375 = vector.broadcast %297 : vector<1x64xf32> to vector<34x64xf32>
    %376 = arith.addf %374, %375 : vector<34x64xf32>
    %377 = arith.mulf %376, %376 : vector<34x64xf32>
    %378 = arith.mulf %376, %377 : vector<34x64xf32>
    %cst_214 = arith.constant 4.471500e-02 : f32
    %379 = vector.broadcast %cst_214 : f32 to vector<34x64xf32>
    %380 = arith.mulf %379, %378 : vector<34x64xf32>
    %381 = arith.addf %376, %380 : vector<34x64xf32>
    %cst_215 = arith.constant 0.797884583 : f32
    %382 = vector.broadcast %cst_215 : f32 to vector<34x64xf32>
    %383 = arith.mulf %382, %381 : vector<34x64xf32>
    %384 = math.tanh %383 : vector<34x64xf32>
    %cst_216 = arith.constant 1.000000e+00 : f32
    %385 = vector.broadcast %cst_216 : f32 to vector<34x64xf32>
    %386 = arith.addf %385, %384 : vector<34x64xf32>
    %cst_217 = arith.constant 5.000000e-01 : f32
    %387 = vector.broadcast %cst_217 : f32 to vector<34x64xf32>
    %388 = arith.mulf %387, %386 : vector<34x64xf32>
    %389 = arith.mulf %376, %388 : vector<34x64xf32>
    %cst_218 = arith.constant dense<0.000000e+00> : vector<34x32xf32>
    %390 = tpu.matmul %389, %299, %cst_218 {dimension_numbers = #tpu.dot_dimension_numbers<[1], [0], [0], [1], [0, 0, 1, 1], [], []>} : vector<34x64xf32>, vector<64x32xf32>, vector<34x32xf32> -> vector<34x32xf32>
    %391 = vector.broadcast %301 : vector<1x32xf32> to vector<34x32xf32>
    %392 = arith.addf %390, %391 : vector<34x32xf32>
    %393 = arith.addf %351, %392 : vector<34x32xf32>
    %c0_219 = arith.constant 0 : index
    %c0_220 = arith.constant 0 : index
    %394 = vector.load %arg41[%c0_219, %c0_220] : memref<1x32xf32, #tpu.memory_space<vmem>>, vector<1x32xf32>
    %c0_221 = arith.constant 0 : index
    %c0_222 = arith.constant 0 : index
    %395 = vector.load %arg42[%c0_221, %c0_222] : memref<1x32xf32, #tpu.memory_space<vmem>>, vector<1x32xf32>
    %cst_223 = arith.constant dense<0.000000e+00> : vector<34xf32>
    %396 = vector.multi_reduction <add>, %393, %cst_223 [1] : vector<34x32xf32> to vector<34xf32>
    %397 = vector.shape_cast %396 : vector<34xf32> to vector<34x1xf32>
    %cst_224 = arith.constant 3.200000e+01 : f32
    %398 = vector.broadcast %cst_224 : f32 to vector<34x1xf32>
    %399 = arith.divf %397, %398 : vector<34x1xf32>
    %400 = arith.mulf %393, %393 : vector<34x32xf32>
    %cst_225 = arith.constant dense<0.000000e+00> : vector<34xf32>
    %401 = vector.multi_reduction <add>, %400, %cst_225 [1] : vector<34x32xf32> to vector<34xf32>
    %402 = vector.shape_cast %401 : vector<34xf32> to vector<34x1xf32>
    %cst_226 = arith.constant 3.200000e+01 : f32
    %403 = vector.broadcast %cst_226 : f32 to vector<34x1xf32>
    %404 = arith.divf %402, %403 : vector<34x1xf32>
    %405 = arith.mulf %399, %399 : vector<34x1xf32>
    %406 = arith.subf %404, %405 : vector<34x1xf32>
    %cst_227 = arith.constant 9.99999974E-6 : f32
    %407 = vector.broadcast %cst_227 : f32 to vector<34x1xf32>
    %408 = arith.addf %406, %407 : vector<34x1xf32>
    %409 = math.rsqrt %408 : vector<34x1xf32>
    %410 = vector.broadcast %399 : vector<34x1xf32> to vector<34x32xf32>
    %411 = arith.subf %393, %410 : vector<34x32xf32>
    %412 = vector.broadcast %409 : vector<34x1xf32> to vector<34x32xf32>
    %413 = arith.mulf %411, %412 : vector<34x32xf32>
    %414 = vector.broadcast %394 : vector<1x32xf32> to vector<34x32xf32>
    %415 = arith.mulf %413, %414 : vector<34x32xf32>
    %416 = vector.broadcast %395 : vector<1x32xf32> to vector<34x32xf32>
    %417 = arith.addf %415, %416 : vector<34x32xf32>
    %c0_228 = arith.constant 0 : index
    %c0_229 = arith.constant 0 : index
    %418 = vector.load %arg43[%c0_228, %c0_229] : memref<32x128xf32, #tpu.memory_space<vmem>>, vector<32x128xf32>
    %cst_230 = arith.constant dense<0.000000e+00> : vector<34x128xf32>
    %419 = tpu.matmul %417, %418, %cst_230 {dimension_numbers = #tpu.dot_dimension_numbers<[1], [0], [0], [1], [0, 0, 1, 1], [], []>} : vector<34x32xf32>, vector<32x128xf32>, vector<34x128xf32> -> vector<34x128xf32>
    %c0_231 = arith.constant 0 : index
    %c0_232 = arith.constant 0 : index
    %420 = vector.load %arg44[%c0_231, %c0_232] : memref<1x128xf32, #tpu.memory_space<vmem>>, vector<1x128xf32>
    %421 = vector.broadcast %420 : vector<1x128xf32> to vector<34x128xf32>
    %422 = arith.addf %419, %421 : vector<34x128xf32>
    %c0_233 = arith.constant 0 : index
    %c0_234 = arith.constant 0 : index
    %423 = vector.load %arg47[%c0_233, %c0_234] : memref<34x128xf32, #tpu.memory_space<vmem>>, vector<34x128xf32>
    tpu.vector_store %arg47[%c0_233, %c0_234], %422 {strides = array<i32>} : memref<34x128xf32, #tpu.memory_space<vmem>>, vector<34x128xf32>,
    %c0_235 = arith.constant 0 : index
    %c0_236 = arith.constant 0 : index
    %424 = vector.load %arg45[%c0_235, %c0_236] : memref<34x128xf32, #tpu.memory_space<vmem>>, vector<34x128xf32>
    %425 = arith.subf %424, %422 : vector<34x128xf32>
    %426 = arith.mulf %425, %425 : vector<34x128xf32>
    %c0_237 = arith.constant 0 : index
    %c0_238 = arith.constant 0 : index
    %427 = vector.load %arg46[%c0_237, %c0_238] : memref<34x128xf32, #tpu.memory_space<vmem>>, vector<34x128xf32>
    %428 = arith.mulf %426, %427 : vector<34x128xf32>
    %429 = vector.shape_cast %428 : vector<34x128xf32> to vector<1x34x128xf32>
    %cst_239 = arith.constant dense<0.000000e+00> : vector<1xf32>
    %430 = vector.multi_reduction <add>, %429, %cst_239 [1, 2] : vector<1x34x128xf32> to vector<1xf32>
    %431 = vector.shape_cast %430 : vector<1xf32> to vector<1x1x1xf32>
    %432 = vector.extract %431[0, 0, 0] : f32 from vector<1x1x1xf32>
    %433 = vector.broadcast %432 : f32 to vector<1x1xf32>
    %c0_240 = arith.constant 0 : index
    %c0_241 = arith.constant 0 : index
    %434 = vector.load %arg48[%c0_240, %c0_241] : memref<1x1xf32, #tpu.memory_space<vmem>>, vector<1x1xf32>
    tpu.vector_store %arg48[%c0_240, %c0_241], %433 {strides = array<i32>} : memref<1x1xf32, #tpu.memory_space<vmem>>, vector<1x1xf32>,
    return
  }
}

</mosaic_0001>

<llo_original>
// kernel: mae_forward.1
$region0: #{mae_forward.1}
  #allocation0 [shape = 'u32[]', space=smem, size = 0x4, offset = 0x4, fixed_abs, tag = 'smem constant byte address 0x4 - core index']
  #allocation1 [shape = 'u32[144,128]{1,0:T(1,128)}', space=vmem, size = 0x12000, scoped, tag = 'internal scratch']
  %s0 = inlined_call_operand.smem [shape: u32[49], index: -1, kind: input, shape index: {}]
  %s1 = sld [smem:[%s0]]
  %s2 = scalar_lea.smem %s0, 1
  %s3 = sld [smem:[%s2]]
  %s4 = scalar_lea.smem %s0, 2
  %s5 = sld [smem:[%s4]]
  %s6 = scalar_lea.smem %s0, 3
  %s7 = sld [smem:[%s6]]
  %s8 = scalar_lea.smem %s0, 4
  %s9 = sld [smem:[%s8]]
  %s10 = scalar_lea.smem %s0, 5
  %s11 = sld [smem:[%s10]]
  %s12 = scalar_lea.smem %s0, 6
  %s13 = sld [smem:[%s12]]
  %s14 = scalar_lea.smem %s0, 7
  %s15 = sld [smem:[%s14]]
  %s16 = scalar_lea.smem %s0, 8
  %s17 = sld [smem:[%s16]]
  %s18 = scalar_lea.smem %s0, 9
  %s19 = sld [smem:[%s18]]
  %s20 = scalar_lea.smem %s0, 10
  %s21 = sld [smem:[%s20]]
  %s22 = scalar_lea.smem %s0, 11
  %s23 = sld [smem:[%s22]]
  %s24 = scalar_lea.smem %s0, 12
  %s25 = sld [smem:[%s24]]
  %s26 = scalar_lea.smem %s0, 13
  %s27 = sld [smem:[%s26]]
  %s28 = scalar_lea.smem %s0, 14
  %s29 = sld [smem:[%s28]]
  %s30 = scalar_lea.smem %s0, 15
  %s31 = sld [smem:[%s30]]
  %s32 = scalar_lea.smem %s0, 16
  %s33 = sld [smem:[%s32]]
  %s34 = scalar_lea.smem %s0, 17
  %s35 = sld [smem:[%s34]]
  %s36 = scalar_lea.smem %s0, 18
  %s37 = sld [smem:[%s36]]
  %s38 = scalar_lea.smem %s0, 19
  %s39 = sld [smem:[%s38]]
  %s40 = scalar_lea.smem %s0, 20
  %s41 = sld [smem:[%s40]]
  %s42 = scalar_lea.smem %s0, 21
  %s43 = sld [smem:[%s42]]
  %s44 = scalar_lea.smem %s0, 22
  %s45 = sld [smem:[%s44]]
  %s46 = scalar_lea.smem %s0, 23
  %s47 = sld [smem:[%s46]]
  %s48 = scalar_lea.smem %s0, 24
  %s49 = sld [smem:[%s48]]
  %s50 = scalar_lea.smem %s0, 25
  %s51 = sld [smem:[%s50]]
  %s52 = scalar_lea.smem %s0, 26
  %s53 = sld [smem:[%s52]]
  %s54 = scalar_lea.smem %s0, 27
  %s55 = sld [smem:[%s54]]
  %s56 = scalar_lea.smem %s0, 28
  %s57 = sld [smem:[%s56]]
  %s58 = scalar_lea.smem %s0, 29
  %s59 = sld [smem:[%s58]]
  %s60 = scalar_lea.smem %s0, 30
  %s61 = sld [smem:[%s60]]
  %s62 = scalar_lea.smem %s0, 31
  %s63 = sld [smem:[%s62]]
  %s64 = scalar_lea.smem %s0, 32
  %s65 = sld [smem:[%s64]]
  %s66 = scalar_lea.smem %s0, 33
  %s67 = sld [smem:[%s66]]
  %s68 = scalar_lea.smem %s0, 34
  %s69 = sld [smem:[%s68]]
  %s70 = scalar_lea.smem %s0, 35
  %s71 = sld [smem:[%s70]]
  %s72 = scalar_lea.smem %s0, 36
  %s73 = sld [smem:[%s72]]
  %s74 = scalar_lea.smem %s0, 37
  %s75 = sld [smem:[%s74]]
  %s76 = scalar_lea.smem %s0, 38
  %s77 = sld [smem:[%s76]]
  %s78 = scalar_lea.smem %s0, 39
  %s79 = sld [smem:[%s78]]
  %s80 = scalar_lea.smem %s0, 40
  %s81 = sld [smem:[%s80]]
  %s82 = scalar_lea.smem %s0, 41
  %s83 = sld [smem:[%s82]]
  %s84 = scalar_lea.smem %s0, 42
  %s85 = sld [smem:[%s84]]
  %s86 = scalar_lea.smem %s0, 43
  %s87 = sld [smem:[%s86]]
  %s88 = scalar_lea.smem %s0, 44
  %s89 = sld [smem:[%s88]]
  %s90 = scalar_lea.smem %s0, 45
  %s91 = sld [smem:[%s90]]
  %s92 = scalar_lea.smem %s0, 46
  %s93 = sld [smem:[%s92]]
  %s94 = scalar_lea.smem %s0, 47
  %s95 = sld [smem:[%s94]]
  %s96 = scalar_lea.smem %s0, 48
  %s97 = sld [smem:[%s96]]
  %98 = xla_tuple %s95, %s97
  %s99 = sld [smem:[#allocation0]]
  $region206: #{mae_forward.1} parent=0
    _
  %s101 = ssub.s32 1, %s99
  %s102 = scalar_select 0, %s101, %s99
  $region1: #{mae_forward.1} parent=0
    #allocation2 [shape = 'u8[512]{0}', space=vmem, size = 0x400, scoped, tag = 'output window, operand 1, single buffered']
    #allocation3 [shape = 's32[1]{0}', space=sflag, size = 0x4, scoped, tag = 'scoped memory for mae_forward.1']
    %103 = vsyncpa [#allocation3], 0
    // Predicated region
    $region2: #{mae_forward.1} parent=1 // pred_check
      _
    $region3: #{mae_forward.1} parent=1 // pred_check_branch
      %105 = sbr.rel (0) target = $region5
    $region4: #{mae_forward.1} parent=1 // pred_region
      _
    $region5: #{mae_forward.1} parent=1 // pred_fallthru
      _
    // Predicated region
    $region6: #{mae_forward.1} parent=1 // pred_check
      _
    $region7: #{mae_forward.1} parent=1 // pred_check_branch
      %107 = sbr.rel (0) target = $region9
    $region8: #{mae_forward.1} parent=1 // pred_region
      _
    $region9: #{mae_forward.1} parent=1 // pred_fallthru
      _
    // Predicated region
    $region10: #{mae_forward.1} parent=1 // pred_check
      _
    $region11: #{mae_forward.1} parent=1 // pred_check_branch
      %109 = sbr.rel (0) target = $region13
    $region12: #{mae_forward.1} parent=1 // pred_region
      _
    $region13: #{mae_forward.1} parent=1 // pred_fallthru
      _
    // Predicated region
    $region14: #{mae_forward.1} parent=1 // pred_check
      _
    $region15: #{mae_forward.1} parent=1 // pred_check_branch
      %111 = sbr.rel (0) target = $region17
    $region16: #{mae_forward.1} parent=1 // pred_region
      _
    $region17: #{mae_forward.1} parent=1 // pred_fallthru
      _
    // Predicated region
    $region18: #{mae_forward.1} parent=1 // pred_check
      _
    $region19: #{mae_forward.1} parent=1 // pred_check_branch
      %113 = sbr.rel (0) target = $region21
    $region20: #{mae_forward.1} parent=1 // pred_region
      _
    $region21: #{mae_forward.1} parent=1 // pred_fallthru
      _
    // Predicated region
    $region22: #{mae_forward.1} parent=1 // pred_check
      _
    $region23: #{mae_forward.1} parent=1 // pred_check_branch
      %115 = sbr.rel (0) target = $region25
    $region24: #{mae_forward.1} parent=1 // pred_region
      _
    $region25: #{mae_forward.1} parent=1 // pred_fallthru
      _
    // Predicated region
    $region26: #{mae_forward.1} parent=1 // pred_check
      _
    $region27: #{mae_forward.1} parent=1 // pred_check_branch
      %117 = sbr.rel (0) target = $region29
    $region28: #{mae_forward.1} parent=1 // pred_region
      _
    $region29: #{mae_forward.1} parent=1 // pred_fallthru
      _
    // Predicated region
    $region30: #{mae_forward.1} parent=1 // pred_check
      _
    $region31: #{mae_forward.1} parent=1 // pred_check_branch
      %119 = sbr.rel (0) target = $region33
    $region32: #{mae_forward.1} parent=1 // pred_region
      _
    $region33: #{mae_forward.1} parent=1 // pred_fallthru
      _
    // Predicated region
    $region34: #{mae_forward.1} parent=1 // pred_check
      _
    $region35: #{mae_forward.1} parent=1 // pred_check_branch
      %121 = sbr.rel (0) target = $region37
    $region36: #{mae_forward.1} parent=1 // pred_region
      _
    $region37: #{mae_forward.1} parent=1 // pred_fallthru
      _
    // Predicated region
    $region38: #{mae_forward.1} parent=1 // pred_check
      _
    $region39: #{mae_forward.1} parent=1 // pred_check_branch
      %123 = sbr.rel (0) target = $region41
    $region40: #{mae_forward.1} parent=1 // pred_region
      _
    $region41: #{mae_forward.1} parent=1 // pred_fallthru
      _
    // Predicated region
    $region42: #{mae_forward.1} parent=1 // pred_check
      _
    $region43: #{mae_forward.1} parent=1 // pred_check_branch
      %125 = sbr.rel (0) target = $region45
    $region44: #{mae_forward.1} parent=1 // pred_region
      _
    $region45: #{mae_forward.1} parent=1 // pred_fallthru
      _
    // Predicated region
    $region46: #{mae_forward.1} parent=1 // pred_check
      _
    $region47: #{mae_forward.1} parent=1 // pred_check_branch
      %127 = sbr.rel (0) target = $region49
    $region48: #{mae_forward.1} parent=1 // pred_region
      _
    $region49: #{mae_forward.1} parent=1 // pred_fallthru
      _
    // Predicated region
    $region50: #{mae_forward.1} parent=1 // pred_check
      _
    $region51: #{mae_forward.1} parent=1 // pred_check_branch
      %129 = sbr.rel (0) target = $region53
    $region52: #{mae_forward.1} parent=1 // pred_region
      _
    $region53: #{mae_forward.1} parent=1 // pred_fallthru
      _
    // Predicated region
    $region54: #{mae_forward.1} parent=1 // pred_check
      _
    $region55: #{mae_forward.1} parent=1 // pred_check_branch
      %131 = sbr.rel (0) target = $region57
    $region56: #{mae_forward.1} parent=1 // pred_region
      _
    $region57: #{mae_forward.1} parent=1 // pred_fallthru
      _
    // Predicated region
    $region58: #{mae_forward.1} parent=1 // pred_check
      _
    $region59: #{mae_forward.1} parent=1 // pred_check_branch
      %133 = sbr.rel (0) target = $region61
    $region60: #{mae_forward.1} parent=1 // pred_region
      _
    $region61: #{mae_forward.1} parent=1 // pred_fallthru
      _
    // Predicated region
    $region62: #{mae_forward.1} parent=1 // pred_check
      _
    $region63: #{mae_forward.1} parent=1 // pred_check_branch
      %135 = sbr.rel (0) target = $region65
    $region64: #{mae_forward.1} parent=1 // pred_region
      _
    $region65: #{mae_forward.1} parent=1 // pred_fallthru
      _
    // Predicated region
    $region66: #{mae_forward.1} parent=1 // pred_check
      _
    $region67: #{mae_forward.1} parent=1 // pred_check_branch
      %137 = sbr.rel (0) target = $region69
    $region68: #{mae_forward.1} parent=1 // pred_region
      _
    $region69: #{mae_forward.1} parent=1 // pred_fallthru
      _
    // Predicated region
    $region70: #{mae_forward.1} parent=1 // pred_check
      _
    $region71: #{mae_forward.1} parent=1 // pred_check_branch
      %139 = sbr.rel (0) target = $region73
    $region72: #{mae_forward.1} parent=1 // pred_region
      _
    $region73: #{mae_forward.1} parent=1 // pred_fallthru
      _
    // Predicated region
    $region74: #{mae_forward.1} parent=1 // pred_check
      _
    $region75: #{mae_forward.1} parent=1 // pred_check_branch
      %141 = sbr.rel (0) target = $region77
    $region76: #{mae_forward.1} parent=1 // pred_region
      _
    $region77: #{mae_forward.1} parent=1 // pred_fallthru
      _
    // Predicated region
    $region78: #{mae_forward.1} parent=1 // pred_check
      _
    $region79: #{mae_forward.1} parent=1 // pred_check_branch
      %143 = sbr.rel (0) target = $region81
    $region80: #{mae_forward.1} parent=1 // pred_region
      _
    $region81: #{mae_forward.1} parent=1 // pred_fallthru
      _
    // Predicated region
    $region82: #{mae_forward.1} parent=1 // pred_check
      _
    $region83: #{mae_forward.1} parent=1 // pred_check_branch
      %145 = sbr.rel (0) target = $region85
    $region84: #{mae_forward.1} parent=1 // pred_region
      _
    $region85: #{mae_forward.1} parent=1 // pred_fallthru
      _
    // Predicated region
    $region86: #{mae_forward.1} parent=1 // pred_check
      _
    $region87: #{mae_forward.1} parent=1 // pred_check_branch
      %147 = sbr.rel (0) target = $region89
    $region88: #{mae_forward.1} parent=1 // pred_region
      _
    $region89: #{mae_forward.1} parent=1 // pred_fallthru
      _
    // Predicated region
    $region90: #{mae_forward.1} parent=1 // pred_check
      _
    $region91: #{mae_forward.1} parent=1 // pred_check_branch
      %149 = sbr.rel (0) target = $region93
    $region92: #{mae_forward.1} parent=1 // pred_region
      _
    $region93: #{mae_forward.1} parent=1 // pred_fallthru
      _
    // Predicated region
    $region94: #{mae_forward.1} parent=1 // pred_check
      _
    $region95: #{mae_forward.1} parent=1 // pred_check_branch
      %151 = sbr.rel (0) target = $region97
    $region96: #{mae_forward.1} parent=1 // pred_region
      _
    $region97: #{mae_forward.1} parent=1 // pred_fallthru
      _
    // Predicated region
    $region98: #{mae_forward.1} parent=1 // pred_check
      _
    $region99: #{mae_forward.1} parent=1 // pred_check_branch
      %153 = sbr.rel (0) target = $region101
    $region100: #{mae_forward.1} parent=1 // pred_region
      _
    $region101: #{mae_forward.1} parent=1 // pred_fallthru
      _
    // Predicated region
    $region102: #{mae_forward.1} parent=1 // pred_check
      _
    $region103: #{mae_forward.1} parent=1 // pred_check_branch
      %155 = sbr.rel (0) target = $region105
    $region104: #{mae_forward.1} parent=1 // pred_region
      _
    $region105: #{mae_forward.1} parent=1 // pred_fallthru
      _
    // Predicated region
    $region106: #{mae_forward.1} parent=1 // pred_check
      _
    $region107: #{mae_forward.1} parent=1 // pred_check_branch
      %157 = sbr.rel (0) target = $region109
    $region108: #{mae_forward.1} parent=1 // pred_region
      _
    $region109: #{mae_forward.1} parent=1 // pred_fallthru
      _
    // Predicated region
    $region110: #{mae_forward.1} parent=1 // pred_check
      _
    $region111: #{mae_forward.1} parent=1 // pred_check_branch
      %159 = sbr.rel (0) target = $region113
    $region112: #{mae_forward.1} parent=1 // pred_region
      _
    $region113: #{mae_forward.1} parent=1 // pred_fallthru
      _
    // Predicated region
    $region114: #{mae_forward.1} parent=1 // pred_check
      _
    $region115: #{mae_forward.1} parent=1 // pred_check_branch
      %161 = sbr.rel (0) target = $region117
    $region116: #{mae_forward.1} parent=1 // pred_region
      _
    $region117: #{mae_forward.1} parent=1 // pred_fallthru
      _
    // Predicated region
    $region118: #{mae_forward.1} parent=1 // pred_check
      _
    $region119: #{mae_forward.1} parent=1 // pred_check_branch
      %163 = sbr.rel (0) target = $region121
    $region120: #{mae_forward.1} parent=1 // pred_region
      _
    $region121: #{mae_forward.1} parent=1 // pred_fallthru
      _
    // Predicated region
    $region122: #{mae_forward.1} parent=1 // pred_check
      _
    $region123: #{mae_forward.1} parent=1 // pred_check_branch
      %165 = sbr.rel (0) target = $region125
    $region124: #{mae_forward.1} parent=1 // pred_region
      _
    $region125: #{mae_forward.1} parent=1 // pred_fallthru
      _
    // Predicated region
    $region126: #{mae_forward.1} parent=1 // pred_check
      _
    $region127: #{mae_forward.1} parent=1 // pred_check_branch
      %167 = sbr.rel (0) target = $region129
    $region128: #{mae_forward.1} parent=1 // pred_region
      _
    $region129: #{mae_forward.1} parent=1 // pred_fallthru
      _
    // Predicated region
    $region130: #{mae_forward.1} parent=1 // pred_check
      _
    $region131: #{mae_forward.1} parent=1 // pred_check_branch
      %169 = sbr.rel (0) target = $region133
    $region132: #{mae_forward.1} parent=1 // pred_region
      _
    $region133: #{mae_forward.1} parent=1 // pred_fallthru
      _
    // Predicated region
    $region134: #{mae_forward.1} parent=1 // pred_check
      _
    $region135: #{mae_forward.1} parent=1 // pred_check_branch
      %171 = sbr.rel (0) target = $region137
    $region136: #{mae_forward.1} parent=1 // pred_region
      _
    $region137: #{mae_forward.1} parent=1 // pred_fallthru
      _
    // Predicated region
    $region138: #{mae_forward.1} parent=1 // pred_check
      _
    $region139: #{mae_forward.1} parent=1 // pred_check_branch
      %173 = sbr.rel (0) target = $region141
    $region140: #{mae_forward.1} parent=1 // pred_region
      _
    $region141: #{mae_forward.1} parent=1 // pred_fallthru
      _
    // Predicated region
    $region142: #{mae_forward.1} parent=1 // pred_check
      _
    $region143: #{mae_forward.1} parent=1 // pred_check_branch
      %175 = sbr.rel (0) target = $region145
    $region144: #{mae_forward.1} parent=1 // pred_region
      _
    $region145: #{mae_forward.1} parent=1 // pred_fallthru
      _
    // Predicated region
    $region146: #{mae_forward.1} parent=1 // pred_check
      _
    $region147: #{mae_forward.1} parent=1 // pred_check_branch
      %177 = sbr.rel (0) target = $region149
    $region148: #{mae_forward.1} parent=1 // pred_region
      _
    $region149: #{mae_forward.1} parent=1 // pred_fallthru
      _
    // Predicated region
    $region150: #{mae_forward.1} parent=1 // pred_check
      _
    $region151: #{mae_forward.1} parent=1 // pred_check_branch
      %179 = sbr.rel (0) target = $region153
    $region152: #{mae_forward.1} parent=1 // pred_region
      _
    $region153: #{mae_forward.1} parent=1 // pred_fallthru
      _
    // Predicated region
    $region154: #{mae_forward.1} parent=1 // pred_check
      _
    $region155: #{mae_forward.1} parent=1 // pred_check_branch
      %181 = sbr.rel (0) target = $region157
    $region156: #{mae_forward.1} parent=1 // pred_region
      _
    $region157: #{mae_forward.1} parent=1 // pred_fallthru
      _
    // Predicated region
    $region158: #{mae_forward.1} parent=1 // pred_check
      _
    $region159: #{mae_forward.1} parent=1 // pred_check_branch
      %183 = sbr.rel (0) target = $region161
    $region160: #{mae_forward.1} parent=1 // pred_region
      _
    $region161: #{mae_forward.1} parent=1 // pred_fallthru
      _
    // Predicated region
    $region162: #{mae_forward.1} parent=1 // pred_check
      _
    $region163: #{mae_forward.1} parent=1 // pred_check_branch
      %185 = sbr.rel (0) target = $region165
    $region164: #{mae_forward.1} parent=1 // pred_region
      _
    $region165: #{mae_forward.1} parent=1 // pred_fallthru
      _
    // Predicated region
    $region166: #{mae_forward.1} parent=1 // pred_check
      _
    $region167: #{mae_forward.1} parent=1 // pred_check_branch
      %187 = sbr.rel (0) target = $region169
    $region168: #{mae_forward.1} parent=1 // pred_region
      _
    $region169: #{mae_forward.1} parent=1 // pred_fallthru
      _
    // Predicated region
    $region170: #{mae_forward.1} parent=1 // pred_check
      _
    $region171: #{mae_forward.1} parent=1 // pred_check_branch
      %189 = sbr.rel (0) target = $region173
    $region172: #{mae_forward.1} parent=1 // pred_region
      _
    $region173: #{mae_forward.1} parent=1 // pred_fallthru
      _
    // Predicated region
    $region174: #{mae_forward.1} parent=1 // pred_check
      _
    $region175: #{mae_forward.1} parent=1 // pred_check_branch
      %191 = sbr.rel (0) target = $region177
    $region176: #{mae_forward.1} parent=1 // pred_region
      _
    $region177: #{mae_forward.1} parent=1 // pred_fallthru
      _
    // Predicated region
    $region178: #{mae_forward.1} parent=1 // pred_check
      _
    $region179: #{mae_forward.1} parent=1 // pred_check_branch
      %193 = sbr.rel (0) target = $region181
    $region180: #{mae_forward.1} parent=1 // pred_region
      _
    $region181: #{mae_forward.1} parent=1 // pred_fallthru
      _
    // Predicated region
    $region182: #{mae_forward.1} parent=1 // pred_check
      _
    $region183: #{mae_forward.1} parent=1 // pred_check_branch
      %195 = sbr.rel (0) target = $region185
    $region184: #{mae_forward.1} parent=1 // pred_region
      _
    $region185: #{mae_forward.1} parent=1 // pred_fallthru
      _
    // Predicated region
    $region186: #{mae_forward.1} parent=1 // pred_check
      _
    $region187: #{mae_forward.1} parent=1 // pred_check_branch
      %197 = sbr.rel (0) target = $region189
    $region188: #{mae_forward.1} parent=1 // pred_region
      _
    $region189: #{mae_forward.1} parent=1 // pred_fallthru
      _
    %v198 = vld [vmem:[%s31] sm:$0xff]
    %v199 = vld [vmem:[%s31 + $0x8] sm:$0xff]
    %v200 = vld [vmem:[%s31 + $0x10] sm:$0xff]
    %v201 = vld [vmem:[%s31 + $0x18] sm:$0xff]
    %v202 = vld [vmem:[%s31 + $0x20] sm:$0xff]
    %v203 = vld [vmem:[%s31 + $0x28] sm:$0xff]
    %v204 = vld [vmem:[%s31 + $0x30] sm:$0xff]
    %v205 = vld [vmem:[%s31 + $0x38] sm:$0xff]
    %v206 = vld [vmem:[%s31 + $0x40] sm:$0xff]
    %v207 = vld [vmem:[%s33] sm:$0xff]
    %v208 = vld [vmem:[%s33 + $0x8] sm:$0xff]
    %v209 = vld [vmem:[%s33 + $0x10] sm:$0x3]
    %v210 = vld [vmem:[%s35] sm:$0xff]
    %v211 = vld [vmem:[%s35 + $0x8] sm:$0xff]
    %v212 = vld [vmem:[%s35 + $0x10] sm:$0xff]
    %v213 = vld [vmem:[%s35 + $0x18] sm:$0xff]
    %v214 = vld [vmem:[%s35 + $0x20] sm:$0xff]
    %v215 = vld [vmem:[%s35 + $0x28] sm:$0xff]
    %v216 = vld [vmem:[%s35 + $0x30] sm:$0xff]
    %v217 = vld [vmem:[%s35 + $0x38] sm:$0xff]
    %v218 = vld [vmem:[%s35 + $0x40] sm:$0xff]
    %v219 = vld [vmem:[%s37] sm:$0xff]
    %v220 = vld [vmem:[%s37 + $0x8] sm:$0xff]
    %v221 = vld [vmem:[%s37 + $0x10] sm:$0xff]
    %v222 = vld [vmem:[%s37 + $0x18] sm:$0xff]
    %v223 = vld [vmem:[%s37 + $0x20] sm:$0xff]
    %v224 = vld [vmem:[%s37 + $0x28] sm:$0xff]
    %v225 = vld [vmem:[%s37 + $0x30] sm:$0xff]
    %v226 = vld [vmem:[%s37 + $0x38] sm:$0xff]
    %v227 = vld [vmem:[%s37 + $0x40] sm:$0xff]
    %v228 = vld [vmem:[%s1] sm:$0xff]
    %v229 = vld [vmem:[%s1 + $0x8] sm:$0xff]
    %v230 = vld [vmem:[%s1 + $0x10] sm:$0x3]
    %v231 = vld [vmem:[%s5] sm:$0xff]
    %v232 = vld [vmem:[%s5 + $0x8] sm:$0xff]
    %v233 = vld [vmem:[%s5 + $0x10] sm:$0xff]
    %v234 = vld [vmem:[%s5 + $0x18] sm:$0xff]
    %v235 = vld [vmem:[%s5 + $0x20] sm:$0xff]
    %v236 = vld [vmem:[%s5 + $0x28] sm:$0xff]
    %v237 = vld [vmem:[%s3] sm:$0xff]
    %v238 = vld [vmem:[%s3 + $0x8] sm:$0xff]
    %v239 = vld [vmem:[%s3 + $0x10] sm:$0x3]
    %vm240 = vcmask 392192
    %v242 = vsel %vm240, %v228, 0
    %v245 = vsel %vm240, %v229, 0
    %v248 = vsel %vm240, %v230, 0
    %250 = vmatprep.subr.mxu0 0.0
    %251 = vmatpush1.msra.mxu0 %v231
    %252 = vmatprep.subr.mxu0 0.0
    %253 = vmatpush1.msra.mxu0 %v232
    %254 = vmatprep.subr.mxu0 0.0
    %255 = vmatpush1.msra.mxu0 %v233
    %256 = vmatprep.subr.mxu0 0.0
    %257 = vmatpush1.msra.mxu0 %v234
    %258 = vmatprep.subr.mxu0 0.0
    %259 = vmatpush1.msra.mxu0 %v235
    %260 = vmatprep.subr.mxu0 0.0
    %261 = vmatpush1.msra.mxu0 %v236
    %262 = vmatprep.subr.mxu0 0.0
    %263 = vmatpush1.msra.mxu0 0.0
    %264 = vmatprep.subr.mxu0 0.0
    %265 = vmatpush1.msra.mxu0 0.0
    %266 = vmatprep.subr.mxu0 0.0
    %267 = vmatpush1.msra.mxu0 0.0
    %268 = vmatprep.subr.mxu0 0.0
    %269 = vmatpush1.msra.mxu0 0.0
    %270 = vmatprep.subr.mxu0 0.0
    %271 = vmatpush1.msra.mxu0 0.0
    %272 = vmatprep.subr.mxu0 0.0
    %273 = vmatpush1.msra.mxu0 0.0
    %274 = vmatprep.subr.mxu0 0.0
    %275 = vmatpush1.msra.mxu0 0.0
    %276 = vmatprep.subr.mxu0 0.0
    %277 = vmatpush1.msra.mxu0 0.0
    %278 = vmatprep.subr.mxu0 0.0
    %279 = vmatpush1.msra.mxu0 0.0
    %280 = vmatprep.subr.mxu0 0.0
    %281 = vmatpush1.msra.mxu0 0.0
    %282 = vmatprep.subr.mxu0 0.0
    %283 = vmatpush1.msra.mxu0 0.0
    %284 = vmatprep.subr.mxu0 0.0
    %285 = vmatpush1.msra.mxu0 0.0
    %286 = vmatprep.subr.mxu0 0.0
    %287 = vmatpush1.msra.mxu0 0.0
    %288 = vmatprep.subr.mxu0 0.0
    %289 = vmatpush1.msra.mxu0 0.0
    %290 = vmatprep.subr.mxu0 0.0
    %291 = vmatpush1.msra.mxu0 0.0
    %292 = vmatprep.subr.mxu0 0.0
    %293 = vmatpush1.msra.mxu0 0.0
    %294 = vmatprep.subr.mxu0 0.0
    %295 = vmatpush1.msra.mxu0 0.0
    %296 = vmatprep.subr.mxu0 0.0
    %297 = vmatpush1.msra.mxu0 0.0
    %298 = vmatprep.subr.mxu0 0.0
    %299 = vmatpush1.msra.mxu0 0.0
    %300 = vmatprep.subr.mxu0 0.0
    %301 = vmatpush1.msra.mxu0 0.0
    %302 = vmatprep.subr.mxu0 0.0
    %303 = vmatpush1.msra.mxu0 0.0
    %304 = vmatprep.subr.mxu0 0.0
    %305 = vmatpush1.msra.mxu0 0.0
    %306 = vmatprep.subr.mxu0 0.0
    %307 = vmatpush1.msra.mxu0 0.0
    %308 = vmatprep.subr.mxu0 0.0
    %309 = vmatpush1.msra.mxu0 0.0
    %310 = vmatprep.subr.mxu0 0.0
    %311 = vmatpush1.msra.mxu0 0.0
    %312 = vmatprep.subr.mxu0 0.0
    %313 = vmatpush1.msra.mxu0 0.0
    %314 = vmatprep.mubr.f32.mxu0 0.0
    %315 = vmatmul.mubr.f32.gmra.mrb[0].mxu0 %v242
    %v316 = vpop.f32.mrb[0].mxu0
    %v317 = vadd.f32 %v237, %v316
    %v318 = vpop.f32.mrb[0].mxu0
    %319 = vmatprep.mubr.f32.mxu0 0.0
    %320 = vmatmul.mubr.f32.gmra.mrb[0].mxu0 %v245
    %v321 = vpop.f32.mrb[0].mxu0
    %v322 = vadd.f32 %v238, %v321
    %v323 = vpop.f32.mrb[0].mxu0
    %324 = vmatprep.mubr.f32.mxu0 0.0
    %325 = vmatmul.mubr.f32.gmra.mrb[0].mxu0 %v248
    %v326 = vpop.f32.mrb[0].mxu0
    %v327 = vadd.f32 %v239, %v326
    %v328 = vpop.f32.mrb[0].mxu0
    %329 = vdwg.mxu0
    %v330 = vld [vmem:[%s7] sm:$0x1]
    %v331 = vld [vmem:[%s9] sm:$0x1]
    %v332 = vld [vmem:[%s11] sm:$0xff]
    %v333 = vld [vmem:[%s11 + $0x8] sm:$0xff]
    %v334 = vld [vmem:[%s11 + $0x10] sm:$0xff]
    %v335 = vld [vmem:[%s11 + $0x18] sm:$0xff]
    %v336 = vld [vmem:[%s13] sm:$0x1]
    %v337 = vld [vmem:[%s15] sm:$0xff]
    %v338 = vld [vmem:[%s15 + $0x8] sm:$0xff]
    %v339 = vld [vmem:[%s15 + $0x10] sm:$0xff]
    %v340 = vld [vmem:[%s15 + $0x18] sm:$0xff]
    %v341 = vld [vmem:[%s17] sm:$0x1]
    %v342 = vld [vmem:[%s19] sm:$0x1]
    %v343 = vld [vmem:[%s21] sm:$0x1]
    %v344 = vld [vmem:[%s23] sm:$0xff]
    %v345 = vld [vmem:[%s23 + $0x8] sm:$0xff]
    %v346 = vld [vmem:[%s23 + $0x10] sm:$0xff]
    %v347 = vld [vmem:[%s23 + $0x18] sm:$0xff]
    %v348 = vld [vmem:[%s25] sm:$0x1]
    %v349 = vld [vmem:[%s27] sm:$0xff]
    %v350 = vld [vmem:[%s27 + $0x8] sm:$0xff]
    %v351 = vld [vmem:[%s27 + $0x10] sm:$0xff]
    %v352 = vld [vmem:[%s27 + $0x18] sm:$0xff]
    %v353 = vld [vmem:[%s27 + $0x20] sm:$0xff]
    %v354 = vld [vmem:[%s27 + $0x28] sm:$0xff]
    %v355 = vld [vmem:[%s27 + $0x30] sm:$0xff]
    %v356 = vld [vmem:[%s27 + $0x38] sm:$0xff]
    %v357 = vld [vmem:[%s29] sm:$0x1]
    %vm358 = vcmask 261120
    %v359 = vsel %vm358, %v317, 0.0
    %360 = vadd.xlane.f32.xlu0 %v359
    %v361 = vpop.xlane.xlu0 %360
    %v362 = vsel %vm358, %v322, 0.0
    %363 = vadd.xlane.f32.xlu0 %v362
    %v364 = vpop.xlane.xlu0 %363
    %vm365 = vcmask 254976
    %v366 = vsel %vm365, %v327, 0.0
    %367 = vadd.xlane.f32.xlu0 %v366
    %v368 = vpop.xlane.xlu0 %367
    %v369 = vrcp.pop 32.0
    %v370 = vmul.f32 %v361, %v369
    %v371 = vmul.f32 %v364, %v369
    %v372 = vmul.f32 %v368, %v369
    %v373 = vmul.f32 %v317, %v317
    %v374 = vmul.f32 %v322, %v322
    %v375 = vmul.f32 %v327, %v327
    %v376 = vsel %vm358, %v373, 0.0
    %377 = vadd.xlane.f32.xlu0 %v376
    %v378 = vpop.xlane.xlu0 %377
    %v379 = vsel %vm358, %v374, 0.0
    %380 = vadd.xlane.f32.xlu0 %v379
    %v381 = vpop.xlane.xlu0 %380
    %v382 = vsel %vm365, %v375, 0.0
    %383 = vadd.xlane.f32.xlu0 %v382
    %v384 = vpop.xlane.xlu0 %383
    %v385 = vmul.f32 %v378, %v369
    %v386 = vmul.f32 %v381, %v369
    %v387 = vmul.f32 %v384, %v369
    %v388 = vmul.f32 %v370, %v370
    %v389 = vmul.f32 %v371, %v371
    %v390 = vmul.f32 %v372, %v372
    %v391 = vsub.f32 %v385, %v388
    %v392 = vsub.f32 %v386, %v389
    %v393 = vsub.f32 %v387, %v390
    %v394 = vadd.f32 %v391, 1e-05
    %v395 = vadd.f32 %v392, 1e-05
    %v396 = vadd.f32 %v393, 1e-05
    %v397 = vrsqrt.pop %v394
    %v398 = vrsqrt.pop %v395
    %v399 = vrsqrt.pop %v396
    %v400 = vsub.f32 %v317, %v370
    %v401 = vsub.f32 %v322, %v371
    %v402 = vsub.f32 %v327, %v372
    %v403 = vmul.f32 %v400, %v397
    %v404 = vmul.f32 %v401, %v398
    %v405 = vmul.f32 %v402, %v399
    %v407 = vlaneseq
    %v408 = vshrl.u32 %v407, 7
    %v409 = vsub.s32 0, %v408
    %v410 = vrot.slane %v330, %v409
    %v412 = vmul.f32 %v403, %v410
    %v413 = vmul.f32 %v404, %v410
    %v414 = vmul.f32 %v405, %v410
    %v416 = vlaneseq
    %v417 = vshrl.u32 %v416, 7
    %v418 = vsub.s32 0, %v417
    %v419 = vrot.slane %v331, %v418
    %v421 = vadd.f32 %v412, %v419
    %v422 = vadd.f32 %v413, %v419
    %v423 = vadd.f32 %v414, %v419
    %v425 = vlaneseq
    %v426 = vshrl.u32 %v425, 7
    %v427 = vsub.s32 0, %v426
    %v428 = vrot.slane %v336, %v427
    %v431 = vsel %vm358, %v421, 0
    %v434 = vsel %vm358, %v422, 0
    %v437 = vsel %vm358, %v423, 0
    %439 = vmatprep.subr.mxu0 0.0
    %440 = vmatpush1.msra.mxu0 %v332
    %441 = vmatprep.subr.mxu0 0.0
    %442 = vmatpush1.msra.mxu0 %v333
    %443 = vmatprep.subr.mxu0 0.0
    %444 = vmatpush1.msra.mxu0 %v334
    %445 = vmatprep.subr.mxu0 0.0
    %446 = vmatpush1.msra.mxu0 %v335
    %447 = vmatprep.subr.mxu0 0.0
    %448 = vmatpush1.msra.mxu0 0.0
    %449 = vmatprep.subr.mxu0 0.0
    %450 = vmatpush1.msra.mxu0 0.0
    %451 = vmatprep.subr.mxu0 0.0
    %452 = vmatpush1.msra.mxu0 0.0
    %453 = vmatprep.subr.mxu0 0.0
    %454 = vmatpush1.msra.mxu0 0.0
    %455 = vmatprep.subr.mxu0 0.0
    %456 = vmatpush1.msra.mxu0 0.0
    %457 = vmatprep.subr.mxu0 0.0
    %458 = vmatpush1.msra.mxu0 0.0
    %459 = vmatprep.subr.mxu0 0.0
    %460 = vmatpush1.msra.mxu0 0.0
    %461 = vmatprep.subr.mxu0 0.0
    %462 = vmatpush1.msra.mxu0 0.0
    %463 = vmatprep.subr.mxu0 0.0
    %464 = vmatpush1.msra.mxu0 0.0
    %465 = vmatprep.subr.mxu0 0.0
    %466 = vmatpush1.msra.mxu0 0.0
    %467 = vmatprep.subr.mxu0 0.0
    %468 = vmatpush1.msra.mxu0 0.0
    %469 = vmatprep.subr.mxu0 0.0
    %470 = vmatpush1.msra.mxu0 0.0
    %471 = vmatprep.subr.mxu0 0.0
    %472 = vmatpush1.msra.mxu0 0.0
    %473 = vmatprep.subr.mxu0 0.0
    %474 = vmatpush1.msra.mxu0 0.0
    %475 = vmatprep.subr.mxu0 0.0
    %476 = vmatpush1.msra.mxu0 0.0
    %477 = vmatprep.subr.mxu0 0.0
    %478 = vmatpush1.msra.mxu0 0.0
    %479 = vmatprep.subr.mxu0 0.0
    %480 = vmatpush1.msra.mxu0 0.0
    %481 = vmatprep.subr.mxu0 0.0
    %482 = vmatpush1.msra.mxu0 0.0
    %483 = vmatprep.subr.mxu0 0.0
    %484 = vmatpush1.msra.mxu0 0.0
    %485 = vmatprep.subr.mxu0 0.0
    %486 = vmatpush1.msra.mxu0 0.0
    %487 = vmatprep.subr.mxu0 0.0
    %488 = vmatpush1.msra.mxu0 0.0
    %489 = vmatprep.subr.mxu0 0.0
    %490 = vmatpush1.msra.mxu0 0.0
    %491 = vmatprep.subr.mxu0 0.0
    %492 = vmatpush1.msra.mxu0 0.0
    %493 = vmatprep.subr.mxu0 0.0
    %494 = vmatpush1.msra.mxu0 0.0
    %495 = vmatprep.subr.mxu0 0.0
    %496 = vmatpush1.msra.mxu0 0.0
    %497 = vmatprep.subr.mxu0 0.0
    %498 = vmatpush1.msra.mxu0 0.0
    %499 = vmatprep.subr.mxu0 0.0
    %500 = vmatpush1.msra.mxu0 0.0
    %501 = vmatprep.subr.mxu0 0.0
    %502 = vmatpush1.msra.mxu0 0.0
    %503 = vmatprep.mubr.f32.mxu0 0.0
    %504 = vmatmul.mubr.f32.gmra.mrb[0].mxu0 %v431
    %v505 = vpop.f32.mrb[0].mxu0
    %v506 = vadd.f32 %v428, %v505
    %v507 = vpop.f32.mrb[0].mxu0
    %508 = vmatprep.mubr.f32.mxu0 0.0
    %509 = vmatmul.mubr.f32.gmra.mrb[0].mxu0 %v434
    %v510 = vpop.f32.mrb[0].mxu0
    %v511 = vadd.f32 %v428, %v510
    %v512 = vpop.f32.mrb[0].mxu0
    %513 = vmatprep.mubr.f32.mxu0 0.0
    %514 = vmatmul.mubr.f32.gmra.mrb[0].mxu0 %v437
    %v515 = vpop.f32.mrb[0].mxu0
    %v516 = vadd.f32 %v428, %v515
    %v517 = vpop.f32.mrb[0].mxu0
    %518 = vdwg.mxu0
    %vm519 = vcmask 146432
    %v521 = vsel %vm519, %v198, 0
    %v524 = vsel %vm519, %v199, 0
    %v527 = vsel %vm519, %v200, 0
    %v530 = vsel %vm519, %v201, 0
    %v533 = vsel %vm519, %v202, 0
    %v536 = vsel %vm519, %v203, 0
    %v539 = vsel %vm519, %v204, 0
    %v542 = vsel %vm519, %v205, 0
    %v545 = vsel %vm519, %v206, 0
    %vm547 = vcmask 1041408
    %v549 = vsel %vm547, %v516, 0
    %551 = vmatprep.subr.mxu0 0.0
    %552 = vmatpush1.msra.mxu0 %v506
    %553 = vmatprep.subr.mxu0 0.0
    %554 = vmatpush1.msra.mxu0 %v511
    %555 = vmatprep.subr.mxu0 0.0
    %556 = vmatpush1.msra.mxu0 %v549
    %557 = vmatprep.subr.mxu0 0.0
    %558 = vmatpush1.msra.mxu0 0.0
    %559 = vmatprep.subr.mxu0 0.0
    %560 = vmatpush1.msra.mxu0 0.0
    %561 = vmatprep.subr.mxu0 0.0
    %562 = vmatpush1.msra.mxu0 0.0
    %563 = vmatprep.subr.mxu0 0.0
    %564 = vmatpush1.msra.mxu0 0.0
    %565 = vmatprep.subr.mxu0 0.0
    %566 = vmatpush1.msra.mxu0 0.0
    %567 = vmatprep.subr.mxu0 0.0
    %568 = vmatpush1.msra.mxu0 0.0
    %569 = vmatprep.subr.mxu0 0.0
    %570 = vmatpush1.msra.mxu0 0.0
    %571 = vmatprep.subr.mxu0 0.0
    %572 = vmatpush1.msra.mxu0 0.0
    %573 = vmatprep.subr.mxu0 0.0
    %574 = vmatpush1.msra.mxu0 0.0
    %575 = vmatprep.subr.mxu0 0.0
    %576 = vmatpush1.msra.mxu0 0.0
    %577 = vmatprep.subr.mxu0 0.0
    %578 = vmatpush1.msra.mxu0 0.0
    %579 = vmatprep.subr.mxu0 0.0
    %580 = vmatpush1.msra.mxu0 0.0
    %581 = vmatprep.subr.mxu0 0.0
    %582 = vmatpush1.msra.mxu0 0.0
    %583 = vmatprep.subr.mxu0 0.0
    %584 = vmatpush1.msra.mxu0 0.0
    %585 = vmatprep.subr.mxu0 0.0
    %586 = vmatpush1.msra.mxu0 0.0
    %587 = vmatprep.subr.mxu0 0.0
    %588 = vmatpush1.msra.mxu0 0.0
    %589 = vmatprep.subr.mxu0 0.0
    %590 = vmatpush1.msra.mxu0 0.0
    %591 = vmatprep.subr.mxu0 0.0
    %592 = vmatpush1.msra.mxu0 0.0
    %593 = vmatprep.subr.mxu0 0.0
    %594 = vmatpush1.msra.mxu0 0.0
    %595 = vmatprep.subr.mxu0 0.0
    %596 = vmatpush1.msra.mxu0 0.0
    %597 = vmatprep.subr.mxu0 0.0
    %598 = vmatpush1.msra.mxu0 0.0
    %599 = vmatprep.subr.mxu0 0.0
    %600 = vmatpush1.msra.mxu0 0.0
    %601 = vmatprep.subr.mxu0 0.0
    %602 = vmatpush1.msra.mxu0 0.0
    %603 = vmatprep.subr.mxu0 0.0
    %604 = vmatpush1.msra.mxu0 0.0
    %605 = vmatprep.subr.mxu0 0.0
    %606 = vmatpush1.msra.mxu0 0.0
    %607 = vmatprep.subr.mxu0 0.0
    %608 = vmatpush1.msra.mxu0 0.0
    %609 = vmatprep.subr.mxu0 0.0
    %610 = vmatpush1.msra.mxu0 0.0
    %611 = vmatprep.subr.mxu0 0.0
    %612 = vmatpush1.msra.mxu0 0.0
    %613 = vmatprep.subr.mxu0 0.0
    %614 = vmatpush1.msra.mxu0 0.0
    %615 = vmatprep.mubr.f32.mxu0 0.0
    %616 = vmatmul.mubr.f32.gmra.mrb[0].mxu0 %v521
    %v617 = vpop.f32.mrb[0].mxu0
    %v618 = vadd.f32 0.0, %v617
    %v619 = vpop.f32.mrb[0].mxu0
    %620 = vmatprep.mubr.f32.mxu0 0.0
    %621 = vmatmul.mubr.f32.gmra.mrb[0].mxu0 %v524
    %v622 = vpop.f32.mrb[0].mxu0
    %v623 = vadd.f32 0.0, %v622
    %v624 = vpop.f32.mrb[0].mxu0
    %625 = vmatprep.mubr.f32.mxu0 0.0
    %626 = vmatmul.mubr.f32.gmra.mrb[0].mxu0 %v527
    %v627 = vpop.f32.mrb[0].mxu0
    %v628 = vadd.f32 0.0, %v627
    %v629 = vpop.f32.mrb[0].mxu0
    %630 = vmatprep.mubr.f32.mxu0 0.0
    %631 = vmatmul.mubr.f32.gmra.mrb[0].mxu0 %v530
    %v632 = vpop.f32.mrb[0].mxu0
    %v633 = vadd.f32 0.0, %v632
    %v634 = vpop.f32.mrb[0].mxu0
    %635 = vmatprep.mubr.f32.mxu0 0.0
    %636 = vmatmul.mubr.f32.gmra.mrb[0].mxu0 %v533
    %v637 = vpop.f32.mrb[0].mxu0
    %v638 = vadd.f32 0.0, %v637
    %v639 = vpop.f32.mrb[0].mxu0
    %640 = vmatprep.mubr.f32.mxu0 0.0
    %641 = vmatmul.mubr.f32.gmra.mrb[0].mxu0 %v536
    %v642 = vpop.f32.mrb[0].mxu0
    %v643 = vadd.f32 0.0, %v642
    %v644 = vpop.f32.mrb[0].mxu0
    %645 = vmatprep.mubr.f32.mxu0 0.0
    %646 = vmatmul.mubr.f32.gmra.mrb[0].mxu0 %v539
    %v647 = vpop.f32.mrb[0].mxu0
    %v648 = vadd.f32 0.0, %v647
    %v649 = vpop.f32.mrb[0].mxu0
    %650 = vmatprep.mubr.f32.mxu0 0.0
    %651 = vmatmul.mubr.f32.gmra.mrb[0].mxu0 %v542
    %v652 = vpop.f32.mrb[0].mxu0
    %v653 = vadd.f32 0.0, %v652
    %v654 = vpop.f32.mrb[0].mxu0
    %655 = vmatprep.mubr.f32.mxu0 0.0
    %656 = vmatmul.mubr.f32.gmra.mrb[0].mxu0 %v545
    %v657 = vpop.f32.mrb[0].mxu0
    %v658 = vadd.f32 0.0, %v657
    %v659 = vpop.f32.mrb[0].mxu0
    %660 = vdwg.mxu0
    %v661 = vmul.f32 %v618, %v210
    %v662 = vmul.f32 %v623, %v211
    %v663 = vmul.f32 %v628, %v212
    %v664 = vmul.f32 %v633, %v213
    %v665 = vmul.f32 %v638, %v214
    %v666 = vmul.f32 %v643, %v215
    %v667 = vmul.f32 %v648, %v216
    %v668 = vmul.f32 %v653, %v217
    %v669 = vmul.f32 %v658, %v218
    %672 = vrot.lane.b32.xlu0 %v506, 96
    %v673 = vpop.permute.xlu0 %672
    %674 = vrot.lane.b32.xlu0 %v511, 96
    %v675 = vpop.permute.xlu0 %674
    %676 = vrot.lane.b32.xlu0 %v516, 96
    %v677 = vpop.permute.xlu0 %676
    %v679 = vsel %vm358, %v661, 0
    %v682 = vsel %vm358, %v662, 0
    %v685 = vsel %vm358, %v663, 0
    %v688 = vsel %vm358, %v664, 0
    %v691 = vsel %vm358, %v665, 0
    %v694 = vsel %vm358, %v666, 0
    %v697 = vsel %vm358, %v667, 0
    %v700 = vsel %vm358, %v668, 0
    %v703 = vsel %vm358, %v669, 0
    %v705 = vsel %vm358, %v673, 0
    %v707 = vsel %vm358, %v675, 0
    %v709 = vsel %vm358, %v677, 0
    %711 = vmatprep.subr.mxu0 0.0
    %712 = vmatpush1.xpose.msra.mxu0 %v705
    %713 = vmatprep.subr.mxu0 0.0
    %714 = vmatpush1.xpose.msra.mxu0 %v707
    %715 = vmatprep.subr.mxu0 0.0
    %716 = vmatpush1.xpose.msra.mxu0 %v709
    %717 = vmatprep.subr.mxu0 0.0
    %718 = vmatpush1.xpose.msra.mxu0 0.0
    %719 = vmatprep.subr.mxu0 0.0
    %720 = vmatpush1.xpose.msra.mxu0 0.0
    %721 = vmatprep.subr.mxu0 0.0
    %722 = vmatpush1.xpose.msra.mxu0 0.0
    %723 = vmatprep.subr.mxu0 0.0
    %724 = vmatpush1.xpose.msra.mxu0 0.0
    %725 = vmatprep.subr.mxu0 0.0
    %726 = vmatpush1.xpose.msra.mxu0 0.0
    %727 = vmatprep.subr.mxu0 0.0
    %728 = vmatpush1.xpose.msra.mxu0 0.0
    %729 = vmatprep.subr.mxu0 0.0
    %730 = vmatpush1.xpose.msra.mxu0 0.0
    %731 = vmatprep.subr.mxu0 0.0
    %732 = vmatpush1.xpose.msra.mxu0 0.0
    %733 = vmatprep.subr.mxu0 0.0
    %734 = vmatpush1.xpose.msra.mxu0 0.0
    %735 = vmatprep.subr.mxu0 0.0
    %736 = vmatpush1.xpose.msra.mxu0 0.0
    %737 = vmatprep.subr.mxu0 0.0
    %738 = vmatpush1.xpose.msra.mxu0 0.0
    %739 = vmatprep.subr.mxu0 0.0
    %740 = vmatpush1.xpose.msra.mxu0 0.0
    %741 = vmatprep.subr.mxu0 0.0
    %742 = vmatpush1.xpose.msra.mxu0 0.0
    %743 = vmatprep.subr.mxu0 0.0
    %744 = vmatpush1.xpose.msra.mxu0 0.0
    %745 = vmatprep.subr.mxu0 0.0
    %746 = vmatpush1.xpose.msra.mxu0 0.0
    %747 = vmatprep.subr.mxu0 0.0
    %748 = vmatpush1.xpose.msra.mxu0 0.0
    %749 = vmatprep.subr.mxu0 0.0
    %750 = vmatpush1.xpose.msra.mxu0 0.0
    %751 = vmatprep.subr.mxu0 0.0
    %752 = vmatpush1.xpose.msra.mxu0 0.0
    %753 = vmatprep.subr.mxu0 0.0
    %754 = vmatpush1.xpose.msra.mxu0 0.0
    %755 = vmatprep.subr.mxu0 0.0
    %756 = vmatpush1.xpose.msra.mxu0 0.0
    %757 = vmatprep.subr.mxu0 0.0
    %758 = vmatpush1.xpose.msra.mxu0 0.0
    %759 = vmatprep.subr.mxu0 0.0
    %760 = vmatpush1.xpose.msra.mxu0 0.0
    %761 = vmatprep.subr.mxu0 0.0
    %762 = vmatpush1.xpose.msra.mxu0 0.0
    %763 = vmatprep.subr.mxu0 0.0
    %764 = vmatpush1.xpose.msra.mxu0 0.0
    %765 = vmatprep.subr.mxu0 0.0
    %766 = vmatpush1.xpose.msra.mxu0 0.0
    %767 = vmatprep.subr.mxu0 0.0
    %768 = vmatpush1.xpose.msra.mxu0 0.0
    %769 = vmatprep.subr.mxu0 0.0
    %770 = vmatpush1.xpose.msra.mxu0 0.0
    %771 = vmatprep.subr.mxu0 0.0
    %772 = vmatpush1.xpose.msra.mxu0 0.0
    %773 = vmatprep.subr.mxu0 0.0
    %774 = vmatpush1.xpose.msra.mxu0 0.0
    %775 = vmatprep.mubr.f32.mxu0 0.0
    %776 = vmatmul.mubr.f32.gmra.mrb[0].mxu0 %v679
    %v777 = vpop.f32.mrb[0].mxu0
    %v778 = vadd.f32 %v219, %v777
    %v779 = vpop.f32.mrb[0].mxu0
    %780 = vmatprep.mubr.f32.mxu0 0.0
    %781 = vmatmul.mubr.f32.gmra.mrb[0].mxu0 %v682
    %v782 = vpop.f32.mrb[0].mxu0
    %v783 = vadd.f32 %v220, %v782
    %v784 = vpop.f32.mrb[0].mxu0
    %785 = vmatprep.mubr.f32.mxu0 0.0
    %786 = vmatmul.mubr.f32.gmra.mrb[0].mxu0 %v685
    %v787 = vpop.f32.mrb[0].mxu0
    %v788 = vadd.f32 %v221, %v787
    %v789 = vpop.f32.mrb[0].mxu0
    %790 = vmatprep.mubr.f32.mxu0 0.0
    %791 = vmatmul.mubr.f32.gmra.mrb[0].mxu0 %v688
    %v792 = vpop.f32.mrb[0].mxu0
    %v793 = vadd.f32 %v222, %v792
    %v794 = vpop.f32.mrb[0].mxu0
    %795 = vmatprep.mubr.f32.mxu0 0.0
    %796 = vmatmul.mubr.f32.gmra.mrb[0].mxu0 %v691
    %v797 = vpop.f32.mrb[0].mxu0
    %v798 = vadd.f32 %v223, %v797
    %v799 = vpop.f32.mrb[0].mxu0
    %800 = vmatprep.mubr.f32.mxu0 0.0
    %801 = vmatmul.mubr.f32.gmra.mrb[0].mxu0 %v694
    %v802 = vpop.f32.mrb[0].mxu0
    %v803 = vadd.f32 %v224, %v802
    %v804 = vpop.f32.mrb[0].mxu0
    %805 = vmatprep.mubr.f32.mxu0 0.0
    %806 = vmatmul.mubr.f32.gmra.mrb[0].mxu0 %v697
    %v807 = vpop.f32.mrb[0].mxu0
    %v808 = vadd.f32 %v225, %v807
    %v809 = vpop.f32.mrb[0].mxu0
    %810 = vmatprep.mubr.f32.mxu0 0.0
    %811 = vmatmul.mubr.f32.gmra.mrb[0].mxu0 %v700
    %v812 = vpop.f32.mrb[0].mxu0
    %v813 = vadd.f32 %v226, %v812
    %v814 = vpop.f32.mrb[0].mxu0
    %815 = vmatprep.mubr.f32.mxu0 0.0
    %816 = vmatmul.mubr.f32.gmra.mrb[0].mxu0 %v703
    %v817 = vpop.f32.mrb[0].mxu0
    %v818 = vadd.f32 %v227, %v817
    %v819 = vpop.f32.mrb[0].mxu0
    %820 = vdwg.mxu0
    %v821 = vsel %vm519, %v778, -inf
    %822 = vmax.xlane.f32.xlu0 %v821
    %v823 = vpop.xlane.xlu0 %822
    %v824 = vsel %vm519, %v783, -inf
    %825 = vmax.xlane.f32.xlu0 %v824
    %v826 = vpop.xlane.xlu0 %825
    %v827 = vsel %vm519, %v788, -inf
    %828 = vmax.xlane.f32.xlu0 %v827
    %v829 = vpop.xlane.xlu0 %828
    %v830 = vsel %vm519, %v793, -inf
    %831 = vmax.xlane.f32.xlu0 %v830
    %v832 = vpop.xlane.xlu0 %831
    %v833 = vsel %vm519, %v798, -inf
    %834 = vmax.xlane.f32.xlu0 %v833
    %v835 = vpop.xlane.xlu0 %834
    %v836 = vsel %vm519, %v803, -inf
    %837 = vmax.xlane.f32.xlu0 %v836
    %v838 = vpop.xlane.xlu0 %837
    %v839 = vsel %vm519, %v808, -inf
    %840 = vmax.xlane.f32.xlu0 %v839
    %v841 = vpop.xlane.xlu0 %840
    %v842 = vsel %vm519, %v813, -inf
    %843 = vmax.xlane.f32.xlu0 %v842
    %v844 = vpop.xlane.xlu0 %843
    %v845 = vsel %vm519, %v818, -inf
    %846 = vmax.xlane.f32.xlu0 %v845
    %v847 = vpop.xlane.xlu0 %846
    %v848 = vsub.f32 %v778, %v823
    %v849 = vsub.f32 %v783, %v826
    %v850 = vsub.f32 %v788, %v829
    %v851 = vsub.f32 %v793, %v832
    %v852 = vsub.f32 %v798, %v835
    %v853 = vsub.f32 %v803, %v838
    %v854 = vsub.f32 %v808, %v841
    %v855 = vsub.f32 %v813, %v844
    %v856 = vsub.f32 %v818, %v847
    %v857 = vmul.f32 %v848, 1.442695
    %v858 = vpow.pop %v857
    %v859 = vmul.f32 %v849, 1.442695
    %v860 = vpow.pop %v859
    %v861 = vmul.f32 %v850, 1.442695
    %v862 = vpow.pop %v861
    %v863 = vmul.f32 %v851, 1.442695
    %v864 = vpow.pop %v863
    %v865 = vmul.f32 %v852, 1.442695
    %v866 = vpow.pop %v865
    %v867 = vmul.f32 %v853, 1.442695
    %v868 = vpow.pop %v867
    %v869 = vmul.f32 %v854, 1.442695
    %v870 = vpow.pop %v869
    %v871 = vmul.f32 %v855, 1.442695
    %v872 = vpow.pop %v871
    %v873 = vmul.f32 %v856, 1.442695
    %v874 = vpow.pop %v873
    %v875 = vsel %vm519, %v858, 0.0
    %876 = vadd.xlane.f32.xlu0 %v875
    %v877 = vpop.xlane.xlu0 %876
    %v878 = vsel %vm519, %v860, 0.0
    %879 = vadd.xlane.f32.xlu0 %v878
    %v880 = vpop.xlane.xlu0 %879
    %v881 = vsel %vm519, %v862, 0.0
    %882 = vadd.xlane.f32.xlu0 %v881
    %v883 = vpop.xlane.xlu0 %882
    %v884 = vsel %vm519, %v864, 0.0
    %885 = vadd.xlane.f32.xlu0 %v884
    %v886 = vpop.xlane.xlu0 %885
    %v887 = vsel %vm519, %v866, 0.0
    %888 = vadd.xlane.f32.xlu0 %v887
    %v889 = vpop.xlane.xlu0 %888
    %v890 = vsel %vm519, %v868, 0.0
    %891 = vadd.xlane.f32.xlu0 %v890
    %v892 = vpop.xlane.xlu0 %891
    %v893 = vsel %vm519, %v870, 0.0
    %894 = vadd.xlane.f32.xlu0 %v893
    %v895 = vpop.xlane.xlu0 %894
    %v896 = vsel %vm519, %v872, 0.0
    %897 = vadd.xlane.f32.xlu0 %v896
    %v898 = vpop.xlane.xlu0 %897
    %v899 = vsel %vm519, %v874, 0.0
    %900 = vadd.xlane.f32.xlu0 %v899
    %v901 = vpop.xlane.xlu0 %900
    %v902 = vrcp.pop %v877
    %v903 = vrcp.pop %v880
    %v904 = vrcp.pop %v883
    %v905 = vrcp.pop %v886
    %v906 = vrcp.pop %v889
    %v907 = vrcp.pop %v892
    %v908 = vrcp.pop %v895
    %v909 = vrcp.pop %v898
    %v910 = vrcp.pop %v901
    %v911 = vmul.f32 %v858, %v902
    %v912 = vmul.f32 %v860, %v903
    %v913 = vmul.f32 %v862, %v904
    %v914 = vmul.f32 %v864, %v905
    %v915 = vmul.f32 %v866, %v906
    %v916 = vmul.f32 %v868, %v907
    %v917 = vmul.f32 %v870, %v908
    %v918 = vmul.f32 %v872, %v909
    %v919 = vmul.f32 %v874, %v910
    %920 = vrot.lane.b32.xlu0 %v506, 64
    %v921 = vpop.permute.xlu0 %920
    %922 = vrot.lane.b32.xlu0 %v511, 64
    %v923 = vpop.permute.xlu0 %922
    %924 = vrot.lane.b32.xlu0 %v516, 64
    %v925 = vpop.permute.xlu0 %924
    %v929 = vsel %vm519, %v911, 0
    %v932 = vsel %vm519, %v912, 0
    %v935 = vsel %vm519, %v913, 0
    %v938 = vsel %vm519, %v914, 0
    %v941 = vsel %vm519, %v915, 0
    %v944 = vsel %vm519, %v916, 0
    %v947 = vsel %vm519, %v917, 0
    %v950 = vsel %vm519, %v918, 0
    %v953 = vsel %vm519, %v919, 0
    %v955 = vsel %vm547, %v925, 0
    %957 = vmatprep.subr.mxu0 0.0
    %958 = vmatpush1.msra.mxu0 %v921
    %959 = vmatprep.subr.mxu0 0.0
    %960 = vmatpush1.msra.mxu0 %v923
    %961 = vmatprep.subr.mxu0 0.0
    %962 = vmatpush1.msra.mxu0 %v955
    %963 = vmatprep.subr.mxu0 0.0
    %964 = vmatpush1.msra.mxu0 0.0
    %965 = vmatprep.subr.mxu0 0.0
    %966 = vmatpush1.msra.mxu0 0.0
    %967 = vmatprep.subr.mxu0 0.0
    %968 = vmatpush1.msra.mxu0 0.0
    %969 = vmatprep.subr.mxu0 0.0
    %970 = vmatpush1.msra.mxu0 0.0
    %971 = vmatprep.subr.mxu0 0.0
    %972 = vmatpush1.msra.mxu0 0.0
    %973 = vmatprep.subr.mxu0 0.0
    %974 = vmatpush1.msra.mxu0 0.0
    %975 = vmatprep.subr.mxu0 0.0
    %976 = vmatpush1.msra.mxu0 0.0
    %977 = vmatprep.subr.mxu0 0.0
    %978 = vmatpush1.msra.mxu0 0.0
    %979 = vmatprep.subr.mxu0 0.0
    %980 = vmatpush1.msra.mxu0 0.0
    %981 = vmatprep.subr.mxu0 0.0
    %982 = vmatpush1.msra.mxu0 0.0
    %983 = vmatprep.subr.mxu0 0.0
    %984 = vmatpush1.msra.mxu0 0.0
    %985 = vmatprep.subr.mxu0 0.0
    %986 = vmatpush1.msra.mxu0 0.0
    %987 = vmatprep.subr.mxu0 0.0
    %988 = vmatpush1.msra.mxu0 0.0
    %989 = vmatprep.subr.mxu0 0.0
    %990 = vmatpush1.msra.mxu0 0.0
    %991 = vmatprep.subr.mxu0 0.0
    %992 = vmatpush1.msra.mxu0 0.0
    %993 = vmatprep.subr.mxu0 0.0
    %994 = vmatpush1.msra.mxu0 0.0
    %995 = vmatprep.subr.mxu0 0.0
    %996 = vmatpush1.msra.mxu0 0.0
    %997 = vmatprep.subr.mxu0 0.0
    %998 = vmatpush1.msra.mxu0 0.0
    %999 = vmatprep.subr.mxu0 0.0
    %1000 = vmatpush1.msra.mxu0 0.0
    %1001 = vmatprep.subr.mxu0 0.0
    %1002 = vmatpush1.msra.mxu0 0.0
    %1003 = vmatprep.subr.mxu0 0.0
    %1004 = vmatpush1.msra.mxu0 0.0
    %1005 = vmatprep.subr.mxu0 0.0
    %1006 = vmatpush1.msra.mxu0 0.0
    %1007 = vmatprep.subr.mxu0 0.0
    %1008 = vmatpush1.msra.mxu0 0.0
    %1009 = vmatprep.subr.mxu0 0.0
    %1010 = vmatpush1.msra.mxu0 0.0
    %1011 = vmatprep.subr.mxu0 0.0
    %1012 = vmatpush1.msra.mxu0 0.0
    %1013 = vmatprep.subr.mxu0 0.0
    %1014 = vmatpush1.msra.mxu0 0.0
    %1015 = vmatprep.subr.mxu0 0.0
    %1016 = vmatpush1.msra.mxu0 0.0
    %1017 = vmatprep.subr.mxu0 0.0
    %1018 = vmatpush1.msra.mxu0 0.0
    %1019 = vmatprep.subr.mxu0 0.0
    %1020 = vmatpush1.msra.mxu0 0.0
    %1021 = vmatprep.mubr.f32.mxu0 0.0
    %1022 = vmatmul.mubr.f32.gmra.mrb[0].mxu0 %v929
    %v1023 = vpop.f32.mrb[0].mxu0
    %v1024 = vadd.f32 0.0, %v1023
    %v1025 = vpop.f32.mrb[0].mxu0
    %1026 = vmatprep.mubr.f32.mxu0 0.0
    %1027 = vmatmul.mubr.f32.gmra.mrb[0].mxu0 %v932
    %v1028 = vpop.f32.mrb[0].mxu0
    %v1029 = vadd.f32 0.0, %v1028
    %v1030 = vpop.f32.mrb[0].mxu0
    %1031 = vmatprep.mubr.f32.mxu0 0.0
    %1032 = vmatmul.mubr.f32.gmra.mrb[0].mxu0 %v935
    %v1033 = vpop.f32.mrb[0].mxu0
    %v1034 = vadd.f32 0.0, %v1033
    %v1035 = vpop.f32.mrb[0].mxu0
    %1036 = vmatprep.mubr.f32.mxu0 0.0
    %1037 = vmatmul.mubr.f32.gmra.mrb[0].mxu0 %v938
    %v1038 = vpop.f32.mrb[0].mxu0
    %v1039 = vadd.f32 0.0, %v1038
    %v1040 = vpop.f32.mrb[0].mxu0
    %1041 = vmatprep.mubr.f32.mxu0 0.0
    %1042 = vmatmul.mubr.f32.gmra.mrb[0].mxu0 %v941
    %v1043 = vpop.f32.mrb[0].mxu0
    %v1044 = vadd.f32 0.0, %v1043
    %v1045 = vpop.f32.mrb[0].mxu0
    %1046 = vmatprep.mubr.f32.mxu0 0.0
    %1047 = vmatmul.mubr.f32.gmra.mrb[0].mxu0 %v944
    %v1048 = vpop.f32.mrb[0].mxu0
    %v1049 = vadd.f32 0.0, %v1048
    %v1050 = vpop.f32.mrb[0].mxu0
    %1051 = vmatprep.mubr.f32.mxu0 0.0
    %1052 = vmatmul.mubr.f32.gmra.mrb[0].mxu0 %v947
    %v1053 = vpop.f32.mrb[0].mxu0
    %v1054 = vadd.f32 0.0, %v1053
    %v1055 = vpop.f32.mrb[0].mxu0
    %1056 = vmatprep.mubr.f32.mxu0 0.0
    %1057 = vmatmul.mubr.f32.gmra.mrb[0].mxu0 %v950
    %v1058 = vpop.f32.mrb[0].mxu0
    %v1059 = vadd.f32 0.0, %v1058
    %v1060 = vpop.f32.mrb[0].mxu0
    %1061 = vmatprep.mubr.f32.mxu0 0.0
    %1062 = vmatmul.mubr.f32.gmra.mrb[0].mxu0 %v953
    %v1063 = vpop.f32.mrb[0].mxu0
    %v1064 = vadd.f32 0.0, %v1063
    %v1065 = vpop.f32.mrb[0].mxu0
    %1066 = vdwg.mxu0
    %v1067 = vmul.f32 %v1024, %v210
    %v1068 = vmul.f32 %v1029, %v211
    %v1069 = vmul.f32 %v1034, %v212
    %v1070 = vmul.f32 %v1039, %v213
    %v1071 = vmul.f32 %v1044, %v214
    %v1072 = vmul.f32 %v1049, %v215
    %v1073 = vmul.f32 %v1054, %v216
    %v1074 = vmul.f32 %v1059, %v217
    %v1075 = vmul.f32 %v1064, %v218
    %vm1076 = vcmask 588800
    %v1078 = vsel %vm1076, %v207, 0
    %v1081 = vsel %vm1076, %v208, 0
    %v1084 = vsel %vm1076, %v209, 0
    %1086 = vmatprep.subr.mxu0 0.0
    %1087 = vmatpush1.msra.mxu0 %v1067
    %1088 = vmatprep.subr.mxu0 0.0
    %1089 = vmatpush1.msra.mxu0 %v1068
    %1090 = vmatprep.subr.mxu0 0.0
    %1091 = vmatpush1.msra.mxu0 %v1069
    %1092 = vmatprep.subr.mxu0 0.0
    %1093 = vmatpush1.msra.mxu0 %v1070
    %1094 = vmatprep.subr.mxu0 0.0
    %1095 = vmatpush1.msra.mxu0 %v1071
    %1096 = vmatprep.subr.mxu0 0.0
    %1097 = vmatpush1.msra.mxu0 %v1072
    %1098 = vmatprep.subr.mxu0 0.0
    %1099 = vmatpush1.msra.mxu0 %v1073
    %1100 = vmatprep.subr.mxu0 0.0
    %1101 = vmatpush1.msra.mxu0 %v1074
    %1102 = vmatprep.subr.mxu0 0.0
    %1103 = vmatpush1.msra.mxu0 %v1075
    %1104 = vmatprep.subr.mxu0 0.0
    %1105 = vmatpush1.msra.mxu0 0.0
    %1106 = vmatprep.subr.mxu0 0.0
    %1107 = vmatpush1.msra.mxu0 0.0
    %1108 = vmatprep.subr.mxu0 0.0
    %1109 = vmatpush1.msra.mxu0 0.0
    %1110 = vmatprep.subr.mxu0 0.0
    %1111 = vmatpush1.msra.mxu0 0.0
    %1112 = vmatprep.subr.mxu0 0.0
    %1113 = vmatpush1.msra.mxu0 0.0
    %1114 = vmatprep.subr.mxu0 0.0
    %1115 = vmatpush1.msra.mxu0 0.0
    %1116 = vmatprep.subr.mxu0 0.0
    %1117 = vmatpush1.msra.mxu0 0.0
    %1118 = vmatprep.subr.mxu0 0.0
    %1119 = vmatpush1.msra.mxu0 0.0
    %1120 = vmatprep.subr.mxu0 0.0
    %1121 = vmatpush1.msra.mxu0 0.0
    %1122 = vmatprep.subr.mxu0 0.0
    %1123 = vmatpush1.msra.mxu0 0.0
    %1124 = vmatprep.subr.mxu0 0.0
    %1125 = vmatpush1.msra.mxu0 0.0
    %1126 = vmatprep.subr.mxu0 0.0
    %1127 = vmatpush1.msra.mxu0 0.0
    %1128 = vmatprep.subr.mxu0 0.0
    %1129 = vmatpush1.msra.mxu0 0.0
    %1130 = vmatprep.subr.mxu0 0.0
    %1131 = vmatpush1.msra.mxu0 0.0
    %1132 = vmatprep.subr.mxu0 0.0
    %1133 = vmatpush1.msra.mxu0 0.0
    %1134 = vmatprep.subr.mxu0 0.0
    %1135 = vmatpush1.msra.mxu0 0.0
    %1136 = vmatprep.subr.mxu0 0.0
    %1137 = vmatpush1.msra.mxu0 0.0
    %1138 = vmatprep.subr.mxu0 0.0
    %1139 = vmatpush1.msra.mxu0 0.0
    %1140 = vmatprep.subr.mxu0 0.0
    %1141 = vmatpush1.msra.mxu0 0.0
    %1142 = vmatprep.subr.mxu0 0.0
    %1143 = vmatpush1.msra.mxu0 0.0
    %1144 = vmatprep.subr.mxu0 0.0
    %1145 = vmatpush1.msra.mxu0 0.0
    %1146 = vmatprep.subr.mxu0 0.0
    %1147 = vmatpush1.msra.mxu0 0.0
    %1148 = vmatprep.subr.mxu0 0.0
    %1149 = vmatpush1.msra.mxu0 0.0
    %1150 = vmatprep.mubr.f32.mxu0 0.0
    %1151 = vmatmul.mubr.f32.gmra.mrb[0].mxu0 %v1078
    %v1152 = vpop.f32.mrb[0].mxu0
    %v1153 = vadd.f32 0.0, %v1152
    %v1154 = vpop.f32.mrb[0].mxu0
    %1155 = vmatprep.mubr.f32.mxu0 0.0
    %1156 = vmatmul.mubr.f32.gmra.mrb[0].mxu0 %v1081
    %v1157 = vpop.f32.mrb[0].mxu0
    %v1158 = vadd.f32 0.0, %v1157
    %v1159 = vpop.f32.mrb[0].mxu0
    %1160 = vmatprep.mubr.f32.mxu0 0.0
    %1161 = vmatmul.mubr.f32.gmra.mrb[0].mxu0 %v1084
    %v1162 = vpop.f32.mrb[0].mxu0
    %v1163 = vadd.f32 0.0, %v1162
    %v1164 = vpop.f32.mrb[0].mxu0
    %1165 = vdwg.mxu0
    %v1167 = vlaneseq
    %v1168 = vshrl.u32 %v1167, 7
    %v1169 = vsub.s32 0, %v1168
    %v1170 = vrot.slane %v341, %v1169
    %v1173 = vsel %vm358, %v1153, 0
    %v1176 = vsel %vm358, %v1158, 0
    %v1179 = vsel %vm358, %v1163, 0
    %1181 = vmatprep.subr.mxu0 0.0
    %1182 = vmatpush1.msra.mxu0 %v337
    %1183 = vmatprep.subr.mxu0 0.0
    %1184 = vmatpush1.msra.mxu0 %v338
    %1185 = vmatprep.subr.mxu0 0.0
    %1186 = vmatpush1.msra.mxu0 %v339
    %1187 = vmatprep.subr.mxu0 0.0
    %1188 = vmatpush1.msra.mxu0 %v340
    %1189 = vmatprep.subr.mxu0 0.0
    %1190 = vmatpush1.msra.mxu0 0.0
    %1191 = vmatprep.subr.mxu0 0.0
    %1192 = vmatpush1.msra.mxu0 0.0
    %1193 = vmatprep.subr.mxu0 0.0
    %1194 = vmatpush1.msra.mxu0 0.0
    %1195 = vmatprep.subr.mxu0 0.0
    %1196 = vmatpush1.msra.mxu0 0.0
    %1197 = vmatprep.subr.mxu0 0.0
    %1198 = vmatpush1.msra.mxu0 0.0
    %1199 = vmatprep.subr.mxu0 0.0
    %1200 = vmatpush1.msra.mxu0 0.0
    %1201 = vmatprep.subr.mxu0 0.0
    %1202 = vmatpush1.msra.mxu0 0.0
    %1203 = vmatprep.subr.mxu0 0.0
    %1204 = vmatpush1.msra.mxu0 0.0
    %1205 = vmatprep.subr.mxu0 0.0
    %1206 = vmatpush1.msra.mxu0 0.0
    %1207 = vmatprep.subr.mxu0 0.0
    %1208 = vmatpush1.msra.mxu0 0.0
    %1209 = vmatprep.subr.mxu0 0.0
    %1210 = vmatpush1.msra.mxu0 0.0
    %1211 = vmatprep.subr.mxu0 0.0
    %1212 = vmatpush1.msra.mxu0 0.0
    %1213 = vmatprep.subr.mxu0 0.0
    %1214 = vmatpush1.msra.mxu0 0.0
    %1215 = vmatprep.subr.mxu0 0.0
    %1216 = vmatpush1.msra.mxu0 0.0
    %1217 = vmatprep.subr.mxu0 0.0
    %1218 = vmatpush1.msra.mxu0 0.0
    %1219 = vmatprep.subr.mxu0 0.0
    %1220 = vmatpush1.msra.mxu0 0.0
    %1221 = vmatprep.subr.mxu0 0.0
    %1222 = vmatpush1.msra.mxu0 0.0
    %1223 = vmatprep.subr.mxu0 0.0
    %1224 = vmatpush1.msra.mxu0 0.0
    %1225 = vmatprep.subr.mxu0 0.0
    %1226 = vmatpush1.msra.mxu0 0.0
    %1227 = vmatprep.subr.mxu0 0.0
    %1228 = vmatpush1.msra.mxu0 0.0
    %1229 = vmatprep.subr.mxu0 0.0
    %1230 = vmatpush1.msra.mxu0 0.0
    %1231 = vmatprep.subr.mxu0 0.0
    %1232 = vmatpush1.msra.mxu0 0.0
    %1233 = vmatprep.subr.mxu0 0.0
    %1234 = vmatpush1.msra.mxu0 0.0
    %1235 = vmatprep.subr.mxu0 0.0
    %1236 = vmatpush1.msra.mxu0 0.0
    %1237 = vmatprep.subr.mxu0 0.0
    %1238 = vmatpush1.msra.mxu0 0.0
    %1239 = vmatprep.subr.mxu0 0.0
    %1240 = vmatpush1.msra.mxu0 0.0
    %1241 = vmatprep.subr.mxu0 0.0
    %1242 = vmatpush1.msra.mxu0 0.0
    %1243 = vmatprep.subr.mxu0 0.0
    %1244 = vmatpush1.msra.mxu0 0.0
    %1245 = vmatprep.mubr.f32.mxu0 0.0
    %1246 = vmatmul.mubr.f32.gmra.mrb[0].mxu0 %v1173
    %v1247 = vpop.f32.mrb[0].mxu0
    %v1248 = vadd.f32 %v1170, %v1247
    %v1249 = vpop.f32.mrb[0].mxu0
    %1250 = vmatprep.mubr.f32.mxu0 0.0
    %1251 = vmatmul.mubr.f32.gmra.mrb[0].mxu0 %v1176
    %v1252 = vpop.f32.mrb[0].mxu0
    %v1253 = vadd.f32 %v1170, %v1252
    %v1254 = vpop.f32.mrb[0].mxu0
    %1255 = vmatprep.mubr.f32.mxu0 0.0
    %1256 = vmatmul.mubr.f32.gmra.mrb[0].mxu0 %v1179
    %v1257 = vpop.f32.mrb[0].mxu0
    %v1258 = vadd.f32 %v1170, %v1257
    %v1259 = vpop.f32.mrb[0].mxu0
    %1260 = vdwg.mxu0
    %v1261 = vadd.f32 %v317, %v1248
    %v1262 = vadd.f32 %v322, %v1253
    %v1263 = vadd.f32 %v327, %v1258
    %v1264 = vsel %vm358, %v1261, 0.0
    %1265 = vadd.xlane.f32.xlu0 %v1264
    %v1266 = vpop.xlane.xlu0 %1265
    %v1267 = vsel %vm358, %v1262, 0.0
    %1268 = vadd.xlane.f32.xlu0 %v1267
    %v1269 = vpop.xlane.xlu0 %1268
    %v1270 = vsel %vm365, %v1263, 0.0
    %1271 = vadd.xlane.f32.xlu0 %v1270
    %v1272 = vpop.xlane.xlu0 %1271
    %v1273 = vmul.f32 %v1266, %v369
    %v1274 = vmul.f32 %v1269, %v369
    %v1275 = vmul.f32 %v1272, %v369
    %v1276 = vmul.f32 %v1261, %v1261
    %v1277 = vmul.f32 %v1262, %v1262
    %v1278 = vmul.f32 %v1263, %v1263
    %v1279 = vsel %vm358, %v1276, 0.0
    %1280 = vadd.xlane.f32.xlu0 %v1279
    %v1281 = vpop.xlane.xlu0 %1280
    %v1282 = vsel %vm358, %v1277, 0.0
    %1283 = vadd.xlane.f32.xlu0 %v1282
    %v1284 = vpop.xlane.xlu0 %1283
    %v1285 = vsel %vm365, %v1278, 0.0
    %1286 = vadd.xlane.f32.xlu0 %v1285
    %v1287 = vpop.xlane.xlu0 %1286
    %v1288 = vmul.f32 %v1281, %v369
    %v1289 = vmul.f32 %v1284, %v369
    %v1290 = vmul.f32 %v1287, %v369
    %v1291 = vmul.f32 %v1273, %v1273
    %v1292 = vmul.f32 %v1274, %v1274
    %v1293 = vmul.f32 %v1275, %v1275
    %v1294 = vsub.f32 %v1288, %v1291
    %v1295 = vsub.f32 %v1289, %v1292
    %v1296 = vsub.f32 %v1290, %v1293
    %v1297 = vadd.f32 %v1294, 1e-05
    %v1298 = vadd.f32 %v1295, 1e-05
    %v1299 = vadd.f32 %v1296, 1e-05
    %v1300 = vrsqrt.pop %v1297
    %v1301 = vrsqrt.pop %v1298
    %v1302 = vrsqrt.pop %v1299
    %v1303 = vsub.f32 %v1261, %v1273
    %v1304 = vsub.f32 %v1262, %v1274
    %v1305 = vsub.f32 %v1263, %v1275
    %v1306 = vmul.f32 %v1303, %v1300
    %v1307 = vmul.f32 %v1304, %v1301
    %v1308 = vmul.f32 %v1305, %v1302
    %v1310 = vlaneseq
    %v1311 = vshrl.u32 %v1310, 7
    %v1312 = vsub.s32 0, %v1311
    %v1313 = vrot.slane %v342, %v1312
    %v1315 = vmul.f32 %v1306, %v1313
    %v1316 = vmul.f32 %v1307, %v1313
    %v1317 = vmul.f32 %v1308, %v1313
    %v1319 = vlaneseq
    %v1320 = vshrl.u32 %v1319, 7
    %v1321 = vsub.s32 0, %v1320
    %v1322 = vrot.slane %v343, %v1321
    %v1324 = vadd.f32 %v1315, %v1322
    %v1325 = vadd.f32 %v1316, %v1322
    %v1326 = vadd.f32 %v1317, %v1322
    %v1328 = vlaneseq
    %v1329 = vshrl.u32 %v1328, 7
    %v1330 = vsub.s32 0, %v1329
    %v1331 = vrot.slane %v348, %v1330
    %v1334 = vsel %vm358, %v1324, 0
    %v1337 = vsel %vm358, %v1325, 0
    %v1340 = vsel %vm358, %v1326, 0
    %1342 = vmatprep.subr.mxu0 0.0
    %1343 = vmatpush1.msra.mxu0 %v344
    %1344 = vmatprep.subr.mxu0 0.0
    %1345 = vmatpush1.msra.mxu0 %v345
    %1346 = vmatprep.subr.mxu0 0.0
    %1347 = vmatpush1.msra.mxu0 %v346
    %1348 = vmatprep.subr.mxu0 0.0
    %1349 = vmatpush1.msra.mxu0 %v347
    %1350 = vmatprep.subr.mxu0 0.0
    %1351 = vmatpush1.msra.mxu0 0.0
    %1352 = vmatprep.subr.mxu0 0.0
    %1353 = vmatpush1.msra.mxu0 0.0
    %1354 = vmatprep.subr.mxu0 0.0
    %1355 = vmatpush1.msra.mxu0 0.0
    %1356 = vmatprep.subr.mxu0 0.0
    %1357 = vmatpush1.msra.mxu0 0.0
    %1358 = vmatprep.subr.mxu0 0.0
    %1359 = vmatpush1.msra.mxu0 0.0
    %1360 = vmatprep.subr.mxu0 0.0
    %1361 = vmatpush1.msra.mxu0 0.0
    %1362 = vmatprep.subr.mxu0 0.0
    %1363 = vmatpush1.msra.mxu0 0.0
    %1364 = vmatprep.subr.mxu0 0.0
    %1365 = vmatpush1.msra.mxu0 0.0
    %1366 = vmatprep.subr.mxu0 0.0
    %1367 = vmatpush1.msra.mxu0 0.0
    %1368 = vmatprep.subr.mxu0 0.0
    %1369 = vmatpush1.msra.mxu0 0.0
    %1370 = vmatprep.subr.mxu0 0.0
    %1371 = vmatpush1.msra.mxu0 0.0
    %1372 = vmatprep.subr.mxu0 0.0
    %1373 = vmatpush1.msra.mxu0 0.0
    %1374 = vmatprep.subr.mxu0 0.0
    %1375 = vmatpush1.msra.mxu0 0.0
    %1376 = vmatprep.subr.mxu0 0.0
    %1377 = vmatpush1.msra.mxu0 0.0
    %1378 = vmatprep.subr.mxu0 0.0
    %1379 = vmatpush1.msra.mxu0 0.0
    %1380 = vmatprep.subr.mxu0 0.0
    %1381 = vmatpush1.msra.mxu0 0.0
    %1382 = vmatprep.subr.mxu0 0.0
    %1383 = vmatpush1.msra.mxu0 0.0
    %1384 = vmatprep.subr.mxu0 0.0
    %1385 = vmatpush1.msra.mxu0 0.0
    %1386 = vmatprep.subr.mxu0 0.0
    %1387 = vmatpush1.msra.mxu0 0.0
    %1388 = vmatprep.subr.mxu0 0.0
    %1389 = vmatpush1.msra.mxu0 0.0
    %1390 = vmatprep.subr.mxu0 0.0
    %1391 = vmatpush1.msra.mxu0 0.0
    %1392 = vmatprep.subr.mxu0 0.0
    %1393 = vmatpush1.msra.mxu0 0.0
    %1394 = vmatprep.subr.mxu0 0.0
    %1395 = vmatpush1.msra.mxu0 0.0
    %1396 = vmatprep.subr.mxu0 0.0
    %1397 = vmatpush1.msra.mxu0 0.0
    %1398 = vmatprep.subr.mxu0 0.0
    %1399 = vmatpush1.msra.mxu0 0.0
    %1400 = vmatprep.subr.mxu0 0.0
    %1401 = vmatpush1.msra.mxu0 0.0
    %1402 = vmatprep.subr.mxu0 0.0
    %1403 = vmatpush1.msra.mxu0 0.0
    %1404 = vmatprep.subr.mxu0 0.0
    %1405 = vmatpush1.msra.mxu0 0.0
    %1406 = vmatprep.mubr.f32.mxu0 0.0
    %1407 = vmatmul.mubr.f32.gmra.mrb[0].mxu0 %v1334
    %v1408 = vpop.f32.mrb[0].mxu0
    %v1409 = vadd.f32 %v1331, %v1408
    %v1410 = vpop.f32.mrb[0].mxu0
    %1411 = vmatprep.mubr.f32.mxu0 0.0
    %1412 = vmatmul.mubr.f32.gmra.mrb[0].mxu0 %v1337
    %v1413 = vpop.f32.mrb[0].mxu0
    %v1414 = vadd.f32 %v1331, %v1413
    %v1415 = vpop.f32.mrb[0].mxu0
    %1416 = vmatprep.mubr.f32.mxu0 0.0
    %1417 = vmatmul.mubr.f32.gmra.mrb[0].mxu0 %v1340
    %v1418 = vpop.f32.mrb[0].mxu0
    %v1419 = vadd.f32 %v1331, %v1418
    %v1420 = vpop.f32.mrb[0].mxu0
    %1421 = vdwg.mxu0
    %v1422 = vmul.f32 %v1409, %v1409
    %v1423 = vmul.f32 %v1414, %v1414
    %v1424 = vmul.f32 %v1419, %v1419
    %v1425 = vmul.f32 %v1409, %v1422
    %v1426 = vmul.f32 %v1414, %v1423
    %v1427 = vmul.f32 %v1419, %v1424
    %v1428 = vmul.f32 %v1425, 0.044715
    %v1429 = vmul.f32 %v1426, 0.044715
    %v1430 = vmul.f32 %v1427, 0.044715
    %v1431 = vadd.f32 %v1409, %v1428
    %v1432 = vadd.f32 %v1414, %v1429
    %v1433 = vadd.f32 %v1419, %v1430
    %v1434 = vmul.f32 %v1431, 0.7978846
    %v1435 = vmul.f32 %v1432, 0.7978846
    %v1436 = vmul.f32 %v1433, 0.7978846
    %v1437 = vtanh.pop %v1434
    %v1438 = vtanh.pop %v1435
    %v1439 = vtanh.pop %v1436
    %v1440 = vadd.f32 %v1437, 1.0
    %v1441 = vadd.f32 %v1438, 1.0
    %v1442 = vadd.f32 %v1439, 1.0
    %v1443 = vmul.f32 %v1440, 0.5
    %v1444 = vmul.f32 %v1441, 0.5
    %v1445 = vmul.f32 %v1442, 0.5
    %v1446 = vmul.f32 %v1409, %v1443
    %v1447 = vmul.f32 %v1414, %v1444
    %v1448 = vmul.f32 %v1419, %v1445
    %v1450 = vlaneseq
    %v1451 = vshrl.u32 %v1450, 7
    %v1452 = vsub.s32 0, %v1451
    %v1453 = vrot.slane %v357, %v1452
    %vm1455 = vcmask 523264
    %v1457 = vsel %vm1455, %v1446, 0
    %v1460 = vsel %vm1455, %v1447, 0
    %v1463 = vsel %vm1455, %v1448, 0
    %1465 = vmatprep.subr.mxu0 0.0
    %1466 = vmatpush1.msra.mxu0 %v349
    %1467 = vmatprep.subr.mxu0 0.0
    %1468 = vmatpush1.msra.mxu0 %v350
    %1469 = vmatprep.subr.mxu0 0.0
    %1470 = vmatpush1.msra.mxu0 %v351
    %1471 = vmatprep.subr.mxu0 0.0
    %1472 = vmatpush1.msra.mxu0 %v352
    %1473 = vmatprep.subr.mxu0 0.0
    %1474 = vmatpush1.msra.mxu0 %v353
    %1475 = vmatprep.subr.mxu0 0.0
    %1476 = vmatpush1.msra.mxu0 %v354
    %1477 = vmatprep.subr.mxu0 0.0
    %1478 = vmatpush1.msra.mxu0 %v355
    %1479 = vmatprep.subr.mxu0 0.0
    %1480 = vmatpush1.msra.mxu0 %v356
    %1481 = vmatprep.subr.mxu0 0.0
    %1482 = vmatpush1.msra.mxu0 0.0
    %1483 = vmatprep.subr.mxu0 0.0
    %1484 = vmatpush1.msra.mxu0 0.0
    %1485 = vmatprep.subr.mxu0 0.0
    %1486 = vmatpush1.msra.mxu0 0.0
    %1487 = vmatprep.subr.mxu0 0.0
    %1488 = vmatpush1.msra.mxu0 0.0
    %1489 = vmatprep.subr.mxu0 0.0
    %1490 = vmatpush1.msra.mxu0 0.0
    %1491 = vmatprep.subr.mxu0 0.0
    %1492 = vmatpush1.msra.mxu0 0.0
    %1493 = vmatprep.subr.mxu0 0.0
    %1494 = vmatpush1.msra.mxu0 0.0
    %1495 = vmatprep.subr.mxu0 0.0
    %1496 = vmatpush1.msra.mxu0 0.0
    %1497 = vmatprep.subr.mxu0 0.0
    %1498 = vmatpush1.msra.mxu0 0.0
    %1499 = vmatprep.subr.mxu0 0.0
    %1500 = vmatpush1.msra.mxu0 0.0
    %1501 = vmatprep.subr.mxu0 0.0
    %1502 = vmatpush1.msra.mxu0 0.0
    %1503 = vmatprep.subr.mxu0 0.0
    %1504 = vmatpush1.msra.mxu0 0.0
    %1505 = vmatprep.subr.mxu0 0.0
    %1506 = vmatpush1.msra.mxu0 0.0
    %1507 = vmatprep.subr.mxu0 0.0
    %1508 = vmatpush1.msra.mxu0 0.0
    %1509 = vmatprep.subr.mxu0 0.0
    %1510 = vmatpush1.msra.mxu0 0.0
    %1511 = vmatprep.subr.mxu0 0.0
    %1512 = vmatpush1.msra.mxu0 0.0
    %1513 = vmatprep.subr.mxu0 0.0
    %1514 = vmatpush1.msra.mxu0 0.0
    %1515 = vmatprep.subr.mxu0 0.0
    %1516 = vmatpush1.msra.mxu0 0.0
    %1517 = vmatprep.subr.mxu0 0.0
    %1518 = vmatpush1.msra.mxu0 0.0
    %1519 = vmatprep.subr.mxu0 0.0
    %1520 = vmatpush1.msra.mxu0 0.0
    %1521 = vmatprep.subr.mxu0 0.0
    %1522 = vmatpush1.msra.mxu0 0.0
    %1523 = vmatprep.subr.mxu0 0.0
    %1524 = vmatpush1.msra.mxu0 0.0
    %1525 = vmatprep.subr.mxu0 0.0
    %1526 = vmatpush1.msra.mxu0 0.0
    %1527 = vmatprep.subr.mxu0 0.0
    %1528 = vmatpush1.msra.mxu0 0.0
    %1529 = vmatprep.mubr.f32.mxu0 0.0
    %1530 = vmatmul.mubr.f32.gmra.mrb[0].mxu0 %v1457
    %v1531 = vpop.f32.mrb[0].mxu0
    %v1532 = vadd.f32 %v1453, %v1531
    %v1533 = vpop.f32.mrb[0].mxu0
    %1534 = vmatprep.mubr.f32.mxu0 0.0
    %1535 = vmatmul.mubr.f32.gmra.mrb[0].mxu0 %v1460
    %v1536 = vpop.f32.mrb[0].mxu0
    %v1537 = vadd.f32 %v1453, %v1536
    %v1538 = vpop.f32.mrb[0].mxu0
    %1539 = vmatprep.mubr.f32.mxu0 0.0
    %1540 = vmatmul.mubr.f32.gmra.mrb[0].mxu0 %v1463
    %v1541 = vpop.f32.mrb[0].mxu0
    %v1542 = vadd.f32 %v1453, %v1541
    %v1543 = vpop.f32.mrb[0].mxu0
    %1544 = vdwg.mxu0
    %v1545 = vadd.f32 %v1261, %v1532
    %v1546 = vadd.f32 %v1262, %v1537
    %v1547 = vadd.f32 %v1263, %v1542
    %s1548 = scalar_lea.vmem %s7, 1
    %v1549 = vld [vmem:[%s1548] sm:$0x1]
    %s1550 = scalar_lea.vmem %s9, 1
    %v1551 = vld [vmem:[%s1550] sm:$0x1]
    %s1552 = scalar_lea.vmem %s11, 32
    %v1553 = vld [vmem:[%s1552] sm:$0xff]
    %v1554 = vld [vmem:[%s1552 + $0x8] sm:$0xff]
    %v1555 = vld [vmem:[%s1552 + $0x10] sm:$0xff]
    %v1556 = vld [vmem:[%s1552 + $0x18] sm:$0xff]
    %s1557 = scalar_lea.vmem %s13, 1
    %v1558 = vld [vmem:[%s1557] sm:$0x1]
    %s1559 = scalar_lea.vmem %s15, 32
    %v1560 = vld [vmem:[%s1559] sm:$0xff]
    %v1561 = vld [vmem:[%s1559 + $0x8] sm:$0xff]
    %v1562 = vld [vmem:[%s1559 + $0x10] sm:$0xff]
    %v1563 = vld [vmem:[%s1559 + $0x18] sm:$0xff]
    %s1564 = scalar_lea.vmem %s17, 1
    %v1565 = vld [vmem:[%s1564] sm:$0x1]
    %s1566 = scalar_lea.vmem %s19, 1
    %v1567 = vld [vmem:[%s1566] sm:$0x1]
    %s1568 = scalar_lea.vmem %s21, 1
    %v1569 = vld [vmem:[%s1568] sm:$0x1]
    %s1570 = scalar_lea.vmem %s23, 32
    %v1571 = vld [vmem:[%s1570] sm:$0xff]
    %v1572 = vld [vmem:[%s1570 + $0x8] sm:$0xff]
    %v1573 = vld [vmem:[%s1570 + $0x10] sm:$0xff]
    %v1574 = vld [vmem:[%s1570 + $0x18] sm:$0xff]
    %s1575 = scalar_lea.vmem %s25, 1
    %v1576 = vld [vmem:[%s1575] sm:$0x1]
    %s1577 = scalar_lea.vmem %s27, 64
    %v1578 = vld [vmem:[%s1577] sm:$0xff]
    %v1579 = vld [vmem:[%s1577 + $0x8] sm:$0xff]
    %v1580 = vld [vmem:[%s1577 + $0x10] sm:$0xff]
    %v1581 = vld [vmem:[%s1577 + $0x18] sm:$0xff]
    %v1582 = vld [vmem:[%s1577 + $0x20] sm:$0xff]
    %v1583 = vld [vmem:[%s1577 + $0x28] sm:$0xff]
    %v1584 = vld [vmem:[%s1577 + $0x30] sm:$0xff]
    %v1585 = vld [vmem:[%s1577 + $0x38] sm:$0xff]
    %s1586 = scalar_lea.vmem %s29, 1
    %v1587 = vld [vmem:[%s1586] sm:$0x1]
    %v1588 = vsel %vm358, %v1545, 0.0
    %1589 = vadd.xlane.f32.xlu0 %v1588
    %v1590 = vpop.xlane.xlu0 %1589
    %v1591 = vsel %vm358, %v1546, 0.0
    %1592 = vadd.xlane.f32.xlu0 %v1591
    %v1593 = vpop.xlane.xlu0 %1592
    %v1594 = vsel %vm365, %v1547, 0.0
    %1595 = vadd.xlane.f32.xlu0 %v1594
    %v1596 = vpop.xlane.xlu0 %1595
    %v1597 = vmul.f32 %v1590, %v369
    %v1598 = vmul.f32 %v1593, %v369
    %v1599 = vmul.f32 %v1596, %v369
    %v1600 = vmul.f32 %v1545, %v1545
    %v1601 = vmul.f32 %v1546, %v1546
    %v1602 = vmul.f32 %v1547, %v1547
    %v1603 = vsel %vm358, %v1600, 0.0
    %1604 = vadd.xlane.f32.xlu0 %v1603
    %v1605 = vpop.xlane.xlu0 %1604
    %v1606 = vsel %vm358, %v1601, 0.0
    %1607 = vadd.xlane.f32.xlu0 %v1606
    %v1608 = vpop.xlane.xlu0 %1607
    %v1609 = vsel %vm365, %v1602, 0.0
    %1610 = vadd.xlane.f32.xlu0 %v1609
    %v1611 = vpop.xlane.xlu0 %1610
    %v1612 = vmul.f32 %v1605, %v369
    %v1613 = vmul.f32 %v1608, %v369
    %v1614 = vmul.f32 %v1611, %v369
    %v1615 = vmul.f32 %v1597, %v1597
    %v1616 = vmul.f32 %v1598, %v1598
    %v1617 = vmul.f32 %v1599, %v1599
    %v1618 = vsub.f32 %v1612, %v1615
    %v1619 = vsub.f32 %v1613, %v1616
    %v1620 = vsub.f32 %v1614, %v1617
    %v1621 = vadd.f32 %v1618, 1e-05
    %v1622 = vadd.f32 %v1619, 1e-05
    %v1623 = vadd.f32 %v1620, 1e-05
    %v1624 = vrsqrt.pop %v1621
    %v1625 = vrsqrt.pop %v1622
    %v1626 = vrsqrt.pop %v1623
    %v1627 = vsub.f32 %v1545, %v1597
    %v1628 = vsub.f32 %v1546, %v1598
    %v1629 = vsub.f32 %v1547, %v1599
    %v1630 = vmul.f32 %v1627, %v1624
    %v1631 = vmul.f32 %v1628, %v1625
    %v1632 = vmul.f32 %v1629, %v1626
    %v1634 = vlaneseq
    %v1635 = vshrl.u32 %v1634, 7
    %v1636 = vsub.s32 0, %v1635
    %v1637 = vrot.slane %v1549, %v1636
    %v1639 = vmul.f32 %v1630, %v1637
    %v1640 = vmul.f32 %v1631, %v1637
    %v1641 = vmul.f32 %v1632, %v1637
    %v1643 = vlaneseq
    %v1644 = vshrl.u32 %v1643, 7
    %v1645 = vsub.s32 0, %v1644
    %v1646 = vrot.slane %v1551, %v1645
    %v1648 = vadd.f32 %v1639, %v1646
    %v1649 = vadd.f32 %v1640, %v1646
    %v1650 = vadd.f32 %v1641, %v1646
    %v1652 = vlaneseq
    %v1653 = vshrl.u32 %v1652, 7
    %v1654 = vsub.s32 0, %v1653
    %v1655 = vrot.slane %v1558, %v1654
    %v1658 = vsel %vm358, %v1648, 0
    %v1661 = vsel %vm358, %v1649, 0
    %v1664 = vsel %vm358, %v1650, 0
    %1666 = vmatprep.subr.mxu0 0.0
    %1667 = vmatpush1.msra.mxu0 %v1553
    %1668 = vmatprep.subr.mxu0 0.0
    %1669 = vmatpush1.msra.mxu0 %v1554
    %1670 = vmatprep.subr.mxu0 0.0
    %1671 = vmatpush1.msra.mxu0 %v1555
    %1672 = vmatprep.subr.mxu0 0.0
    %1673 = vmatpush1.msra.mxu0 %v1556
    %1674 = vmatprep.subr.mxu0 0.0
    %1675 = vmatpush1.msra.mxu0 0.0
    %1676 = vmatprep.subr.mxu0 0.0
    %1677 = vmatpush1.msra.mxu0 0.0
    %1678 = vmatprep.subr.mxu0 0.0
    %1679 = vmatpush1.msra.mxu0 0.0
    %1680 = vmatprep.subr.mxu0 0.0
    %1681 = vmatpush1.msra.mxu0 0.0
    %1682 = vmatprep.subr.mxu0 0.0
    %1683 = vmatpush1.msra.mxu0 0.0
    %1684 = vmatprep.subr.mxu0 0.0
    %1685 = vmatpush1.msra.mxu0 0.0
    %1686 = vmatprep.subr.mxu0 0.0
    %1687 = vmatpush1.msra.mxu0 0.0
    %1688 = vmatprep.subr.mxu0 0.0
    %1689 = vmatpush1.msra.mxu0 0.0
    %1690 = vmatprep.subr.mxu0 0.0
    %1691 = vmatpush1.msra.mxu0 0.0
    %1692 = vmatprep.subr.mxu0 0.0
    %1693 = vmatpush1.msra.mxu0 0.0
    %1694 = vmatprep.subr.mxu0 0.0
    %1695 = vmatpush1.msra.mxu0 0.0
    %1696 = vmatprep.subr.mxu0 0.0
    %1697 = vmatpush1.msra.mxu0 0.0
    %1698 = vmatprep.subr.mxu0 0.0
    %1699 = vmatpush1.msra.mxu0 0.0
    %1700 = vmatprep.subr.mxu0 0.0
    %1701 = vmatpush1.msra.mxu0 0.0
    %1702 = vmatprep.subr.mxu0 0.0
    %1703 = vmatpush1.msra.mxu0 0.0
    %1704 = vmatprep.subr.mxu0 0.0
    %1705 = vmatpush1.msra.mxu0 0.0
    %1706 = vmatprep.subr.mxu0 0.0
    %1707 = vmatpush1.msra.mxu0 0.0
    %1708 = vmatprep.subr.mxu0 0.0
    %1709 = vmatpush1.msra.mxu0 0.0
    %1710 = vmatprep.subr.mxu0 0.0
    %1711 = vmatpush1.msra.mxu0 0.0
    %1712 = vmatprep.subr.mxu0 0.0
    %1713 = vmatpush1.msra.mxu0 0.0
    %1714 = vmatprep.subr.mxu0 0.0
    %1715 = vmatpush1.msra.mxu0 0.0
    %1716 = vmatprep.subr.mxu0 0.0
    %1717 = vmatpush1.msra.mxu0 0.0
    %1718 = vmatprep.subr.mxu0 0.0
    %1719 = vmatpush1.msra.mxu0 0.0
    %1720 = vmatprep.subr.mxu0 0.0
    %1721 = vmatpush1.msra.mxu0 0.0
    %1722 = vmatprep.subr.mxu0 0.0
    %1723 = vmatpush1.msra.mxu0 0.0
    %1724 = vmatprep.subr.mxu0 0.0
    %1725 = vmatpush1.msra.mxu0 0.0
    %1726 = vmatprep.subr.mxu0 0.0
    %1727 = vmatpush1.msra.mxu0 0.0
    %1728 = vmatprep.subr.mxu0 0.0
    %1729 = vmatpush1.msra.mxu0 0.0
    %1730 = vmatprep.mubr.f32.mxu0 0.0
    %1731 = vmatmul.mubr.f32.gmra.mrb[0].mxu0 %v1658
    %v1732 = vpop.f32.mrb[0].mxu0
    %v1733 = vadd.f32 %v1655, %v1732
    %v1734 = vpop.f32.mrb[0].mxu0
    %1735 = vmatprep.mubr.f32.mxu0 0.0
    %1736 = vmatmul.mubr.f32.gmra.mrb[0].mxu0 %v1661
    %v1737 = vpop.f32.mrb[0].mxu0
    %v1738 = vadd.f32 %v1655, %v1737
    %v1739 = vpop.f32.mrb[0].mxu0
    %1740 = vmatprep.mubr.f32.mxu0 0.0
    %1741 = vmatmul.mubr.f32.gmra.mrb[0].mxu0 %v1664
    %v1742 = vpop.f32.mrb[0].mxu0
    %v1743 = vadd.f32 %v1655, %v1742
    %v1744 = vpop.f32.mrb[0].mxu0
    %1745 = vdwg.mxu0
    %v1747 = vsel %vm547, %v1743, 0
    %1749 = vmatprep.subr.mxu0 0.0
    %1750 = vmatpush1.msra.mxu0 %v1733
    %1751 = vmatprep.subr.mxu0 0.0
    %1752 = vmatpush1.msra.mxu0 %v1738
    %1753 = vmatprep.subr.mxu0 0.0
    %1754 = vmatpush1.msra.mxu0 %v1747
    %1755 = vmatprep.subr.mxu0 0.0
    %1756 = vmatpush1.msra.mxu0 0.0
    %1757 = vmatprep.subr.mxu0 0.0
    %1758 = vmatpush1.msra.mxu0 0.0
    %1759 = vmatprep.subr.mxu0 0.0
    %1760 = vmatpush1.msra.mxu0 0.0
    %1761 = vmatprep.subr.mxu0 0.0
    %1762 = vmatpush1.msra.mxu0 0.0
    %1763 = vmatprep.subr.mxu0 0.0
    %1764 = vmatpush1.msra.mxu0 0.0
    %1765 = vmatprep.subr.mxu0 0.0
    %1766 = vmatpush1.msra.mxu0 0.0
    %1767 = vmatprep.subr.mxu0 0.0
    %1768 = vmatpush1.msra.mxu0 0.0
    %1769 = vmatprep.subr.mxu0 0.0
    %1770 = vmatpush1.msra.mxu0 0.0
    %1771 = vmatprep.subr.mxu0 0.0
    %1772 = vmatpush1.msra.mxu0 0.0
    %1773 = vmatprep.subr.mxu0 0.0
    %1774 = vmatpush1.msra.mxu0 0.0
    %1775 = vmatprep.subr.mxu0 0.0
    %1776 = vmatpush1.msra.mxu0 0.0
    %1777 = vmatprep.subr.mxu0 0.0
    %1778 = vmatpush1.msra.mxu0 0.0
    %1779 = vmatprep.subr.mxu0 0.0
    %1780 = vmatpush1.msra.mxu0 0.0
    %1781 = vmatprep.subr.mxu0 0.0
    %1782 = vmatpush1.msra.mxu0 0.0
    %1783 = vmatprep.subr.mxu0 0.0
    %1784 = vmatpush1.msra.mxu0 0.0
    %1785 = vmatprep.subr.mxu0 0.0
    %1786 = vmatpush1.msra.mxu0 0.0
    %1787 = vmatprep.subr.mxu0 0.0
    %1788 = vmatpush1.msra.mxu0 0.0
    %1789 = vmatprep.subr.mxu0 0.0
    %1790 = vmatpush1.msra.mxu0 0.0
    %1791 = vmatprep.subr.mxu0 0.0
    %1792 = vmatpush1.msra.mxu0 0.0
    %1793 = vmatprep.subr.mxu0 0.0
    %1794 = vmatpush1.msra.mxu0 0.0
    %1795 = vmatprep.subr.mxu0 0.0
    %1796 = vmatpush1.msra.mxu0 0.0
    %1797 = vmatprep.subr.mxu0 0.0
    %1798 = vmatpush1.msra.mxu0 0.0
    %1799 = vmatprep.subr.mxu0 0.0
    %1800 = vmatpush1.msra.mxu0 0.0
    %1801 = vmatprep.subr.mxu0 0.0
    %1802 = vmatpush1.msra.mxu0 0.0
    %1803 = vmatprep.subr.mxu0 0.0
    %1804 = vmatpush1.msra.mxu0 0.0
    %1805 = vmatprep.subr.mxu0 0.0
    %1806 = vmatpush1.msra.mxu0 0.0
    %1807 = vmatprep.subr.mxu0 0.0
    %1808 = vmatpush1.msra.mxu0 0.0
    %1809 = vmatprep.subr.mxu0 0.0
    %1810 = vmatpush1.msra.mxu0 0.0
    %1811 = vmatprep.subr.mxu0 0.0
    %1812 = vmatpush1.msra.mxu0 0.0
    %1813 = vmatprep.mubr.f32.mxu0 0.0
    %1814 = vmatmul.mubr.f32.gmra.mrb[0].mxu0 %v521
    %v1815 = vpop.f32.mrb[0].mxu0
    %v1816 = vadd.f32 0.0, %v1815
    %v1817 = vpop.f32.mrb[0].mxu0
    %1818 = vmatprep.mubr.f32.mxu0 0.0
    %1819 = vmatmul.mubr.f32.gmra.mrb[0].mxu0 %v524
    %v1820 = vpop.f32.mrb[0].mxu0
    %v1821 = vadd.f32 0.0, %v1820
    %v1822 = vpop.f32.mrb[0].mxu0
    %1823 = vmatprep.mubr.f32.mxu0 0.0
    %1824 = vmatmul.mubr.f32.gmra.mrb[0].mxu0 %v527
    %v1825 = vpop.f32.mrb[0].mxu0
    %v1826 = vadd.f32 0.0, %v1825
    %v1827 = vpop.f32.mrb[0].mxu0
    %1828 = vmatprep.mubr.f32.mxu0 0.0
    %1829 = vmatmul.mubr.f32.gmra.mrb[0].mxu0 %v530
    %v1830 = vpop.f32.mrb[0].mxu0
    %v1831 = vadd.f32 0.0, %v1830
    %v1832 = vpop.f32.mrb[0].mxu0
    %1833 = vmatprep.mubr.f32.mxu0 0.0
    %1834 = vmatmul.mubr.f32.gmra.mrb[0].mxu0 %v533
    %v1835 = vpop.f32.mrb[0].mxu0
    %v1836 = vadd.f32 0.0, %v1835
    %v1837 = vpop.f32.mrb[0].mxu0
    %1838 = vmatprep.mubr.f32.mxu0 0.0
    %1839 = vmatmul.mubr.f32.gmra.mrb[0].mxu0 %v536
    %v1840 = vpop.f32.mrb[0].mxu0
    %v1841 = vadd.f32 0.0, %v1840
    %v1842 = vpop.f32.mrb[0].mxu0
    %1843 = vmatprep.mubr.f32.mxu0 0.0
    %1844 = vmatmul.mubr.f32.gmra.mrb[0].mxu0 %v539
    %v1845 = vpop.f32.mrb[0].mxu0
    %v1846 = vadd.f32 0.0, %v1845
    %v1847 = vpop.f32.mrb[0].mxu0
    %1848 = vmatprep.mubr.f32.mxu0 0.0
    %1849 = vmatmul.mubr.f32.gmra.mrb[0].mxu0 %v542
    %v1850 = vpop.f32.mrb[0].mxu0
    %v1851 = vadd.f32 0.0, %v1850
    %v1852 = vpop.f32.mrb[0].mxu0
    %1853 = vmatprep.mubr.f32.mxu0 0.0
    %1854 = vmatmul.mubr.f32.gmra.mrb[0].mxu0 %v545
    %v1855 = vpop.f32.mrb[0].mxu0
    %v1856 = vadd.f32 0.0, %v1855
    %v1857 = vpop.f32.mrb[0].mxu0
    %1858 = vdwg.mxu0
    %v1859 = vmul.f32 %v1816, %v210
    %v1860 = vmul.f32 %v1821, %v211
    %v1861 = vmul.f32 %v1826, %v212
    %v1862 = vmul.f32 %v1831, %v213
    %v1863 = vmul.f32 %v1836, %v214
    %v1864 = vmul.f32 %v1841, %v215
    %v1865 = vmul.f32 %v1846, %v216
    %v1866 = vmul.f32 %v1851, %v217
    %v1867 = vmul.f32 %v1856, %v218
    %1870 = vrot.lane.b32.xlu0 %v1733, 96
    %v1871 = vpop.permute.xlu0 %1870
    %1872 = vrot.lane.b32.xlu0 %v1738, 96
    %v1873 = vpop.permute.xlu0 %1872
    %1874 = vrot.lane.b32.xlu0 %v1743, 96
    %v1875 = vpop.permute.xlu0 %1874
    %v1877 = vsel %vm358, %v1859, 0
    %v1880 = vsel %vm358, %v1860, 0
    %v1883 = vsel %vm358, %v1861, 0
    %v1886 = vsel %vm358, %v1862, 0
    %v1889 = vsel %vm358, %v1863, 0
    %v1892 = vsel %vm358, %v1864, 0
    %v1895 = vsel %vm358, %v1865, 0
    %v1898 = vsel %vm358, %v1866, 0
    %v1901 = vsel %vm358, %v1867, 0
    %v1903 = vsel %vm358, %v1871, 0
    %v1905 = vsel %vm358, %v1873, 0
    %v1907 = vsel %vm358, %v1875, 0
    %1909 = vmatprep.subr.mxu0 0.0
    %1910 = vmatpush1.xpose.msra.mxu0 %v1903
    %1911 = vmatprep.subr.mxu0 0.0
    %1912 = vmatpush1.xpose.msra.mxu0 %v1905
    %1913 = vmatprep.subr.mxu0 0.0
    %1914 = vmatpush1.xpose.msra.mxu0 %v1907
    %1915 = vmatprep.subr.mxu0 0.0
    %1916 = vmatpush1.xpose.msra.mxu0 0.0
    %1917 = vmatprep.subr.mxu0 0.0
    %1918 = vmatpush1.xpose.msra.mxu0 0.0
    %1919 = vmatprep.subr.mxu0 0.0
    %1920 = vmatpush1.xpose.msra.mxu0 0.0
    %1921 = vmatprep.subr.mxu0 0.0
    %1922 = vmatpush1.xpose.msra.mxu0 0.0
    %1923 = vmatprep.subr.mxu0 0.0
    %1924 = vmatpush1.xpose.msra.mxu0 0.0
    %1925 = vmatprep.subr.mxu0 0.0
    %1926 = vmatpush1.xpose.msra.mxu0 0.0
    %1927 = vmatprep.subr.mxu0 0.0
    %1928 = vmatpush1.xpose.msra.mxu0 0.0
    %1929 = vmatprep.subr.mxu0 0.0
    %1930 = vmatpush1.xpose.msra.mxu0 0.0
    %1931 = vmatprep.subr.mxu0 0.0
    %1932 = vmatpush1.xpose.msra.mxu0 0.0
    %1933 = vmatprep.subr.mxu0 0.0
    %1934 = vmatpush1.xpose.msra.mxu0 0.0
    %1935 = vmatprep.subr.mxu0 0.0
    %1936 = vmatpush1.xpose.msra.mxu0 0.0
    %1937 = vmatprep.subr.mxu0 0.0
    %1938 = vmatpush1.xpose.msra.mxu0 0.0
    %1939 = vmatprep.subr.mxu0 0.0
    %1940 = vmatpush1.xpose.msra.mxu0 0.0
    %1941 = vmatprep.subr.mxu0 0.0
    %1942 = vmatpush1.xpose.msra.mxu0 0.0
    %1943 = vmatprep.subr.mxu0 0.0
    %1944 = vmatpush1.xpose.msra.mxu0 0.0
    %1945 = vmatprep.subr.mxu0 0.0
    %1946 = vmatpush1.xpose.msra.mxu0 0.0
    %1947 = vmatprep.subr.mxu0 0.0
    %1948 = vmatpush1.xpose.msra.mxu0 0.0
    %1949 = vmatprep.subr.mxu0 0.0
    %1950 = vmatpush1.xpose.msra.mxu0 0.0
    %1951 = vmatprep.subr.mxu0 0.0
    %1952 = vmatpush1.xpose.msra.mxu0 0.0
    %1953 = vmatprep.subr.mxu0 0.0
    %1954 = vmatpush1.xpose.msra.mxu0 0.0
    %1955 = vmatprep.subr.mxu0 0.0
    %1956 = vmatpush1.xpose.msra.mxu0 0.0
    %1957 = vmatprep.subr.mxu0 0.0
    %1958 = vmatpush1.xpose.msra.mxu0 0.0
    %1959 = vmatprep.subr.mxu0 0.0
    %1960 = vmatpush1.xpose.msra.mxu0 0.0
    %1961 = vmatprep.subr.mxu0 0.0
    %1962 = vmatpush1.xpose.msra.mxu0 0.0
    %1963 = vmatprep.subr.mxu0 0.0
    %1964 = vmatpush1.xpose.msra.mxu0 0.0
    %1965 = vmatprep.subr.mxu0 0.0
    %1966 = vmatpush1.xpose.msra.mxu0 0.0
    %1967 = vmatprep.subr.mxu0 0.0
    %1968 = vmatpush1.xpose.msra.mxu0 0.0
    %1969 = vmatprep.subr.mxu0 0.0
    %1970 = vmatpush1.xpose.msra.mxu0 0.0
    %1971 = vmatprep.subr.mxu0 0.0
    %1972 = vmatpush1.xpose.msra.mxu0 0.0
    %1973 = vmatprep.mubr.f32.mxu0 0.0
    %1974 = vmatmul.mubr.f32.gmra.mrb[0].mxu0 %v1877
    %v1975 = vpop.f32.mrb[0].mxu0
    %v1976 = vadd.f32 %v219, %v1975
    %v1977 = vpop.f32.mrb[0].mxu0
    %1978 = vmatprep.mubr.f32.mxu0 0.0
    %1979 = vmatmul.mubr.f32.gmra.mrb[0].mxu0 %v1880
    %v1980 = vpop.f32.mrb[0].mxu0
    %v1981 = vadd.f32 %v220, %v1980
    %v1982 = vpop.f32.mrb[0].mxu0
    %1983 = vmatprep.mubr.f32.mxu0 0.0
    %1984 = vmatmul.mubr.f32.gmra.mrb[0].mxu0 %v1883
    %v1985 = vpop.f32.mrb[0].mxu0
    %v1986 = vadd.f32 %v221, %v1985
    %v1987 = vpop.f32.mrb[0].mxu0
    %1988 = vmatprep.mubr.f32.mxu0 0.0
    %1989 = vmatmul.mubr.f32.gmra.mrb[0].mxu0 %v1886
    %v1990 = vpop.f32.mrb[0].mxu0
    %v1991 = vadd.f32 %v222, %v1990
    %v1992 = vpop.f32.mrb[0].mxu0
    %1993 = vmatprep.mubr.f32.mxu0 0.0
    %1994 = vmatmul.mubr.f32.gmra.mrb[0].mxu0 %v1889
    %v1995 = vpop.f32.mrb[0].mxu0
    %v1996 = vadd.f32 %v223, %v1995
    %v1997 = vpop.f32.mrb[0].mxu0
    %1998 = vmatprep.mubr.f32.mxu0 0.0
    %1999 = vmatmul.mubr.f32.gmra.mrb[0].mxu0 %v1892
    %v2000 = vpop.f32.mrb[0].mxu0
    %v2001 = vadd.f32 %v224, %v2000
    %v2002 = vpop.f32.mrb[0].mxu0
    %2003 = vmatprep.mubr.f32.mxu0 0.0
    %2004 = vmatmul.mubr.f32.gmra.mrb[0].mxu0 %v1895
    %v2005 = vpop.f32.mrb[0].mxu0
    %v2006 = vadd.f32 %v225, %v2005
    %v2007 = vpop.f32.mrb[0].mxu0
    %2008 = vmatprep.mubr.f32.mxu0 0.0
    %2009 = vmatmul.mubr.f32.gmra.mrb[0].mxu0 %v1898
    %v2010 = vpop.f32.mrb[0].mxu0
    %v2011 = vadd.f32 %v226, %v2010
    %v2012 = vpop.f32.mrb[0].mxu0
    %2013 = vmatprep.mubr.f32.mxu0 0.0
    %2014 = vmatmul.mubr.f32.gmra.mrb[0].mxu0 %v1901
    %v2015 = vpop.f32.mrb[0].mxu0
    %v2016 = vadd.f32 %v227, %v2015
    %v2017 = vpop.f32.mrb[0].mxu0
    %2018 = vdwg.mxu0
    %v2019 = vsel %vm519, %v1976, -inf
    %2020 = vmax.xlane.f32.xlu0 %v2019
    %v2021 = vpop.xlane.xlu0 %2020
    %v2022 = vsel %vm519, %v1981, -inf
    %2023 = vmax.xlane.f32.xlu0 %v2022
    %v2024 = vpop.xlane.xlu0 %2023
    %v2025 = vsel %vm519, %v1986, -inf
    %2026 = vmax.xlane.f32.xlu0 %v2025
    %v2027 = vpop.xlane.xlu0 %2026
    %v2028 = vsel %vm519, %v1991, -inf
    %2029 = vmax.xlane.f32.xlu0 %v2028
    %v2030 = vpop.xlane.xlu0 %2029
    %v2031 = vsel %vm519, %v1996, -inf
    %2032 = vmax.xlane.f32.xlu0 %v2031
    %v2033 = vpop.xlane.xlu0 %2032
    %v2034 = vsel %vm519, %v2001, -inf
    %2035 = vmax.xlane.f32.xlu0 %v2034
    %v2036 = vpop.xlane.xlu0 %2035
    %v2037 = vsel %vm519, %v2006, -inf
    %2038 = vmax.xlane.f32.xlu0 %v2037
    %v2039 = vpop.xlane.xlu0 %2038
    %v2040 = vsel %vm519, %v2011, -inf
    %2041 = vmax.xlane.f32.xlu0 %v2040
    %v2042 = vpop.xlane.xlu0 %2041
    %v2043 = vsel %vm519, %v2016, -inf
    %2044 = vmax.xlane.f32.xlu0 %v2043
    %v2045 = vpop.xlane.xlu0 %2044
    %v2046 = vsub.f32 %v1976, %v2021
    %v2047 = vsub.f32 %v1981, %v2024
    %v2048 = vsub.f32 %v1986, %v2027
    %v2049 = vsub.f32 %v1991, %v2030
    %v2050 = vsub.f32 %v1996, %v2033
    %v2051 = vsub.f32 %v2001, %v2036
    %v2052 = vsub.f32 %v2006, %v2039
    %v2053 = vsub.f32 %v2011, %v2042
    %v2054 = vsub.f32 %v2016, %v2045
    %v2055 = vmul.f32 %v2046, 1.442695
    %v2056 = vpow.pop %v2055
    %v2057 = vmul.f32 %v2047, 1.442695
    %v2058 = vpow.pop %v2057
    %v2059 = vmul.f32 %v2048, 1.442695
    %v2060 = vpow.pop %v2059
    %v2061 = vmul.f32 %v2049, 1.442695
    %v2062 = vpow.pop %v2061
    %v2063 = vmul.f32 %v2050, 1.442695
    %v2064 = vpow.pop %v2063
    %v2065 = vmul.f32 %v2051, 1.442695
    %v2066 = vpow.pop %v2065
    %v2067 = vmul.f32 %v2052, 1.442695
    %v2068 = vpow.pop %v2067
    %v2069 = vmul.f32 %v2053, 1.442695
    %v2070 = vpow.pop %v2069
    %v2071 = vmul.f32 %v2054, 1.442695
    %v2072 = vpow.pop %v2071
    %v2073 = vsel %vm519, %v2056, 0.0
    %2074 = vadd.xlane.f32.xlu0 %v2073
    %v2075 = vpop.xlane.xlu0 %2074
    %v2076 = vsel %vm519, %v2058, 0.0
    %2077 = vadd.xlane.f32.xlu0 %v2076
    %v2078 = vpop.xlane.xlu0 %2077
    %v2079 = vsel %vm519, %v2060, 0.0
    %2080 = vadd.xlane.f32.xlu0 %v2079
    %v2081 = vpop.xlane.xlu0 %2080
    %v2082 = vsel %vm519, %v2062, 0.0
    %2083 = vadd.xlane.f32.xlu0 %v2082
    %v2084 = vpop.xlane.xlu0 %2083
    %v2085 = vsel %vm519, %v2064, 0.0
    %2086 = vadd.xlane.f32.xlu0 %v2085
    %v2087 = vpop.xlane.xlu0 %2086
    %v2088 = vsel %vm519, %v2066, 0.0
    %2089 = vadd.xlane.f32.xlu0 %v2088
    %v2090 = vpop.xlane.xlu0 %2089
    %v2091 = vsel %vm519, %v2068, 0.0
    %2092 = vadd.xlane.f32.xlu0 %v2091
    %v2093 = vpop.xlane.xlu0 %2092
    %v2094 = vsel %vm519, %v2070, 0.0
    %2095 = vadd.xlane.f32.xlu0 %v2094
    %v2096 = vpop.xlane.xlu0 %2095
    %v2097 = vsel %vm519, %v2072, 0.0
    %2098 = vadd.xlane.f32.xlu0 %v2097
    %v2099 = vpop.xlane.xlu0 %2098
    %v2100 = vrcp.pop %v2075
    %v2101 = vrcp.pop %v2078
    %v2102 = vrcp.pop %v2081
    %v2103 = vrcp.pop %v2084
    %v2104 = vrcp.pop %v2087
    %v2105 = vrcp.pop %v2090
    %v2106 = vrcp.pop %v2093
    %v2107 = vrcp.pop %v2096
    %v2108 = vrcp.pop %v2099
    %v2109 = vmul.f32 %v2056, %v2100
    %v2110 = vmul.f32 %v2058, %v2101
    %v2111 = vmul.f32 %v2060, %v2102
    %v2112 = vmul.f32 %v2062, %v2103
    %v2113 = vmul.f32 %v2064, %v2104
    %v2114 = vmul.f32 %v2066, %v2105
    %v2115 = vmul.f32 %v2068, %v2106
    %v2116 = vmul.f32 %v2070, %v2107
    %v2117 = vmul.f32 %v2072, %v2108
    %2118 = vrot.lane.b32.xlu0 %v1733, 64
    %v2119 = vpop.permute.xlu0 %2118
    %2120 = vrot.lane.b32.xlu0 %v1738, 64
    %v2121 = vpop.permute.xlu0 %2120
    %2122 = vrot.lane.b32.xlu0 %v1743, 64
    %v2123 = vpop.permute.xlu0 %2122
    %v2127 = vsel %vm519, %v2109, 0
    %v2130 = vsel %vm519, %v2110, 0
    %v2133 = vsel %vm519, %v2111, 0
    %v2136 = vsel %vm519, %v2112, 0
    %v2139 = vsel %vm519, %v2113, 0
    %v2142 = vsel %vm519, %v2114, 0
    %v2145 = vsel %vm519, %v2115, 0
    %v2148 = vsel %vm519, %v2116, 0
    %v2151 = vsel %vm519, %v2117, 0
    %v2153 = vsel %vm547, %v2123, 0
    %2155 = vmatprep.subr.mxu0 0.0
    %2156 = vmatpush1.msra.mxu0 %v2119
    %2157 = vmatprep.subr.mxu0 0.0
    %2158 = vmatpush1.msra.mxu0 %v2121
    %2159 = vmatprep.subr.mxu0 0.0
    %2160 = vmatpush1.msra.mxu0 %v2153
    %2161 = vmatprep.subr.mxu0 0.0
    %2162 = vmatpush1.msra.mxu0 0.0
    %2163 = vmatprep.subr.mxu0 0.0
    %2164 = vmatpush1.msra.mxu0 0.0
    %2165 = vmatprep.subr.mxu0 0.0
    %2166 = vmatpush1.msra.mxu0 0.0
    %2167 = vmatprep.subr.mxu0 0.0
    %2168 = vmatpush1.msra.mxu0 0.0
    %2169 = vmatprep.subr.mxu0 0.0
    %2170 = vmatpush1.msra.mxu0 0.0
    %2171 = vmatprep.subr.mxu0 0.0
    %2172 = vmatpush1.msra.mxu0 0.0
    %2173 = vmatprep.subr.mxu0 0.0
    %2174 = vmatpush1.msra.mxu0 0.0
    %2175 = vmatprep.subr.mxu0 0.0
    %2176 = vmatpush1.msra.mxu0 0.0
    %2177 = vmatprep.subr.mxu0 0.0
    %2178 = vmatpush1.msra.mxu0 0.0
    %2179 = vmatprep.subr.mxu0 0.0
    %2180 = vmatpush1.msra.mxu0 0.0
    %2181 = vmatprep.subr.mxu0 0.0
    %2182 = vmatpush1.msra.mxu0 0.0
    %2183 = vmatprep.subr.mxu0 0.0
    %2184 = vmatpush1.msra.mxu0 0.0
    %2185 = vmatprep.subr.mxu0 0.0
    %2186 = vmatpush1.msra.mxu0 0.0
    %2187 = vmatprep.subr.mxu0 0.0
    %2188 = vmatpush1.msra.mxu0 0.0
    %2189 = vmatprep.subr.mxu0 0.0
    %2190 = vmatpush1.msra.mxu0 0.0
    %2191 = vmatprep.subr.mxu0 0.0
    %2192 = vmatpush1.msra.mxu0 0.0
    %2193 = vmatprep.subr.mxu0 0.0
    %2194 = vmatpush1.msra.mxu0 0.0
    %2195 = vmatprep.subr.mxu0 0.0
    %2196 = vmatpush1.msra.mxu0 0.0
    %2197 = vmatprep.subr.mxu0 0.0
    %2198 = vmatpush1.msra.mxu0 0.0
    %2199 = vmatprep.subr.mxu0 0.0
    %2200 = vmatpush1.msra.mxu0 0.0
    %2201 = vmatprep.subr.mxu0 0.0
    %2202 = vmatpush1.msra.mxu0 0.0
    %2203 = vmatprep.subr.mxu0 0.0
    %2204 = vmatpush1.msra.mxu0 0.0
    %2205 = vmatprep.subr.mxu0 0.0
    %2206 = vmatpush1.msra.mxu0 0.0
    %2207 = vmatprep.subr.mxu0 0.0
    %2208 = vmatpush1.msra.mxu0 0.0
    %2209 = vmatprep.subr.mxu0 0.0
    %2210 = vmatpush1.msra.mxu0 0.0
    %2211 = vmatprep.subr.mxu0 0.0
    %2212 = vmatpush1.msra.mxu0 0.0
    %2213 = vmatprep.subr.mxu0 0.0
    %2214 = vmatpush1.msra.mxu0 0.0
    %2215 = vmatprep.subr.mxu0 0.0
    %2216 = vmatpush1.msra.mxu0 0.0
    %2217 = vmatprep.subr.mxu0 0.0
    %2218 = vmatpush1.msra.mxu0 0.0
    %2219 = vmatprep.mubr.f32.mxu0 0.0
    %2220 = vmatmul.mubr.f32.gmra.mrb[0].mxu0 %v2127
    %v2221 = vpop.f32.mrb[0].mxu0
    %v2222 = vadd.f32 0.0, %v2221
    %v2223 = vpop.f32.mrb[0].mxu0
    %2224 = vmatprep.mubr.f32.mxu0 0.0
    %2225 = vmatmul.mubr.f32.gmra.mrb[0].mxu0 %v2130
    %v2226 = vpop.f32.mrb[0].mxu0
    %v2227 = vadd.f32 0.0, %v2226
    %v2228 = vpop.f32.mrb[0].mxu0
    %2229 = vmatprep.mubr.f32.mxu0 0.0
    %2230 = vmatmul.mubr.f32.gmra.mrb[0].mxu0 %v2133
    %v2231 = vpop.f32.mrb[0].mxu0
    %v2232 = vadd.f32 0.0, %v2231
    %v2233 = vpop.f32.mrb[0].mxu0
    %2234 = vmatprep.mubr.f32.mxu0 0.0
    %2235 = vmatmul.mubr.f32.gmra.mrb[0].mxu0 %v2136
    %v2236 = vpop.f32.mrb[0].mxu0
    %v2237 = vadd.f32 0.0, %v2236
    %v2238 = vpop.f32.mrb[0].mxu0
    %2239 = vmatprep.mubr.f32.mxu0 0.0
    %2240 = vmatmul.mubr.f32.gmra.mrb[0].mxu0 %v2139
    %v2241 = vpop.f32.mrb[0].mxu0
    %v2242 = vadd.f32 0.0, %v2241
    %v2243 = vpop.f32.mrb[0].mxu0
    %2244 = vmatprep.mubr.f32.mxu0 0.0
    %2245 = vmatmul.mubr.f32.gmra.mrb[0].mxu0 %v2142
    %v2246 = vpop.f32.mrb[0].mxu0
    %v2247 = vadd.f32 0.0, %v2246
    %v2248 = vpop.f32.mrb[0].mxu0
    %2249 = vmatprep.mubr.f32.mxu0 0.0
    %2250 = vmatmul.mubr.f32.gmra.mrb[0].mxu0 %v2145
    %v2251 = vpop.f32.mrb[0].mxu0
    %v2252 = vadd.f32 0.0, %v2251
    %v2253 = vpop.f32.mrb[0].mxu0
    %2254 = vmatprep.mubr.f32.mxu0 0.0
    %2255 = vmatmul.mubr.f32.gmra.mrb[0].mxu0 %v2148
    %v2256 = vpop.f32.mrb[0].mxu0
    %v2257 = vadd.f32 0.0, %v2256
    %v2258 = vpop.f32.mrb[0].mxu0
    %2259 = vmatprep.mubr.f32.mxu0 0.0
    %2260 = vmatmul.mubr.f32.gmra.mrb[0].mxu0 %v2151
    %v2261 = vpop.f32.mrb[0].mxu0
    %v2262 = vadd.f32 0.0, %v2261
    %v2263 = vpop.f32.mrb[0].mxu0
    %2264 = vdwg.mxu0
    %v2265 = vmul.f32 %v2222, %v210
    %v2266 = vmul.f32 %v2227, %v211
    %v2267 = vmul.f32 %v2232, %v212
    %v2268 = vmul.f32 %v2237, %v213
    %v2269 = vmul.f32 %v2242, %v214
    %v2270 = vmul.f32 %v2247, %v215
    %v2271 = vmul.f32 %v2252, %v216
    %v2272 = vmul.f32 %v2257, %v217
    %v2273 = vmul.f32 %v2262, %v218
    %2274 = vmatprep.subr.mxu0 0.0
    %2275 = vmatpush1.msra.mxu0 %v2265
    %2276 = vmatprep.subr.mxu0 0.0
    %2277 = vmatpush1.msra.mxu0 %v2266
    %2278 = vmatprep.subr.mxu0 0.0
    %2279 = vmatpush1.msra.mxu0 %v2267
    %2280 = vmatprep.subr.mxu0 0.0
    %2281 = vmatpush1.msra.mxu0 %v2268
    %2282 = vmatprep.subr.mxu0 0.0
    %2283 = vmatpush1.msra.mxu0 %v2269
    %2284 = vmatprep.subr.mxu0 0.0
    %2285 = vmatpush1.msra.mxu0 %v2270
    %2286 = vmatprep.subr.mxu0 0.0
    %2287 = vmatpush1.msra.mxu0 %v2271
    %2288 = vmatprep.subr.mxu0 0.0
    %2289 = vmatpush1.msra.mxu0 %v2272
    %2290 = vmatprep.subr.mxu0 0.0
    %2291 = vmatpush1.msra.mxu0 %v2273
    %2292 = vmatprep.subr.mxu0 0.0
    %2293 = vmatpush1.msra.mxu0 0.0
    %2294 = vmatprep.subr.mxu0 0.0
    %2295 = vmatpush1.msra.mxu0 0.0
    %2296 = vmatprep.subr.mxu0 0.0
    %2297 = vmatpush1.msra.mxu0 0.0
    %2298 = vmatprep.subr.mxu0 0.0
    %2299 = vmatpush1.msra.mxu0 0.0
    %2300 = vmatprep.subr.mxu0 0.0
    %2301 = vmatpush1.msra.mxu0 0.0
    %2302 = vmatprep.subr.mxu0 0.0
    %2303 = vmatpush1.msra.mxu0 0.0
    %2304 = vmatprep.subr.mxu0 0.0
    %2305 = vmatpush1.msra.mxu0 0.0
    %2306 = vmatprep.subr.mxu0 0.0
    %2307 = vmatpush1.msra.mxu0 0.0
    %2308 = vmatprep.subr.mxu0 0.0
    %2309 = vmatpush1.msra.mxu0 0.0
    %2310 = vmatprep.subr.mxu0 0.0
    %2311 = vmatpush1.msra.mxu0 0.0
    %2312 = vmatprep.subr.mxu0 0.0
    %2313 = vmatpush1.msra.mxu0 0.0
    %2314 = vmatprep.subr.mxu0 0.0
    %2315 = vmatpush1.msra.mxu0 0.0
    %2316 = vmatprep.subr.mxu0 0.0
    %2317 = vmatpush1.msra.mxu0 0.0
    %2318 = vmatprep.subr.mxu0 0.0
    %2319 = vmatpush1.msra.mxu0 0.0
    %2320 = vmatprep.subr.mxu0 0.0
    %2321 = vmatpush1.msra.mxu0 0.0
    %2322 = vmatprep.subr.mxu0 0.0
    %2323 = vmatpush1.msra.mxu0 0.0
    %2324 = vmatprep.subr.mxu0 0.0
    %2325 = vmatpush1.msra.mxu0 0.0
    %2326 = vmatprep.subr.mxu0 0.0
    %2327 = vmatpush1.msra.mxu0 0.0
    %2328 = vmatprep.subr.mxu0 0.0
    %2329 = vmatpush1.msra.mxu0 0.0
    %2330 = vmatprep.subr.mxu0 0.0
    %2331 = vmatpush1.msra.mxu0 0.0
    %2332 = vmatprep.subr.mxu0 0.0
    %2333 = vmatpush1.msra.mxu0 0.0
    %2334 = vmatprep.subr.mxu0 0.0
    %2335 = vmatpush1.msra.mxu0 0.0
    %2336 = vmatprep.subr.mxu0 0.0
    %2337 = vmatpush1.msra.mxu0 0.0
    %2338 = vmatprep.mubr.f32.mxu0 0.0
    %2339 = vmatmul.mubr.f32.gmra.mrb[0].mxu0 %v1078
    %v2340 = vpop.f32.mrb[0].mxu0
    %v2341 = vadd.f32 0.0, %v2340
    %v2342 = vpop.f32.mrb[0].mxu0
    %2343 = vmatprep.mubr.f32.mxu0 0.0
    %2344 = vmatmul.mubr.f32.gmra.mrb[0].mxu0 %v1081
    %v2345 = vpop.f32.mrb[0].mxu0
    %v2346 = vadd.f32 0.0, %v2345
    %v2347 = vpop.f32.mrb[0].mxu0
    %2348 = vmatprep.mubr.f32.mxu0 0.0
    %2349 = vmatmul.mubr.f32.gmra.mrb[0].mxu0 %v1084
    %v2350 = vpop.f32.mrb[0].mxu0
    %v2351 = vadd.f32 0.0, %v2350
    %v2352 = vpop.f32.mrb[0].mxu0
    %2353 = vdwg.mxu0
    %v2355 = vlaneseq
    %v2356 = vshrl.u32 %v2355, 7
    %v2357 = vsub.s32 0, %v2356
    %v2358 = vrot.slane %v1565, %v2357
    %v2361 = vsel %vm358, %v2341, 0
    %v2364 = vsel %vm358, %v2346, 0
    %v2367 = vsel %vm358, %v2351, 0
    %2369 = vmatprep.subr.mxu0 0.0
    %2370 = vmatpush1.msra.mxu0 %v1560
    %2371 = vmatprep.subr.mxu0 0.0
    %2372 = vmatpush1.msra.mxu0 %v1561
    %2373 = vmatprep.subr.mxu0 0.0
    %2374 = vmatpush1.msra.mxu0 %v1562
    %2375 = vmatprep.subr.mxu0 0.0
    %2376 = vmatpush1.msra.mxu0 %v1563
    %2377 = vmatprep.subr.mxu0 0.0
    %2378 = vmatpush1.msra.mxu0 0.0
    %2379 = vmatprep.subr.mxu0 0.0
    %2380 = vmatpush1.msra.mxu0 0.0
    %2381 = vmatprep.subr.mxu0 0.0
    %2382 = vmatpush1.msra.mxu0 0.0
    %2383 = vmatprep.subr.mxu0 0.0
    %2384 = vmatpush1.msra.mxu0 0.0
    %2385 = vmatprep.subr.mxu0 0.0
    %2386 = vmatpush1.msra.mxu0 0.0
    %2387 = vmatprep.subr.mxu0 0.0
    %2388 = vmatpush1.msra.mxu0 0.0
    %2389 = vmatprep.subr.mxu0 0.0
    %2390 = vmatpush1.msra.mxu0 0.0
    %2391 = vmatprep.subr.mxu0 0.0
    %2392 = vmatpush1.msra.mxu0 0.0
    %2393 = vmatprep.subr.mxu0 0.0
    %2394 = vmatpush1.msra.mxu0 0.0
    %2395 = vmatprep.subr.mxu0 0.0
    %2396 = vmatpush1.msra.mxu0 0.0
    %2397 = vmatprep.subr.mxu0 0.0
    %2398 = vmatpush1.msra.mxu0 0.0
    %2399 = vmatprep.subr.mxu0 0.0
    %2400 = vmatpush1.msra.mxu0 0.0
    %2401 = vmatprep.subr.mxu0 0.0
    %2402 = vmatpush1.msra.mxu0 0.0
    %2403 = vmatprep.subr.mxu0 0.0
    %2404 = vmatpush1.msra.mxu0 0.0
    %2405 = vmatprep.subr.mxu0 0.0
    %2406 = vmatpush1.msra.mxu0 0.0
    %2407 = vmatprep.subr.mxu0 0.0
    %2408 = vmatpush1.msra.mxu0 0.0
    %2409 = vmatprep.subr.mxu0 0.0
    %2410 = vmatpush1.msra.mxu0 0.0
    %2411 = vmatprep.subr.mxu0 0.0
    %2412 = vmatpush1.msra.mxu0 0.0
    %2413 = vmatprep.subr.mxu0 0.0
    %2414 = vmatpush1.msra.mxu0 0.0
    %2415 = vmatprep.subr.mxu0 0.0
    %2416 = vmatpush1.msra.mxu0 0.0
    %2417 = vmatprep.subr.mxu0 0.0
    %2418 = vmatpush1.msra.mxu0 0.0
    %2419 = vmatprep.subr.mxu0 0.0
    %2420 = vmatpush1.msra.mxu0 0.0
    %2421 = vmatprep.subr.mxu0 0.0
    %2422 = vmatpush1.msra.mxu0 0.0
    %2423 = vmatprep.subr.mxu0 0.0
    %2424 = vmatpush1.msra.mxu0 0.0
    %2425 = vmatprep.subr.mxu0 0.0
    %2426 = vmatpush1.msra.mxu0 0.0
    %2427 = vmatprep.subr.mxu0 0.0
    %2428 = vmatpush1.msra.mxu0 0.0
    %2429 = vmatprep.subr.mxu0 0.0
    %2430 = vmatpush1.msra.mxu0 0.0
    %2431 = vmatprep.subr.mxu0 0.0
    %2432 = vmatpush1.msra.mxu0 0.0
    %2433 = vmatprep.mubr.f32.mxu0 0.0
    %2434 = vmatmul.mubr.f32.gmra.mrb[0].mxu0 %v2361
    %v2435 = vpop.f32.mrb[0].mxu0
    %v2436 = vadd.f32 %v2358, %v2435
    %v2437 = vpop.f32.mrb[0].mxu0
    %2438 = vmatprep.mubr.f32.mxu0 0.0
    %2439 = vmatmul.mubr.f32.gmra.mrb[0].mxu0 %v2364
    %v2440 = vpop.f32.mrb[0].mxu0
    %v2441 = vadd.f32 %v2358, %v2440
    %v2442 = vpop.f32.mrb[0].mxu0
    %2443 = vmatprep.mubr.f32.mxu0 0.0
    %2444 = vmatmul.mubr.f32.gmra.mrb[0].mxu0 %v2367
    %v2445 = vpop.f32.mrb[0].mxu0
    %v2446 = vadd.f32 %v2358, %v2445
    %v2447 = vpop.f32.mrb[0].mxu0
    %2448 = vdwg.mxu0
    %v2449 = vadd.f32 %v1545, %v2436
    %v2450 = vadd.f32 %v1546, %v2441
    %v2451 = vadd.f32 %v1547, %v2446
    %v2452 = vsel %vm358, %v2449, 0.0
    %2453 = vadd.xlane.f32.xlu0 %v2452
    %v2454 = vpop.xlane.xlu0 %2453
    %v2455 = vsel %vm358, %v2450, 0.0
    %2456 = vadd.xlane.f32.xlu0 %v2455
    %v2457 = vpop.xlane.xlu0 %2456
    %v2458 = vsel %vm365, %v2451, 0.0
    %2459 = vadd.xlane.f32.xlu0 %v2458
    %v2460 = vpop.xlane.xlu0 %2459
    %v2461 = vmul.f32 %v2454, %v369
    %v2462 = vmul.f32 %v2457, %v369
    %v2463 = vmul.f32 %v2460, %v369
    %v2464 = vmul.f32 %v2449, %v2449
    %v2465 = vmul.f32 %v2450, %v2450
    %v2466 = vmul.f32 %v2451, %v2451
    %v2467 = vsel %vm358, %v2464, 0.0
    %2468 = vadd.xlane.f32.xlu0 %v2467
    %v2469 = vpop.xlane.xlu0 %2468
    %v2470 = vsel %vm358, %v2465, 0.0
    %2471 = vadd.xlane.f32.xlu0 %v2470
    %v2472 = vpop.xlane.xlu0 %2471
    %v2473 = vsel %vm365, %v2466, 0.0
    %2474 = vadd.xlane.f32.xlu0 %v2473
    %v2475 = vpop.xlane.xlu0 %2474
    %v2476 = vmul.f32 %v2469, %v369
    %v2477 = vmul.f32 %v2472, %v369
    %v2478 = vmul.f32 %v2475, %v369
    %v2479 = vmul.f32 %v2461, %v2461
    %v2480 = vmul.f32 %v2462, %v2462
    %v2481 = vmul.f32 %v2463, %v2463
    %v2482 = vsub.f32 %v2476, %v2479
    %v2483 = vsub.f32 %v2477, %v2480
    %v2484 = vsub.f32 %v2478, %v2481
    %v2485 = vadd.f32 %v2482, 1e-05
    %v2486 = vadd.f32 %v2483, 1e-05
    %v2487 = vadd.f32 %v2484, 1e-05
    %v2488 = vrsqrt.pop %v2485
    %v2489 = vrsqrt.pop %v2486
    %v2490 = vrsqrt.pop %v2487
    %v2491 = vsub.f32 %v2449, %v2461
    %v2492 = vsub.f32 %v2450, %v2462
    %v2493 = vsub.f32 %v2451, %v2463
    %v2494 = vmul.f32 %v2491, %v2488
    %v2495 = vmul.f32 %v2492, %v2489
    %v2496 = vmul.f32 %v2493, %v2490
    %v2498 = vlaneseq
    %v2499 = vshrl.u32 %v2498, 7
    %v2500 = vsub.s32 0, %v2499
    %v2501 = vrot.slane %v1567, %v2500
    %v2503 = vmul.f32 %v2494, %v2501
    %v2504 = vmul.f32 %v2495, %v2501
    %v2505 = vmul.f32 %v2496, %v2501
    %v2507 = vlaneseq
    %v2508 = vshrl.u32 %v2507, 7
    %v2509 = vsub.s32 0, %v2508
    %v2510 = vrot.slane %v1569, %v2509
    %v2512 = vadd.f32 %v2503, %v2510
    %v2513 = vadd.f32 %v2504, %v2510
    %v2514 = vadd.f32 %v2505, %v2510
    %v2516 = vlaneseq
    %v2517 = vshrl.u32 %v2516, 7
    %v2518 = vsub.s32 0, %v2517
    %v2519 = vrot.slane %v1576, %v2518
    %v2522 = vsel %vm358, %v2512, 0
    %v2525 = vsel %vm358, %v2513, 0
    %v2528 = vsel %vm358, %v2514, 0
    %2530 = vmatprep.subr.mxu0 0.0
    %2531 = vmatpush1.msra.mxu0 %v1571
    %2532 = vmatprep.subr.mxu0 0.0
    %2533 = vmatpush1.msra.mxu0 %v1572
    %2534 = vmatprep.subr.mxu0 0.0
    %2535 = vmatpush1.msra.mxu0 %v1573
    %2536 = vmatprep.subr.mxu0 0.0
    %2537 = vmatpush1.msra.mxu0 %v1574
    %2538 = vmatprep.subr.mxu0 0.0
    %2539 = vmatpush1.msra.mxu0 0.0
    %2540 = vmatprep.subr.mxu0 0.0
    %2541 = vmatpush1.msra.mxu0 0.0
    %2542 = vmatprep.subr.mxu0 0.0
    %2543 = vmatpush1.msra.mxu0 0.0
    %2544 = vmatprep.subr.mxu0 0.0
    %2545 = vmatpush1.msra.mxu0 0.0
    %2546 = vmatprep.subr.mxu0 0.0
    %2547 = vmatpush1.msra.mxu0 0.0
    %2548 = vmatprep.subr.mxu0 0.0
    %2549 = vmatpush1.msra.mxu0 0.0
    %2550 = vmatprep.subr.mxu0 0.0
    %2551 = vmatpush1.msra.mxu0 0.0
    %2552 = vmatprep.subr.mxu0 0.0
    %2553 = vmatpush1.msra.mxu0 0.0
    %2554 = vmatprep.subr.mxu0 0.0
    %2555 = vmatpush1.msra.mxu0 0.0
    %2556 = vmatprep.subr.mxu0 0.0
    %2557 = vmatpush1.msra.mxu0 0.0
    %2558 = vmatprep.subr.mxu0 0.0
    %2559 = vmatpush1.msra.mxu0 0.0
    %2560 = vmatprep.subr.mxu0 0.0
    %2561 = vmatpush1.msra.mxu0 0.0
    %2562 = vmatprep.subr.mxu0 0.0
    %2563 = vmatpush1.msra.mxu0 0.0
    %2564 = vmatprep.subr.mxu0 0.0
    %2565 = vmatpush1.msra.mxu0 0.0
    %2566 = vmatprep.subr.mxu0 0.0
    %2567 = vmatpush1.msra.mxu0 0.0
    %2568 = vmatprep.subr.mxu0 0.0
    %2569 = vmatpush1.msra.mxu0 0.0
    %2570 = vmatprep.subr.mxu0 0.0
    %2571 = vmatpush1.msra.mxu0 0.0
    %2572 = vmatprep.subr.mxu0 0.0
    %2573 = vmatpush1.msra.mxu0 0.0
    %2574 = vmatprep.subr.mxu0 0.0
    %2575 = vmatpush1.msra.mxu0 0.0
    %2576 = vmatprep.subr.mxu0 0.0
    %2577 = vmatpush1.msra.mxu0 0.0
    %2578 = vmatprep.subr.mxu0 0.0
    %2579 = vmatpush1.msra.mxu0 0.0
    %2580 = vmatprep.subr.mxu0 0.0
    %2581 = vmatpush1.msra.mxu0 0.0
    %2582 = vmatprep.subr.mxu0 0.0
    %2583 = vmatpush1.msra.mxu0 0.0
    %2584 = vmatprep.subr.mxu0 0.0
    %2585 = vmatpush1.msra.mxu0 0.0
    %2586 = vmatprep.subr.mxu0 0.0
    %2587 = vmatpush1.msra.mxu0 0.0
    %2588 = vmatprep.subr.mxu0 0.0
    %2589 = vmatpush1.msra.mxu0 0.0
    %2590 = vmatprep.subr.mxu0 0.0
    %2591 = vmatpush1.msra.mxu0 0.0
    %2592 = vmatprep.subr.mxu0 0.0
    %2593 = vmatpush1.msra.mxu0 0.0
    %2594 = vmatprep.mubr.f32.mxu0 0.0
    %2595 = vmatmul.mubr.f32.gmra.mrb[0].mxu0 %v2522
    %v2596 = vpop.f32.mrb[0].mxu0
    %v2597 = vadd.f32 %v2519, %v2596
    %v2598 = vpop.f32.mrb[0].mxu0
    %2599 = vmatprep.mubr.f32.mxu0 0.0
    %2600 = vmatmul.mubr.f32.gmra.mrb[0].mxu0 %v2525
    %v2601 = vpop.f32.mrb[0].mxu0
    %v2602 = vadd.f32 %v2519, %v2601
    %v2603 = vpop.f32.mrb[0].mxu0
    %2604 = vmatprep.mubr.f32.mxu0 0.0
    %2605 = vmatmul.mubr.f32.gmra.mrb[0].mxu0 %v2528
    %v2606 = vpop.f32.mrb[0].mxu0
    %v2607 = vadd.f32 %v2519, %v2606
    %v2608 = vpop.f32.mrb[0].mxu0
    %2609 = vdwg.mxu0
    %v2610 = vmul.f32 %v2597, %v2597
    %v2611 = vmul.f32 %v2602, %v2602
    %v2612 = vmul.f32 %v2607, %v2607
    %v2613 = vmul.f32 %v2597, %v2610
    %v2614 = vmul.f32 %v2602, %v2611
    %v2615 = vmul.f32 %v2607, %v2612
    %v2616 = vmul.f32 %v2613, 0.044715
    %v2617 = vmul.f32 %v2614, 0.044715
    %v2618 = vmul.f32 %v2615, 0.044715
    %v2619 = vadd.f32 %v2597, %v2616
    %v2620 = vadd.f32 %v2602, %v2617
    %v2621 = vadd.f32 %v2607, %v2618
    %v2622 = vmul.f32 %v2619, 0.7978846
    %v2623 = vmul.f32 %v2620, 0.7978846
    %v2624 = vmul.f32 %v2621, 0.7978846
    %v2625 = vtanh.pop %v2622
    %v2626 = vtanh.pop %v2623
    %v2627 = vtanh.pop %v2624
    %v2628 = vadd.f32 %v2625, 1.0
    %v2629 = vadd.f32 %v2626, 1.0
    %v2630 = vadd.f32 %v2627, 1.0
    %v2631 = vmul.f32 %v2628, 0.5
    %v2632 = vmul.f32 %v2629, 0.5
    %v2633 = vmul.f32 %v2630, 0.5
    %v2634 = vmul.f32 %v2597, %v2631
    %v2635 = vmul.f32 %v2602, %v2632
    %v2636 = vmul.f32 %v2607, %v2633
    %v2638 = vlaneseq
    %v2639 = vshrl.u32 %v2638, 7
    %v2640 = vsub.s32 0, %v2639
    %v2641 = vrot.slane %v1587, %v2640
    %v2644 = vsel %vm1455, %v2634, 0
    %v2647 = vsel %vm1455, %v2635, 0
    %v2650 = vsel %vm1455, %v2636, 0
    %2652 = vmatprep.subr.mxu0 0.0
    %2653 = vmatpush1.msra.mxu0 %v1578
    %2654 = vmatprep.subr.mxu0 0.0
    %2655 = vmatpush1.msra.mxu0 %v1579
    %2656 = vmatprep.subr.mxu0 0.0
    %2657 = vmatpush1.msra.mxu0 %v1580
    %2658 = vmatprep.subr.mxu0 0.0
    %2659 = vmatpush1.msra.mxu0 %v1581
    %2660 = vmatprep.subr.mxu0 0.0
    %2661 = vmatpush1.msra.mxu0 %v1582
    %2662 = vmatprep.subr.mxu0 0.0
    %2663 = vmatpush1.msra.mxu0 %v1583
    %2664 = vmatprep.subr.mxu0 0.0
    %2665 = vmatpush1.msra.mxu0 %v1584
    %2666 = vmatprep.subr.mxu0 0.0
    %2667 = vmatpush1.msra.mxu0 %v1585
    %2668 = vmatprep.subr.mxu0 0.0
    %2669 = vmatpush1.msra.mxu0 0.0
    %2670 = vmatprep.subr.mxu0 0.0
    %2671 = vmatpush1.msra.mxu0 0.0
    %2672 = vmatprep.subr.mxu0 0.0
    %2673 = vmatpush1.msra.mxu0 0.0
    %2674 = vmatprep.subr.mxu0 0.0
    %2675 = vmatpush1.msra.mxu0 0.0
    %2676 = vmatprep.subr.mxu0 0.0
    %2677 = vmatpush1.msra.mxu0 0.0
    %2678 = vmatprep.subr.mxu0 0.0
    %2679 = vmatpush1.msra.mxu0 0.0
    %2680 = vmatprep.subr.mxu0 0.0
    %2681 = vmatpush1.msra.mxu0 0.0
    %2682 = vmatprep.subr.mxu0 0.0
    %2683 = vmatpush1.msra.mxu0 0.0
    %2684 = vmatprep.subr.mxu0 0.0
    %2685 = vmatpush1.msra.mxu0 0.0
    %2686 = vmatprep.subr.mxu0 0.0
    %2687 = vmatpush1.msra.mxu0 0.0
    %2688 = vmatprep.subr.mxu0 0.0
    %2689 = vmatpush1.msra.mxu0 0.0
    %2690 = vmatprep.subr.mxu0 0.0
    %2691 = vmatpush1.msra.mxu0 0.0
    %2692 = vmatprep.subr.mxu0 0.0
    %2693 = vmatpush1.msra.mxu0 0.0
    %2694 = vmatprep.subr.mxu0 0.0
    %2695 = vmatpush1.msra.mxu0 0.0
    %2696 = vmatprep.subr.mxu0 0.0
    %2697 = vmatpush1.msra.mxu0 0.0
    %2698 = vmatprep.subr.mxu0 0.0
    %2699 = vmatpush1.msra.mxu0 0.0
    %2700 = vmatprep.subr.mxu0 0.0
    %2701 = vmatpush1.msra.mxu0 0.0
    %2702 = vmatprep.subr.mxu0 0.0
    %2703 = vmatpush1.msra.mxu0 0.0
    %2704 = vmatprep.subr.mxu0 0.0
    %2705 = vmatpush1.msra.mxu0 0.0
    %2706 = vmatprep.subr.mxu0 0.0
    %2707 = vmatpush1.msra.mxu0 0.0
    %2708 = vmatprep.subr.mxu0 0.0
    %2709 = vmatpush1.msra.mxu0 0.0
    %2710 = vmatprep.subr.mxu0 0.0
    %2711 = vmatpush1.msra.mxu0 0.0
    %2712 = vmatprep.subr.mxu0 0.0
    %2713 = vmatpush1.msra.mxu0 0.0
    %2714 = vmatprep.subr.mxu0 0.0
    %2715 = vmatpush1.msra.mxu0 0.0
    %2716 = vmatprep.mubr.f32.mxu0 0.0
    %2717 = vmatmul.mubr.f32.gmra.mrb[0].mxu0 %v2644
    %v2718 = vpop.f32.mrb[0].mxu0
    %v2719 = vadd.f32 %v2641, %v2718
    %v2720 = vpop.f32.mrb[0].mxu0
    %2721 = vmatprep.mubr.f32.mxu0 0.0
    %2722 = vmatmul.mubr.f32.gmra.mrb[0].mxu0 %v2647
    %v2723 = vpop.f32.mrb[0].mxu0
    %v2724 = vadd.f32 %v2641, %v2723
    %v2725 = vpop.f32.mrb[0].mxu0
    %2726 = vmatprep.mubr.f32.mxu0 0.0
    %2727 = vmatmul.mubr.f32.gmra.mrb[0].mxu0 %v2650
    %v2728 = vpop.f32.mrb[0].mxu0
    %v2729 = vadd.f32 %v2641, %v2728
    %v2730 = vpop.f32.mrb[0].mxu0
    %2731 = vdwg.mxu0
    %v2732 = vadd.f32 %v2449, %v2719
    %v2733 = vadd.f32 %v2450, %v2724
    %v2734 = vadd.f32 %v2451, %v2729
    %v2735 = vld [vmem:[%s39] sm:$0x1]
    %v2736 = vld [vmem:[%s41] sm:$0x1]
    %v2737 = vsel %vm358, %v2732, 0.0
    %2738 = vadd.xlane.f32.xlu0 %v2737
    %v2739 = vpop.xlane.xlu0 %2738
    %v2740 = vsel %vm358, %v2733, 0.0
    %2741 = vadd.xlane.f32.xlu0 %v2740
    %v2742 = vpop.xlane.xlu0 %2741
    %v2743 = vsel %vm365, %v2734, 0.0
    %2744 = vadd.xlane.f32.xlu0 %v2743
    %v2745 = vpop.xlane.xlu0 %2744
    %v2746 = vmul.f32 %v2739, %v369
    %v2747 = vmul.f32 %v2742, %v369
    %v2748 = vmul.f32 %v2745, %v369
    %v2749 = vmul.f32 %v2732, %v2732
    %v2750 = vmul.f32 %v2733, %v2733
    %v2751 = vmul.f32 %v2734, %v2734
    %v2752 = vsel %vm358, %v2749, 0.0
    %2753 = vadd.xlane.f32.xlu0 %v2752
    %v2754 = vpop.xlane.xlu0 %2753
    %v2755 = vsel %vm358, %v2750, 0.0
    %2756 = vadd.xlane.f32.xlu0 %v2755
    %v2757 = vpop.xlane.xlu0 %2756
    %v2758 = vsel %vm365, %v2751, 0.0
    %2759 = vadd.xlane.f32.xlu0 %v2758
    %v2760 = vpop.xlane.xlu0 %2759
    %v2761 = vmul.f32 %v2754, %v369
    %v2762 = vmul.f32 %v2757, %v369
    %v2763 = vmul.f32 %v2760, %v369
    %v2764 = vmul.f32 %v2746, %v2746
    %v2765 = vmul.f32 %v2747, %v2747
    %v2766 = vmul.f32 %v2748, %v2748
    %v2767 = vsub.f32 %v2761, %v2764
    %v2768 = vsub.f32 %v2762, %v2765
    %v2769 = vsub.f32 %v2763, %v2766
    %v2770 = vadd.f32 %v2767, 1e-05
    %v2771 = vadd.f32 %v2768, 1e-05
    %v2772 = vadd.f32 %v2769, 1e-05
    %v2773 = vrsqrt.pop %v2770
    %v2774 = vrsqrt.pop %v2771
    %v2775 = vrsqrt.pop %v2772
    %v2776 = vsub.f32 %v2732, %v2746
    %v2777 = vsub.f32 %v2733, %v2747
    %v2778 = vsub.f32 %v2734, %v2748
    %v2779 = vmul.f32 %v2776, %v2773
    %v2780 = vmul.f32 %v2777, %v2774
    %v2781 = vmul.f32 %v2778, %v2775
    %v2783 = vlaneseq
    %v2784 = vshrl.u32 %v2783, 7
    %v2785 = vsub.s32 0, %v2784
    %v2786 = vrot.slane %v2735, %v2785
    %v2788 = vmul.f32 %v2779, %v2786
    %v2789 = vmul.f32 %v2780, %v2786
    %v2790 = vmul.f32 %v2781, %v2786
    %v2792 = vlaneseq
    %v2793 = vshrl.u32 %v2792, 7
    %v2794 = vsub.s32 0, %v2793
    %v2795 = vrot.slane %v2736, %v2794
    %v2797 = vadd.f32 %v2788, %v2795
    %v2798 = vadd.f32 %v2789, %v2795
    %v2799 = vadd.f32 %v2790, %v2795
    %v2800 = vld [vmem:[%s43] sm:$0xff]
    %v2801 = vld [vmem:[%s43 + $0x8] sm:$0xff]
    %v2802 = vld [vmem:[%s43 + $0x10] sm:$0xff]
    %v2803 = vld [vmem:[%s43 + $0x18] sm:$0xff]
    %v2804 = vld [vmem:[%s45] sm:$0x1]
    %v2806 = vlaneseq
    %v2807 = vshrl.u32 %v2806, 7
    %v2808 = vsub.s32 0, %v2807
    %v2809 = vrot.slane %v2804, %v2808
    %v2812 = vsel %vm358, %v2797, 0
    %v2815 = vsel %vm358, %v2798, 0
    %v2818 = vsel %vm358, %v2799, 0
    %2820 = vmatprep.subr.mxu0 0.0
    %2821 = vmatpush1.msra.mxu0 %v2800
    %2822 = vmatprep.subr.mxu0 0.0
    %2823 = vmatpush1.msra.mxu0 %v2801
    %2824 = vmatprep.subr.mxu0 0.0
    %2825 = vmatpush1.msra.mxu0 %v2802
    %2826 = vmatprep.subr.mxu0 0.0
    %2827 = vmatpush1.msra.mxu0 %v2803
    %2828 = vmatprep.subr.mxu0 0.0
    %2829 = vmatpush1.msra.mxu0 0.0
    %2830 = vmatprep.subr.mxu0 0.0
    %2831 = vmatpush1.msra.mxu0 0.0
    %2832 = vmatprep.subr.mxu0 0.0
    %2833 = vmatpush1.msra.mxu0 0.0
    %2834 = vmatprep.subr.mxu0 0.0
    %2835 = vmatpush1.msra.mxu0 0.0
    %2836 = vmatprep.subr.mxu0 0.0
    %2837 = vmatpush1.msra.mxu0 0.0
    %2838 = vmatprep.subr.mxu0 0.0
    %2839 = vmatpush1.msra.mxu0 0.0
    %2840 = vmatprep.subr.mxu0 0.0
    %2841 = vmatpush1.msra.mxu0 0.0
    %2842 = vmatprep.subr.mxu0 0.0
    %2843 = vmatpush1.msra.mxu0 0.0
    %2844 = vmatprep.subr.mxu0 0.0
    %2845 = vmatpush1.msra.mxu0 0.0
    %2846 = vmatprep.subr.mxu0 0.0
    %2847 = vmatpush1.msra.mxu0 0.0
    %2848 = vmatprep.subr.mxu0 0.0
    %2849 = vmatpush1.msra.mxu0 0.0
    %2850 = vmatprep.subr.mxu0 0.0
    %2851 = vmatpush1.msra.mxu0 0.0
    %2852 = vmatprep.subr.mxu0 0.0
    %2853 = vmatpush1.msra.mxu0 0.0
    %2854 = vmatprep.subr.mxu0 0.0
    %2855 = vmatpush1.msra.mxu0 0.0
    %2856 = vmatprep.subr.mxu0 0.0
    %2857 = vmatpush1.msra.mxu0 0.0
    %2858 = vmatprep.subr.mxu0 0.0
    %2859 = vmatpush1.msra.mxu0 0.0
    %2860 = vmatprep.subr.mxu0 0.0
    %2861 = vmatpush1.msra.mxu0 0.0
    %2862 = vmatprep.subr.mxu0 0.0
    %2863 = vmatpush1.msra.mxu0 0.0
    %2864 = vmatprep.subr.mxu0 0.0
    %2865 = vmatpush1.msra.mxu0 0.0
    %2866 = vmatprep.subr.mxu0 0.0
    %2867 = vmatpush1.msra.mxu0 0.0
    %2868 = vmatprep.subr.mxu0 0.0
    %2869 = vmatpush1.msra.mxu0 0.0
    %2870 = vmatprep.subr.mxu0 0.0
    %2871 = vmatpush1.msra.mxu0 0.0
    %2872 = vmatprep.subr.mxu0 0.0
    %2873 = vmatpush1.msra.mxu0 0.0
    %2874 = vmatprep.subr.mxu0 0.0
    %2875 = vmatpush1.msra.mxu0 0.0
    %2876 = vmatprep.subr.mxu0 0.0
    %2877 = vmatpush1.msra.mxu0 0.0
    %2878 = vmatprep.subr.mxu0 0.0
    %2879 = vmatpush1.msra.mxu0 0.0
    %2880 = vmatprep.subr.mxu0 0.0
    %2881 = vmatpush1.msra.mxu0 0.0
    %2882 = vmatprep.subr.mxu0 0.0
    %2883 = vmatpush1.msra.mxu0 0.0
    %2884 = vmatprep.mubr.f32.mxu0 0.0
    %2885 = vmatmul.mubr.f32.gmra.mrb[0].mxu0 %v2812
    %v2886 = vpop.f32.mrb[0].mxu0
    %v2887 = vadd.f32 %v2809, %v2886
    %v2888 = vpop.f32.mrb[0].mxu0
    %2889 = vmatprep.mubr.f32.mxu0 0.0
    %2890 = vmatmul.mubr.f32.gmra.mrb[0].mxu0 %v2815
    %v2891 = vpop.f32.mrb[0].mxu0
    %v2892 = vadd.f32 %v2809, %v2891
    %v2893 = vpop.f32.mrb[0].mxu0
    %2894 = vmatprep.mubr.f32.mxu0 0.0
    %2895 = vmatmul.mubr.f32.gmra.mrb[0].mxu0 %v2818
    %v2896 = vpop.f32.mrb[0].mxu0
    %v2897 = vadd.f32 %v2809, %v2896
    %v2898 = vpop.f32.mrb[0].mxu0
    %2899 = vdwg.mxu0
    %v2900 = vld [vmem:[%s47] sm:$0xff]
    %v2901 = vld [vmem:[%s47 + $0x8] sm:$0xff]
    %v2902 = vld [vmem:[%s47 + $0x10] sm:$0xff]
    %v2903 = vld [vmem:[%s47 + $0x18] sm:$0xff]
    %v2904 = vld [vmem:[%s47 + $0x20] sm:$0x3]
    %v2905 = vld [vmem:[%s49] sm:$0xff]
    %v2906 = vld [vmem:[%s49 + $0x8] sm:$0xff]
    %v2907 = vld [vmem:[%s49 + $0x10] sm:$0xff]
    %v2908 = vld [vmem:[%s49 + $0x18] sm:$0xff]
    %v2909 = vld [vmem:[%s49 + $0x20] sm:$0x3]
    %v2911 = vsel %vm519, %v2900, 0
    %v2914 = vsel %vm519, %v2901, 0
    %v2917 = vsel %vm519, %v2902, 0
    %v2920 = vsel %vm519, %v2903, 0
    %v2923 = vsel %vm519, %v2904, 0
    %v2926 = vsel %vm547, %v2897, 0
    %2928 = vmatprep.subr.mxu0 0.0
    %2929 = vmatpush1.msra.mxu0 %v2887
    %2930 = vmatprep.subr.mxu0 0.0
    %2931 = vmatpush1.msra.mxu0 %v2892
    %2932 = vmatprep.subr.mxu0 0.0
    %2933 = vmatpush1.msra.mxu0 %v2926
    %2934 = vmatprep.subr.mxu0 0.0
    %2935 = vmatpush1.msra.mxu0 0.0
    %2936 = vmatprep.subr.mxu0 0.0
    %2937 = vmatpush1.msra.mxu0 0.0
    %2938 = vmatprep.subr.mxu0 0.0
    %2939 = vmatpush1.msra.mxu0 0.0
    %2940 = vmatprep.subr.mxu0 0.0
    %2941 = vmatpush1.msra.mxu0 0.0
    %2942 = vmatprep.subr.mxu0 0.0
    %2943 = vmatpush1.msra.mxu0 0.0
    %2944 = vmatprep.subr.mxu0 0.0
    %2945 = vmatpush1.msra.mxu0 0.0
    %2946 = vmatprep.subr.mxu0 0.0
    %2947 = vmatpush1.msra.mxu0 0.0
    %2948 = vmatprep.subr.mxu0 0.0
    %2949 = vmatpush1.msra.mxu0 0.0
    %2950 = vmatprep.subr.mxu0 0.0
    %2951 = vmatpush1.msra.mxu0 0.0
    %2952 = vmatprep.subr.mxu0 0.0
    %2953 = vmatpush1.msra.mxu0 0.0
    %2954 = vmatprep.subr.mxu0 0.0
    %2955 = vmatpush1.msra.mxu0 0.0
    %2956 = vmatprep.subr.mxu0 0.0
    %2957 = vmatpush1.msra.mxu0 0.0
    %2958 = vmatprep.subr.mxu0 0.0
    %2959 = vmatpush1.msra.mxu0 0.0
    %2960 = vmatprep.subr.mxu0 0.0
    %2961 = vmatpush1.msra.mxu0 0.0
    %2962 = vmatprep.subr.mxu0 0.0
    %2963 = vmatpush1.msra.mxu0 0.0
    %2964 = vmatprep.subr.mxu0 0.0
    %2965 = vmatpush1.msra.mxu0 0.0
    %2966 = vmatprep.subr.mxu0 0.0
    %2967 = vmatpush1.msra.mxu0 0.0
    %2968 = vmatprep.subr.mxu0 0.0
    %2969 = vmatpush1.msra.mxu0 0.0
    %2970 = vmatprep.subr.mxu0 0.0
    %2971 = vmatpush1.msra.mxu0 0.0
    %2972 = vmatprep.subr.mxu0 0.0
    %2973 = vmatpush1.msra.mxu0 0.0
    %2974 = vmatprep.subr.mxu0 0.0
    %2975 = vmatpush1.msra.mxu0 0.0
    %2976 = vmatprep.subr.mxu0 0.0
    %2977 = vmatpush1.msra.mxu0 0.0
    %2978 = vmatprep.subr.mxu0 0.0
    %2979 = vmatpush1.msra.mxu0 0.0
    %2980 = vmatprep.subr.mxu0 0.0
    %2981 = vmatpush1.msra.mxu0 0.0
    %2982 = vmatprep.subr.mxu0 0.0
    %2983 = vmatpush1.msra.mxu0 0.0
    %2984 = vmatprep.subr.mxu0 0.0
    %2985 = vmatpush1.msra.mxu0 0.0
    %2986 = vmatprep.subr.mxu0 0.0
    %2987 = vmatpush1.msra.mxu0 0.0
    %2988 = vmatprep.subr.mxu0 0.0
    %2989 = vmatpush1.msra.mxu0 0.0
    %2990 = vmatprep.subr.mxu0 0.0
    %2991 = vmatpush1.msra.mxu0 0.0
    %2992 = vmatprep.mubr.f32.mxu0 0.0
    %2993 = vmatmul.mubr.f32.gmra.mrb[0].mxu0 %v2911
    %v2994 = vpop.f32.mrb[0].mxu0
    %v2995 = vadd.f32 %v2905, %v2994
    %v2996 = vpop.f32.mrb[0].mxu0
    %2997 = vmatprep.mubr.f32.mxu0 0.0
    %2998 = vmatmul.mubr.f32.gmra.mrb[0].mxu0 %v2914
    %v2999 = vpop.f32.mrb[0].mxu0
    %v3000 = vadd.f32 %v2906, %v2999
    %v3001 = vpop.f32.mrb[0].mxu0
    %3002 = vmatprep.mubr.f32.mxu0 0.0
    %3003 = vmatmul.mubr.f32.gmra.mrb[0].mxu0 %v2917
    %v3004 = vpop.f32.mrb[0].mxu0
    %v3005 = vadd.f32 %v2907, %v3004
    %v3006 = vpop.f32.mrb[0].mxu0
    %3007 = vmatprep.mubr.f32.mxu0 0.0
    %3008 = vmatmul.mubr.f32.gmra.mrb[0].mxu0 %v2920
    %v3009 = vpop.f32.mrb[0].mxu0
    %v3010 = vadd.f32 %v2908, %v3009
    %v3011 = vpop.f32.mrb[0].mxu0
    %3012 = vmatprep.mubr.f32.mxu0 0.0
    %3013 = vmatmul.mubr.f32.gmra.mrb[0].mxu0 %v2923
    %v3014 = vpop.f32.mrb[0].mxu0
    %v3015 = vadd.f32 %v2909, %v3014
    %v3016 = vpop.f32.mrb[0].mxu0
    %3017 = vdwg.mxu0
    %v3018 = vld [vmem:[%s75] sm:$0xff]
    %v3019 = vld [vmem:[%s75 + $0x8] sm:$0xff]
    %v3020 = vld [vmem:[%s75 + $0x10] sm:$0xff]
    %v3021 = vld [vmem:[%s75 + $0x18] sm:$0xff]
    %v3022 = vld [vmem:[%s75 + $0x20] sm:$0xff]
    %v3023 = vld [vmem:[%s75 + $0x28] sm:$0xff]
    %v3024 = vld [vmem:[%s75 + $0x30] sm:$0xff]
    %v3025 = vld [vmem:[%s75 + $0x38] sm:$0xff]
    %v3026 = vld [vmem:[%s75 + $0x40] sm:$0xff]
    %v3027 = vld [vmem:[%s75 + $0x48] sm:$0xff]
    %v3028 = vld [vmem:[%s75 + $0x50] sm:$0xff]
    %v3029 = vld [vmem:[%s75 + $0x58] sm:$0xff]
    %v3030 = vld [vmem:[%s75 + $0x60] sm:$0xff]
    %v3031 = vld [vmem:[%s75 + $0x68] sm:$0xff]
    %v3032 = vld [vmem:[%s75 + $0x70] sm:$0xff]
    %v3033 = vld [vmem:[%s75 + $0x78] sm:$0xff]
    %v3034 = vld [vmem:[%s75 + $0x80] sm:$0xff]
    %v3035 = vld [vmem:[%s77] sm:$0xff]
    %v3036 = vld [vmem:[%s77 + $0x8] sm:$0xff]
    %v3037 = vld [vmem:[%s77 + $0x10] sm:$0xff]
    %v3038 = vld [vmem:[%s77 + $0x18] sm:$0xff]
    %v3039 = vld [vmem:[%s77 + $0x20] sm:$0xff]
    %v3040 = vld [vmem:[%s77 + $0x28] sm:$0xff]
    %v3041 = vld [vmem:[%s77 + $0x30] sm:$0xff]
    %v3042 = vld [vmem:[%s77 + $0x38] sm:$0xff]
    %v3043 = vld [vmem:[%s77 + $0x40] sm:$0x3]
    %v3044 = vld [vmem:[%s77 + $0x48] sm:$0x3]
    %v3045 = vld [vmem:[%s79] sm:$0xff]
    %v3046 = vld [vmem:[%s79 + $0x8] sm:$0xff]
    %v3047 = vld [vmem:[%s79 + $0x10] sm:$0xff]
    %v3048 = vld [vmem:[%s79 + $0x18] sm:$0xff]
    %v3049 = vld [vmem:[%s79 + $0x20] sm:$0xff]
    %v3050 = vld [vmem:[%s79 + $0x28] sm:$0xff]
    %v3051 = vld [vmem:[%s79 + $0x30] sm:$0xff]
    %v3052 = vld [vmem:[%s79 + $0x38] sm:$0xff]
    %v3053 = vld [vmem:[%s79 + $0x40] sm:$0xff]
    %v3054 = vld [vmem:[%s79 + $0x48] sm:$0xff]
    %v3055 = vld [vmem:[%s79 + $0x50] sm:$0xff]
    %v3056 = vld [vmem:[%s79 + $0x58] sm:$0xff]
    %v3057 = vld [vmem:[%s79 + $0x60] sm:$0xff]
    %v3058 = vld [vmem:[%s79 + $0x68] sm:$0xff]
    %v3059 = vld [vmem:[%s79 + $0x70] sm:$0xff]
    %v3060 = vld [vmem:[%s79 + $0x78] sm:$0xff]
    %v3061 = vld [vmem:[%s79 + $0x80] sm:$0xff]
    %v3062 = vld [vmem:[%s81] sm:$0xff]
    %v3063 = vld [vmem:[%s81 + $0x8] sm:$0xff]
    %v3064 = vld [vmem:[%s81 + $0x10] sm:$0xff]
    %v3065 = vld [vmem:[%s81 + $0x18] sm:$0xff]
    %v3066 = vld [vmem:[%s81 + $0x20] sm:$0xff]
    %v3067 = vld [vmem:[%s81 + $0x28] sm:$0xff]
    %v3068 = vld [vmem:[%s81 + $0x30] sm:$0xff]
    %v3069 = vld [vmem:[%s81 + $0x38] sm:$0xff]
    %v3070 = vld [vmem:[%s81 + $0x40] sm:$0xff]
    %v3071 = vld [vmem:[%s81 + $0x48] sm:$0xff]
    %v3072 = vld [vmem:[%s81 + $0x50] sm:$0xff]
    %v3073 = vld [vmem:[%s81 + $0x58] sm:$0xff]
    %v3074 = vld [vmem:[%s81 + $0x60] sm:$0xff]
    %v3075 = vld [vmem:[%s81 + $0x68] sm:$0xff]
    %v3076 = vld [vmem:[%s81 + $0x70] sm:$0xff]
    %v3077 = vld [vmem:[%s81 + $0x78] sm:$0xff]
    %v3078 = vld [vmem:[%s81 + $0x80] sm:$0xff]
    %v3079 = vld [vmem:[%s51] sm:$0x1]
    %v3080 = vld [vmem:[%s53] sm:$0x1]
    %v3081 = vld [vmem:[%s55] sm:$0xff]
    %v3082 = vld [vmem:[%s55 + $0x8] sm:$0xff]
    %v3083 = vld [vmem:[%s55 + $0x10] sm:$0xff]
    %v3084 = vld [vmem:[%s55 + $0x18] sm:$0xff]
    %v3085 = vld [vmem:[%s57] sm:$0x1]
    %v3086 = vld [vmem:[%s59] sm:$0xff]
    %v3087 = vld [vmem:[%s59 + $0x8] sm:$0xff]
    %v3088 = vld [vmem:[%s59 + $0x10] sm:$0xff]
    %v3089 = vld [vmem:[%s59 + $0x18] sm:$0xff]
    %v3090 = vld [vmem:[%s61] sm:$0x1]
    %v3091 = vld [vmem:[%s63] sm:$0x1]
    %v3092 = vld [vmem:[%s65] sm:$0x1]
    %v3093 = vld [vmem:[%s67] sm:$0xff]
    %v3094 = vld [vmem:[%s67 + $0x8] sm:$0xff]
    %v3095 = vld [vmem:[%s67 + $0x10] sm:$0xff]
    %v3096 = vld [vmem:[%s67 + $0x18] sm:$0xff]
    %v3097 = vld [vmem:[%s69] sm:$0x1]
    %v3098 = vld [vmem:[%s71] sm:$0xff]
    %v3099 = vld [vmem:[%s71 + $0x8] sm:$0xff]
    %v3100 = vld [vmem:[%s71 + $0x10] sm:$0xff]
    %v3101 = vld [vmem:[%s71 + $0x18] sm:$0xff]
    %v3102 = vld [vmem:[%s71 + $0x20] sm:$0xff]
    %v3103 = vld [vmem:[%s71 + $0x28] sm:$0xff]
    %v3104 = vld [vmem:[%s71 + $0x30] sm:$0xff]
    %v3105 = vld [vmem:[%s71 + $0x38] sm:$0xff]
    %v3106 = vld [vmem:[%s73] sm:$0x1]
    %v3107 = vsel %vm358, %v2995, 0.0
    %3108 = vadd.xlane.f32.xlu0 %v3107
    %v3109 = vpop.xlane.xlu0 %3108
    %v3110 = vsel %vm358, %v3000, 0.0
    %3111 = vadd.xlane.f32.xlu0 %v3110
    %v3112 = vpop.xlane.xlu0 %3111
    %v3113 = vsel %vm358, %v3005, 0.0
    %3114 = vadd.xlane.f32.xlu0 %v3113
    %v3115 = vpop.xlane.xlu0 %3114
    %v3116 = vsel %vm358, %v3010, 0.0
    %3117 = vadd.xlane.f32.xlu0 %v3116
    %v3118 = vpop.xlane.xlu0 %3117
    %v3119 = vsel %vm365, %v3015, 0.0
    %3120 = vadd.xlane.f32.xlu0 %v3119
    %v3121 = vpop.xlane.xlu0 %3120
    %v3122 = vmul.f32 %v3109, %v369
    %v3123 = vmul.f32 %v3112, %v369
    %v3124 = vmul.f32 %v3115, %v369
    %v3125 = vmul.f32 %v3118, %v369
    %v3126 = vmul.f32 %v3121, %v369
    %v3127 = vmul.f32 %v2995, %v2995
    %v3128 = vmul.f32 %v3000, %v3000
    %v3129 = vmul.f32 %v3005, %v3005
    %v3130 = vmul.f32 %v3010, %v3010
    %v3131 = vmul.f32 %v3015, %v3015
    %v3132 = vsel %vm358, %v3127, 0.0
    %3133 = vadd.xlane.f32.xlu0 %v3132
    %v3134 = vpop.xlane.xlu0 %3133
    %v3135 = vsel %vm358, %v3128, 0.0
    %3136 = vadd.xlane.f32.xlu0 %v3135
    %v3137 = vpop.xlane.xlu0 %3136
    %v3138 = vsel %vm358, %v3129, 0.0
    %3139 = vadd.xlane.f32.xlu0 %v3138
    %v3140 = vpop.xlane.xlu0 %3139
    %v3141 = vsel %vm358, %v3130, 0.0
    %3142 = vadd.xlane.f32.xlu0 %v3141
    %v3143 = vpop.xlane.xlu0 %3142
    %v3144 = vsel %vm365, %v3131, 0.0
    %3145 = vadd.xlane.f32.xlu0 %v3144
    %v3146 = vpop.xlane.xlu0 %3145
    %v3147 = vmul.f32 %v3134, %v369
    %v3148 = vmul.f32 %v3137, %v369
    %v3149 = vmul.f32 %v3140, %v369
    %v3150 = vmul.f32 %v3143, %v369
    %v3151 = vmul.f32 %v3146, %v369
    %v3152 = vmul.f32 %v3122, %v3122
    %v3153 = vmul.f32 %v3123, %v3123
    %v3154 = vmul.f32 %v3124, %v3124
    %v3155 = vmul.f32 %v3125, %v3125
    %v3156 = vmul.f32 %v3126, %v3126
    %v3157 = vsub.f32 %v3147, %v3152
    %v3158 = vsub.f32 %v3148, %v3153
    %v3159 = vsub.f32 %v3149, %v3154
    %v3160 = vsub.f32 %v3150, %v3155
    %v3161 = vsub.f32 %v3151, %v3156
    %v3162 = vadd.f32 %v3157, 1e-05
    %v3163 = vadd.f32 %v3158, 1e-05
    %v3164 = vadd.f32 %v3159, 1e-05
    %v3165 = vadd.f32 %v3160, 1e-05
    %v3166 = vadd.f32 %v3161, 1e-05
    %v3167 = vrsqrt.pop %v3162
    %v3168 = vrsqrt.pop %v3163
    %v3169 = vrsqrt.pop %v3164
    %v3170 = vrsqrt.pop %v3165
    %v3171 = vrsqrt.pop %v3166
    %v3172 = vsub.f32 %v2995, %v3122
    %v3173 = vsub.f32 %v3000, %v3123
    %v3174 = vsub.f32 %v3005, %v3124
    %v3175 = vsub.f32 %v3010, %v3125
    %v3176 = vsub.f32 %v3015, %v3126
    %v3177 = vmul.f32 %v3172, %v3167
    %v3178 = vmul.f32 %v3173, %v3168
    %v3179 = vmul.f32 %v3174, %v3169
    %v3180 = vmul.f32 %v3175, %v3170
    %v3181 = vmul.f32 %v3176, %v3171
    %v3183 = vlaneseq
    %v3184 = vshrl.u32 %v3183, 7
    %v3185 = vsub.s32 0, %v3184
    %v3186 = vrot.slane %v3079, %v3185
    %v3188 = vmul.f32 %v3177, %v3186
    %v3189 = vmul.f32 %v3178, %v3186
    %v3190 = vmul.f32 %v3179, %v3186
    %v3191 = vmul.f32 %v3180, %v3186
    %v3192 = vmul.f32 %v3181, %v3186
    %v3194 = vlaneseq
    %v3195 = vshrl.u32 %v3194, 7
    %v3196 = vsub.s32 0, %v3195
    %v3197 = vrot.slane %v3080, %v3196
    %v3199 = vadd.f32 %v3188, %v3197
    %v3200 = vadd.f32 %v3189, %v3197
    %v3201 = vadd.f32 %v3190, %v3197
    %v3202 = vadd.f32 %v3191, %v3197
    %v3203 = vadd.f32 %v3192, %v3197
    %v3205 = vlaneseq
    %v3206 = vshrl.u32 %v3205, 7
    %v3207 = vsub.s32 0, %v3206
    %v3208 = vrot.slane %v3085, %v3207
    %v3211 = vsel %vm358, %v3199, 0
    %v3214 = vsel %vm358, %v3200, 0
    %v3217 = vsel %vm358, %v3201, 0
    %v3220 = vsel %vm358, %v3202, 0
    %v3223 = vsel %vm358, %v3203, 0
    %3225 = vmatprep.subr.mxu0 0.0
    %3226 = vmatpush1.msra.mxu0 %v3081
    %3227 = vmatprep.subr.mxu0 0.0
    %3228 = vmatpush1.msra.mxu0 %v3082
    %3229 = vmatprep.subr.mxu0 0.0
    %3230 = vmatpush1.msra.mxu0 %v3083
    %3231 = vmatprep.subr.mxu0 0.0
    %3232 = vmatpush1.msra.mxu0 %v3084
    %3233 = vmatprep.subr.mxu0 0.0
    %3234 = vmatpush1.msra.mxu0 0.0
    %3235 = vmatprep.subr.mxu0 0.0
    %3236 = vmatpush1.msra.mxu0 0.0
    %3237 = vmatprep.subr.mxu0 0.0
    %3238 = vmatpush1.msra.mxu0 0.0
    %3239 = vmatprep.subr.mxu0 0.0
    %3240 = vmatpush1.msra.mxu0 0.0
    %3241 = vmatprep.subr.mxu0 0.0
    %3242 = vmatpush1.msra.mxu0 0.0
    %3243 = vmatprep.subr.mxu0 0.0
    %3244 = vmatpush1.msra.mxu0 0.0
    %3245 = vmatprep.subr.mxu0 0.0
    %3246 = vmatpush1.msra.mxu0 0.0
    %3247 = vmatprep.subr.mxu0 0.0
    %3248 = vmatpush1.msra.mxu0 0.0
    %3249 = vmatprep.subr.mxu0 0.0
    %3250 = vmatpush1.msra.mxu0 0.0
    %3251 = vmatprep.subr.mxu0 0.0
    %3252 = vmatpush1.msra.mxu0 0.0
    %3253 = vmatprep.subr.mxu0 0.0
    %3254 = vmatpush1.msra.mxu0 0.0
    %3255 = vmatprep.subr.mxu0 0.0
    %3256 = vmatpush1.msra.mxu0 0.0
    %3257 = vmatprep.subr.mxu0 0.0
    %3258 = vmatpush1.msra.mxu0 0.0
    %3259 = vmatprep.subr.mxu0 0.0
    %3260 = vmatpush1.msra.mxu0 0.0
    %3261 = vmatprep.subr.mxu0 0.0
    %3262 = vmatpush1.msra.mxu0 0.0
    %3263 = vmatprep.subr.mxu0 0.0
    %3264 = vmatpush1.msra.mxu0 0.0
    %3265 = vmatprep.subr.mxu0 0.0
    %3266 = vmatpush1.msra.mxu0 0.0
    %3267 = vmatprep.subr.mxu0 0.0
    %3268 = vmatpush1.msra.mxu0 0.0
    %3269 = vmatprep.subr.mxu0 0.0
    %3270 = vmatpush1.msra.mxu0 0.0
    %3271 = vmatprep.subr.mxu0 0.0
    %3272 = vmatpush1.msra.mxu0 0.0
    %3273 = vmatprep.subr.mxu0 0.0
    %3274 = vmatpush1.msra.mxu0 0.0
    %3275 = vmatprep.subr.mxu0 0.0
    %3276 = vmatpush1.msra.mxu0 0.0
    %3277 = vmatprep.subr.mxu0 0.0
    %3278 = vmatpush1.msra.mxu0 0.0
    %3279 = vmatprep.subr.mxu0 0.0
    %3280 = vmatpush1.msra.mxu0 0.0
    %3281 = vmatprep.subr.mxu0 0.0
    %3282 = vmatpush1.msra.mxu0 0.0
    %3283 = vmatprep.subr.mxu0 0.0
    %3284 = vmatpush1.msra.mxu0 0.0
    %3285 = vmatprep.subr.mxu0 0.0
    %3286 = vmatpush1.msra.mxu0 0.0
    %3287 = vmatprep.subr.mxu0 0.0
    %3288 = vmatpush1.msra.mxu0 0.0
    %3289 = vmatprep.mubr.f32.mxu0 0.0
    %3290 = vmatmul.mubr.f32.gmra.mrb[0].mxu0 %v3211
    %v3291 = vpop.f32.mrb[0].mxu0
    %v3292 = vadd.f32 %v3208, %v3291
    %v3293 = vpop.f32.mrb[0].mxu0
    %3294 = vmatprep.mubr.f32.mxu0 0.0
    %3295 = vmatmul.mubr.f32.gmra.mrb[0].mxu0 %v3214
    %v3296 = vpop.f32.mrb[0].mxu0
    %v3297 = vadd.f32 %v3208, %v3296
    %v3298 = vpop.f32.mrb[0].mxu0
    %3299 = vmatprep.mubr.f32.mxu0 0.0
    %3300 = vmatmul.mubr.f32.gmra.mrb[0].mxu0 %v3217
    %v3301 = vpop.f32.mrb[0].mxu0
    %v3302 = vadd.f32 %v3208, %v3301
    %v3303 = vpop.f32.mrb[0].mxu0
    %3304 = vmatprep.mubr.f32.mxu0 0.0
    %3305 = vmatmul.mubr.f32.gmra.mrb[0].mxu0 %v3220
    %v3306 = vpop.f32.mrb[0].mxu0
    %v3307 = vadd.f32 %v3208, %v3306
    %v3308 = vpop.f32.mrb[0].mxu0
    %3309 = vmatprep.mubr.f32.mxu0 0.0
    %3310 = vmatmul.mubr.f32.gmra.mrb[0].mxu0 %v3223
    %v3311 = vpop.f32.mrb[0].mxu0
    %v3312 = vadd.f32 %v3208, %v3311
    %v3313 = vpop.f32.mrb[0].mxu0
    %3314 = vdwg.mxu0
    %vm3315 = vcmask 277504
    %v3317 = vsel %vm3315, %v3018, 0
    %v3320 = vsel %vm3315, %v3019, 0
    %v3323 = vsel %vm3315, %v3020, 0
    %v3326 = vsel %vm3315, %v3021, 0
    %v3329 = vsel %vm3315, %v3022, 0
    %v3332 = vsel %vm3315, %v3023, 0
    %v3335 = vsel %vm3315, %v3024, 0
    %v3338 = vsel %vm3315, %v3025, 0
    %v3341 = vsel %vm3315, %v3026, 0
    %v3344 = vsel %vm3315, %v3027, 0
    %v3347 = vsel %vm3315, %v3028, 0
    %v3350 = vsel %vm3315, %v3029, 0
    %v3353 = vsel %vm3315, %v3030, 0
    %v3356 = vsel %vm3315, %v3031, 0
    %v3359 = vsel %vm3315, %v3032, 0
    %v3362 = vsel %vm3315, %v3033, 0
    %v3365 = vsel %vm3315, %v3034, 0
    %v3368 = vsel %vm547, %v3312, 0
    %3370 = vmatprep.subr.mxu0 0.0
    %3371 = vmatpush1.msra.mxu0 %v3292
    %3372 = vmatprep.subr.mxu0 0.0
    %3373 = vmatpush1.msra.mxu0 %v3297
    %3374 = vmatprep.subr.mxu0 0.0
    %3375 = vmatpush1.msra.mxu0 %v3302
    %3376 = vmatprep.subr.mxu0 0.0
    %3377 = vmatpush1.msra.mxu0 %v3307
    %3378 = vmatprep.subr.mxu0 0.0
    %3379 = vmatpush1.msra.mxu0 %v3368
    %3380 = vmatprep.subr.mxu0 0.0
    %3381 = vmatpush1.msra.mxu0 0.0
    %3382 = vmatprep.subr.mxu0 0.0
    %3383 = vmatpush1.msra.mxu0 0.0
    %3384 = vmatprep.subr.mxu0 0.0
    %3385 = vmatpush1.msra.mxu0 0.0
    %3386 = vmatprep.subr.mxu0 0.0
    %3387 = vmatpush1.msra.mxu0 0.0
    %3388 = vmatprep.subr.mxu0 0.0
    %3389 = vmatpush1.msra.mxu0 0.0
    %3390 = vmatprep.subr.mxu0 0.0
    %3391 = vmatpush1.msra.mxu0 0.0
    %3392 = vmatprep.subr.mxu0 0.0
    %3393 = vmatpush1.msra.mxu0 0.0
    %3394 = vmatprep.subr.mxu0 0.0
    %3395 = vmatpush1.msra.mxu0 0.0
    %3396 = vmatprep.subr.mxu0 0.0
    %3397 = vmatpush1.msra.mxu0 0.0
    %3398 = vmatprep.subr.mxu0 0.0
    %3399 = vmatpush1.msra.mxu0 0.0
    %3400 = vmatprep.subr.mxu0 0.0
    %3401 = vmatpush1.msra.mxu0 0.0
    %3402 = vmatprep.subr.mxu0 0.0
    %3403 = vmatpush1.msra.mxu0 0.0
    %3404 = vmatprep.subr.mxu0 0.0
    %3405 = vmatpush1.msra.mxu0 0.0
    %3406 = vmatprep.subr.mxu0 0.0
    %3407 = vmatpush1.msra.mxu0 0.0
    %3408 = vmatprep.subr.mxu0 0.0
    %3409 = vmatpush1.msra.mxu0 0.0
    %3410 = vmatprep.subr.mxu0 0.0
    %3411 = vmatpush1.msra.mxu0 0.0
    %3412 = vmatprep.subr.mxu0 0.0
    %3413 = vmatpush1.msra.mxu0 0.0
    %3414 = vmatprep.subr.mxu0 0.0
    %3415 = vmatpush1.msra.mxu0 0.0
    %3416 = vmatprep.subr.mxu0 0.0
    %3417 = vmatpush1.msra.mxu0 0.0
    %3418 = vmatprep.subr.mxu0 0.0
    %3419 = vmatpush1.msra.mxu0 0.0
    %3420 = vmatprep.subr.mxu0 0.0
    %3421 = vmatpush1.msra.mxu0 0.0
    %3422 = vmatprep.subr.mxu0 0.0
    %3423 = vmatpush1.msra.mxu0 0.0
    %3424 = vmatprep.subr.mxu0 0.0
    %3425 = vmatpush1.msra.mxu0 0.0
    %3426 = vmatprep.subr.mxu0 0.0
    %3427 = vmatpush1.msra.mxu0 0.0
    %3428 = vmatprep.subr.mxu0 0.0
    %3429 = vmatpush1.msra.mxu0 0.0
    %3430 = vmatprep.subr.mxu0 0.0
    %3431 = vmatpush1.msra.mxu0 0.0
    %3432 = vmatprep.subr.mxu0 0.0
    %3433 = vmatpush1.msra.mxu0 0.0
    %3434 = vmatprep.mubr.f32.mxu0 0.0
    %3435 = vmatmul.mubr.f32.gmra.mrb[0].mxu0 %v3317
    %v3436 = vpop.f32.mrb[0].mxu0
    %v3437 = vadd.f32 0.0, %v3436
    %v3438 = vpop.f32.mrb[0].mxu0
    %3439 = vmatprep.mubr.f32.mxu0 0.0
    %3440 = vmatmul.mubr.f32.gmra.mrb[0].mxu0 %v3320
    %v3441 = vpop.f32.mrb[0].mxu0
    %v3442 = vadd.f32 0.0, %v3441
    %v3443 = vpop.f32.mrb[0].mxu0
    %3444 = vmatprep.mubr.f32.mxu0 0.0
    %3445 = vmatmul.mubr.f32.gmra.mrb[0].mxu0 %v3323
    %v3446 = vpop.f32.mrb[0].mxu0
    %v3447 = vadd.f32 0.0, %v3446
    %v3448 = vpop.f32.mrb[0].mxu0
    %3449 = vmatprep.mubr.f32.mxu0 0.0
    %3450 = vmatmul.mubr.f32.gmra.mrb[0].mxu0 %v3326
    %v3451 = vpop.f32.mrb[0].mxu0
    %v3452 = vadd.f32 0.0, %v3451
    %v3453 = vpop.f32.mrb[0].mxu0
    %3454 = vmatprep.mubr.f32.mxu0 0.0
    %3455 = vmatmul.mubr.f32.gmra.mrb[0].mxu0 %v3329
    %v3456 = vpop.f32.mrb[0].mxu0
    %v3457 = vadd.f32 0.0, %v3456
    %v3458 = vpop.f32.mrb[0].mxu0
    %3459 = vmatprep.mubr.f32.mxu0 0.0
    %3460 = vmatmul.mubr.f32.gmra.mrb[0].mxu0 %v3332
    %v3461 = vpop.f32.mrb[0].mxu0
    %v3462 = vadd.f32 0.0, %v3461
    %v3463 = vpop.f32.mrb[0].mxu0
    %3464 = vmatprep.mubr.f32.mxu0 0.0
    %3465 = vmatmul.mubr.f32.gmra.mrb[0].mxu0 %v3335
    %v3466 = vpop.f32.mrb[0].mxu0
    %v3467 = vadd.f32 0.0, %v3466
    %v3468 = vpop.f32.mrb[0].mxu0
    %3469 = vmatprep.mubr.f32.mxu0 0.0
    %3470 = vmatmul.mubr.f32.gmra.mrb[0].mxu0 %v3338
    %v3471 = vpop.f32.mrb[0].mxu0
    %v3472 = vadd.f32 0.0, %v3471
    %v3473 = vpop.f32.mrb[0].mxu0
    %3474 = vmatprep.mubr.f32.mxu0 0.0
    %3475 = vmatmul.mubr.f32.gmra.mrb[0].mxu0 %v3341
    %v3476 = vpop.f32.mrb[0].mxu0
    %v3477 = vadd.f32 0.0, %v3476
    %v3478 = vpop.f32.mrb[0].mxu0
    %3479 = vmatprep.mubr.f32.mxu0 0.0
    %3480 = vmatmul.mubr.f32.gmra.mrb[0].mxu0 %v3344
    %v3481 = vpop.f32.mrb[0].mxu0
    %v3482 = vadd.f32 0.0, %v3481
    %v3483 = vpop.f32.mrb[0].mxu0
    %3484 = vmatprep.mubr.f32.mxu0 0.0
    %3485 = vmatmul.mubr.f32.gmra.mrb[0].mxu0 %v3347
    %v3486 = vpop.f32.mrb[0].mxu0
    %v3487 = vadd.f32 0.0, %v3486
    %v3488 = vpop.f32.mrb[0].mxu0
    %3489 = vmatprep.mubr.f32.mxu0 0.0
    %3490 = vmatmul.mubr.f32.gmra.mrb[0].mxu0 %v3350
    %v3491 = vpop.f32.mrb[0].mxu0
    %v3492 = vadd.f32 0.0, %v3491
    %v3493 = vpop.f32.mrb[0].mxu0
    %3494 = vmatprep.mubr.f32.mxu0 0.0
    %3495 = vmatmul.mubr.f32.gmra.mrb[0].mxu0 %v3353
    %v3496 = vpop.f32.mrb[0].mxu0
    %v3497 = vadd.f32 0.0, %v3496
    %v3498 = vpop.f32.mrb[0].mxu0
    %3499 = vmatprep.mubr.f32.mxu0 0.0
    %3500 = vmatmul.mubr.f32.gmra.mrb[0].mxu0 %v3356
    %v3501 = vpop.f32.mrb[0].mxu0
    %v3502 = vadd.f32 0.0, %v3501
    %v3503 = vpop.f32.mrb[0].mxu0
    %3504 = vmatprep.mubr.f32.mxu0 0.0
    %3505 = vmatmul.mubr.f32.gmra.mrb[0].mxu0 %v3359
    %v3506 = vpop.f32.mrb[0].mxu0
    %v3507 = vadd.f32 0.0, %v3506
    %v3508 = vpop.f32.mrb[0].mxu0
    %3509 = vmatprep.mubr.f32.mxu0 0.0
    %3510 = vmatmul.mubr.f32.gmra.mrb[0].mxu0 %v3362
    %v3511 = vpop.f32.mrb[0].mxu0
    %v3512 = vadd.f32 0.0, %v3511
    %v3513 = vpop.f32.mrb[0].mxu0
    %3514 = vmatprep.mubr.f32.mxu0 0.0
    %3515 = vmatmul.mubr.f32.gmra.mrb[0].mxu0 %v3365
    %v3516 = vpop.f32.mrb[0].mxu0
    %v3517 = vadd.f32 0.0, %v3516
    %v3518 = vpop.f32.mrb[0].mxu0
    %3519 = vdwg.mxu0
    %v3520 = vmul.f32 %v3437, %v3045
    %v3521 = vmul.f32 %v3442, %v3046
    %v3522 = vmul.f32 %v3447, %v3047
    %v3523 = vmul.f32 %v3452, %v3048
    %v3524 = vmul.f32 %v3457, %v3049
    %v3525 = vmul.f32 %v3462, %v3050
    %v3526 = vmul.f32 %v3467, %v3051
    %v3527 = vmul.f32 %v3472, %v3052
    %v3528 = vmul.f32 %v3477, %v3053
    %v3529 = vmul.f32 %v3482, %v3054
    %v3530 = vmul.f32 %v3487, %v3055
    %v3531 = vmul.f32 %v3492, %v3056
    %v3532 = vmul.f32 %v3497, %v3057
    %v3533 = vmul.f32 %v3502, %v3058
    %v3534 = vmul.f32 %v3507, %v3059
    %v3535 = vmul.f32 %v3512, %v3060
    %v3536 = vmul.f32 %v3517, %v3061
    %3541 = vrot.lane.b32.xlu0 %v3292, 96
    %v3542 = vpop.permute.xlu0 %3541
    %3543 = vrot.lane.b32.xlu0 %v3297, 96
    %v3544 = vpop.permute.xlu0 %3543
    %3545 = vrot.lane.b32.xlu0 %v3302, 96
    %v3546 = vpop.permute.xlu0 %3545
    %3547 = vrot.lane.b32.xlu0 %v3307, 96
    %v3548 = vpop.permute.xlu0 %3547
    %3549 = vrot.lane.b32.xlu0 %v3312, 96
    %v3550 = vpop.permute.xlu0 %3549
    %v3552 = vsel %vm358, %v3520, 0
    %v3555 = vsel %vm358, %v3521, 0
    %v3558 = vsel %vm358, %v3522, 0
    %v3561 = vsel %vm358, %v3523, 0
    %v3564 = vsel %vm358, %v3524, 0
    %v3567 = vsel %vm358, %v3525, 0
    %v3570 = vsel %vm358, %v3526, 0
    %v3573 = vsel %vm358, %v3527, 0
    %v3576 = vsel %vm358, %v3528, 0
    %v3579 = vsel %vm358, %v3529, 0
    %v3582 = vsel %vm358, %v3530, 0
    %v3585 = vsel %vm358, %v3531, 0
    %v3588 = vsel %vm358, %v3532, 0
    %v3591 = vsel %vm358, %v3533, 0
    %v3594 = vsel %vm358, %v3534, 0
    %v3597 = vsel %vm358, %v3535, 0
    %v3600 = vsel %vm358, %v3536, 0
    %v3602 = vsel %vm358, %v3542, 0
    %v3604 = vsel %vm358, %v3544, 0
    %v3606 = vsel %vm358, %v3546, 0
    %v3608 = vsel %vm358, %v3548, 0
    %v3610 = vsel %vm358, %v3550, 0
    %3612 = vmatprep.subr.mxu0 0.0
    %3613 = vmatpush1.xpose.msra.mxu0 %v3602
    %3614 = vmatprep.subr.mxu0 0.0
    %3615 = vmatpush1.xpose.msra.mxu0 %v3604
    %3616 = vmatprep.subr.mxu0 0.0
    %3617 = vmatpush1.xpose.msra.mxu0 %v3606
    %3618 = vmatprep.subr.mxu0 0.0
    %3619 = vmatpush1.xpose.msra.mxu0 %v3608
    %3620 = vmatprep.subr.mxu0 0.0
    %3621 = vmatpush1.xpose.msra.mxu0 %v3610
    %3622 = vmatprep.subr.mxu0 0.0
    %3623 = vmatpush1.xpose.msra.mxu0 0.0
    %3624 = vmatprep.subr.mxu0 0.0
    %3625 = vmatpush1.xpose.msra.mxu0 0.0
    %3626 = vmatprep.subr.mxu0 0.0
    %3627 = vmatpush1.xpose.msra.mxu0 0.0
    %3628 = vmatprep.subr.mxu0 0.0
    %3629 = vmatpush1.xpose.msra.mxu0 0.0
    %3630 = vmatprep.subr.mxu0 0.0
    %3631 = vmatpush1.xpose.msra.mxu0 0.0
    %3632 = vmatprep.subr.mxu0 0.0
    %3633 = vmatpush1.xpose.msra.mxu0 0.0
    %3634 = vmatprep.subr.mxu0 0.0
    %3635 = vmatpush1.xpose.msra.mxu0 0.0
    %3636 = vmatprep.subr.mxu0 0.0
    %3637 = vmatpush1.xpose.msra.mxu0 0.0
    %3638 = vmatprep.subr.mxu0 0.0
    %3639 = vmatpush1.xpose.msra.mxu0 0.0
    %3640 = vmatprep.subr.mxu0 0.0
    %3641 = vmatpush1.xpose.msra.mxu0 0.0
    %3642 = vmatprep.subr.mxu0 0.0
    %3643 = vmatpush1.xpose.msra.mxu0 0.0
    %3644 = vmatprep.subr.mxu0 0.0
    %3645 = vmatpush1.xpose.msra.mxu0 0.0
    %3646 = vmatprep.subr.mxu0 0.0
    %3647 = vmatpush1.xpose.msra.mxu0 0.0
    %3648 = vmatprep.subr.mxu0 0.0
    %3649 = vmatpush1.xpose.msra.mxu0 0.0
    %3650 = vmatprep.subr.mxu0 0.0
    %3651 = vmatpush1.xpose.msra.mxu0 0.0
    %3652 = vmatprep.subr.mxu0 0.0
    %3653 = vmatpush1.xpose.msra.mxu0 0.0
    %3654 = vmatprep.subr.mxu0 0.0
    %3655 = vmatpush1.xpose.msra.mxu0 0.0
    %3656 = vmatprep.subr.mxu0 0.0
    %3657 = vmatpush1.xpose.msra.mxu0 0.0
    %3658 = vmatprep.subr.mxu0 0.0
    %3659 = vmatpush1.xpose.msra.mxu0 0.0
    %3660 = vmatprep.subr.mxu0 0.0
    %3661 = vmatpush1.xpose.msra.mxu0 0.0
    %3662 = vmatprep.subr.mxu0 0.0
    %3663 = vmatpush1.xpose.msra.mxu0 0.0
    %3664 = vmatprep.subr.mxu0 0.0
    %3665 = vmatpush1.xpose.msra.mxu0 0.0
    %3666 = vmatprep.subr.mxu0 0.0
    %3667 = vmatpush1.xpose.msra.mxu0 0.0
    %3668 = vmatprep.subr.mxu0 0.0
    %3669 = vmatpush1.xpose.msra.mxu0 0.0
    %3670 = vmatprep.subr.mxu0 0.0
    %3671 = vmatpush1.xpose.msra.mxu0 0.0
    %3672 = vmatprep.subr.mxu0 0.0
    %3673 = vmatpush1.xpose.msra.mxu0 0.0
    %3674 = vmatprep.subr.mxu0 0.0
    %3675 = vmatpush1.xpose.msra.mxu0 0.0
    %3676 = vmatprep.mubr.f32.mxu0 0.0
    %3677 = vmatmul.mubr.f32.gmra.mrb[0].mxu0 %v3552
    %v3678 = vpop.f32.mrb[0].mxu0
    %v3679 = vadd.f32 %v3062, %v3678
    %v3680 = vpop.f32.mrb[0].mxu0
    %3681 = vmatprep.mubr.f32.mxu0 0.0
    %3682 = vmatmul.mubr.f32.gmra.mrb[0].mxu0 %v3555
    %v3683 = vpop.f32.mrb[0].mxu0
    %v3684 = vadd.f32 %v3063, %v3683
    %v3685 = vpop.f32.mrb[0].mxu0
    %3686 = vmatprep.mubr.f32.mxu0 0.0
    %3687 = vmatmul.mubr.f32.gmra.mrb[0].mxu0 %v3558
    %v3688 = vpop.f32.mrb[0].mxu0
    %v3689 = vadd.f32 %v3064, %v3688
    %v3690 = vpop.f32.mrb[0].mxu0
    %3691 = vmatprep.mubr.f32.mxu0 0.0
    %3692 = vmatmul.mubr.f32.gmra.mrb[0].mxu0 %v3561
    %v3693 = vpop.f32.mrb[0].mxu0
    %v3694 = vadd.f32 %v3065, %v3693
    %v3695 = vpop.f32.mrb[0].mxu0
    %3696 = vmatprep.mubr.f32.mxu0 0.0
    %3697 = vmatmul.mubr.f32.gmra.mrb[0].mxu0 %v3564
    %v3698 = vpop.f32.mrb[0].mxu0
    %v3699 = vadd.f32 %v3066, %v3698
    %v3700 = vpop.f32.mrb[0].mxu0
    %3701 = vmatprep.mubr.f32.mxu0 0.0
    %3702 = vmatmul.mubr.f32.gmra.mrb[0].mxu0 %v3567
    %v3703 = vpop.f32.mrb[0].mxu0
    %v3704 = vadd.f32 %v3067, %v3703
    %v3705 = vpop.f32.mrb[0].mxu0
    %3706 = vmatprep.mubr.f32.mxu0 0.0
    %3707 = vmatmul.mubr.f32.gmra.mrb[0].mxu0 %v3570
    %v3708 = vpop.f32.mrb[0].mxu0
    %v3709 = vadd.f32 %v3068, %v3708
    %v3710 = vpop.f32.mrb[0].mxu0
    %3711 = vmatprep.mubr.f32.mxu0 0.0
    %3712 = vmatmul.mubr.f32.gmra.mrb[0].mxu0 %v3573
    %v3713 = vpop.f32.mrb[0].mxu0
    %v3714 = vadd.f32 %v3069, %v3713
    %v3715 = vpop.f32.mrb[0].mxu0
    %3716 = vmatprep.mubr.f32.mxu0 0.0
    %3717 = vmatmul.mubr.f32.gmra.mrb[0].mxu0 %v3576
    %v3718 = vpop.f32.mrb[0].mxu0
    %v3719 = vadd.f32 %v3070, %v3718
    %v3720 = vpop.f32.mrb[0].mxu0
    %3721 = vmatprep.mubr.f32.mxu0 0.0
    %3722 = vmatmul.mubr.f32.gmra.mrb[0].mxu0 %v3579
    %v3723 = vpop.f32.mrb[0].mxu0
    %v3724 = vadd.f32 %v3071, %v3723
    %v3725 = vpop.f32.mrb[0].mxu0
    %3726 = vmatprep.mubr.f32.mxu0 0.0
    %3727 = vmatmul.mubr.f32.gmra.mrb[0].mxu0 %v3582
    %v3728 = vpop.f32.mrb[0].mxu0
    %v3729 = vadd.f32 %v3072, %v3728
    %v3730 = vpop.f32.mrb[0].mxu0
    %3731 = vmatprep.mubr.f32.mxu0 0.0
    %3732 = vmatmul.mubr.f32.gmra.mrb[0].mxu0 %v3585
    %v3733 = vpop.f32.mrb[0].mxu0
    %v3734 = vadd.f32 %v3073, %v3733
    %v3735 = vpop.f32.mrb[0].mxu0
    %3736 = vmatprep.mubr.f32.mxu0 0.0
    %3737 = vmatmul.mubr.f32.gmra.mrb[0].mxu0 %v3588
    %v3738 = vpop.f32.mrb[0].mxu0
    %v3739 = vadd.f32 %v3074, %v3738
    %v3740 = vpop.f32.mrb[0].mxu0
    %3741 = vmatprep.mubr.f32.mxu0 0.0
    %3742 = vmatmul.mubr.f32.gmra.mrb[0].mxu0 %v3591
    %v3743 = vpop.f32.mrb[0].mxu0
    %v3744 = vadd.f32 %v3075, %v3743
    %v3745 = vpop.f32.mrb[0].mxu0
    %3746 = vmatprep.mubr.f32.mxu0 0.0
    %3747 = vmatmul.mubr.f32.gmra.mrb[0].mxu0 %v3594
    %v3748 = vpop.f32.mrb[0].mxu0
    %v3749 = vadd.f32 %v3076, %v3748
    %v3750 = vpop.f32.mrb[0].mxu0
    %3751 = vmatprep.mubr.f32.mxu0 0.0
    %3752 = vmatmul.mubr.f32.gmra.mrb[0].mxu0 %v3597
    %v3753 = vpop.f32.mrb[0].mxu0
    %v3754 = vadd.f32 %v3077, %v3753
    %v3755 = vpop.f32.mrb[0].mxu0
    %3756 = vmatprep.mubr.f32.mxu0 0.0
    %3757 = vmatmul.mubr.f32.gmra.mrb[0].mxu0 %v3600
    %v3758 = vpop.f32.mrb[0].mxu0
    %v3759 = vadd.f32 %v3078, %v3758
    %v3760 = vpop.f32.mrb[0].mxu0
    %3761 = vdwg.mxu0
    %v3762 = vsel %vm3315, %v3679, -inf
    %3763 = vmax.xlane.f32.xlu0 %v3762
    %v3764 = vpop.xlane.xlu0 %3763
    %v3765 = vsel %vm3315, %v3684, -inf
    %3766 = vmax.xlane.f32.xlu0 %v3765
    %v3767 = vpop.xlane.xlu0 %3766
    %v3768 = vsel %vm3315, %v3689, -inf
    %3769 = vmax.xlane.f32.xlu0 %v3768
    %v3770 = vpop.xlane.xlu0 %3769
    %v3771 = vsel %vm3315, %v3694, -inf
    %3772 = vmax.xlane.f32.xlu0 %v3771
    %v3773 = vpop.xlane.xlu0 %3772
    %v3774 = vsel %vm3315, %v3699, -inf
    %3775 = vmax.xlane.f32.xlu0 %v3774
    %v3776 = vpop.xlane.xlu0 %3775
    %v3777 = vsel %vm3315, %v3704, -inf
    %3778 = vmax.xlane.f32.xlu0 %v3777
    %v3779 = vpop.xlane.xlu0 %3778
    %v3780 = vsel %vm3315, %v3709, -inf
    %3781 = vmax.xlane.f32.xlu0 %v3780
    %v3782 = vpop.xlane.xlu0 %3781
    %v3783 = vsel %vm3315, %v3714, -inf
    %3784 = vmax.xlane.f32.xlu0 %v3783
    %v3785 = vpop.xlane.xlu0 %3784
    %v3786 = vsel %vm3315, %v3719, -inf
    %3787 = vmax.xlane.f32.xlu0 %v3786
    %v3788 = vpop.xlane.xlu0 %3787
    %v3789 = vsel %vm3315, %v3724, -inf
    %3790 = vmax.xlane.f32.xlu0 %v3789
    %v3791 = vpop.xlane.xlu0 %3790
    %v3792 = vsel %vm3315, %v3729, -inf
    %3793 = vmax.xlane.f32.xlu0 %v3792
    %v3794 = vpop.xlane.xlu0 %3793
    %v3795 = vsel %vm3315, %v3734, -inf
    %3796 = vmax.xlane.f32.xlu0 %v3795
    %v3797 = vpop.xlane.xlu0 %3796
    %v3798 = vsel %vm3315, %v3739, -inf
    %3799 = vmax.xlane.f32.xlu0 %v3798
    %v3800 = vpop.xlane.xlu0 %3799
    %v3801 = vsel %vm3315, %v3744, -inf
    %3802 = vmax.xlane.f32.xlu0 %v3801
    %v3803 = vpop.xlane.xlu0 %3802
    %v3804 = vsel %vm3315, %v3749, -inf
    %3805 = vmax.xlane.f32.xlu0 %v3804
    %v3806 = vpop.xlane.xlu0 %3805
    %v3807 = vsel %vm3315, %v3754, -inf
    %3808 = vmax.xlane.f32.xlu0 %v3807
    %v3809 = vpop.xlane.xlu0 %3808
    %v3810 = vsel %vm3315, %v3759, -inf
    %3811 = vmax.xlane.f32.xlu0 %v3810
    %v3812 = vpop.xlane.xlu0 %3811
    %v3813 = vsub.f32 %v3679, %v3764
    %v3814 = vsub.f32 %v3684, %v3767
    %v3815 = vsub.f32 %v3689, %v3770
    %v3816 = vsub.f32 %v3694, %v3773
    %v3817 = vsub.f32 %v3699, %v3776
    %v3818 = vsub.f32 %v3704, %v3779
    %v3819 = vsub.f32 %v3709, %v3782
    %v3820 = vsub.f32 %v3714, %v3785
    %v3821 = vsub.f32 %v3719, %v3788
    %v3822 = vsub.f32 %v3724, %v3791
    %v3823 = vsub.f32 %v3729, %v3794
    %v3824 = vsub.f32 %v3734, %v3797
    %v3825 = vsub.f32 %v3739, %v3800
    %v3826 = vsub.f32 %v3744, %v3803
    %v3827 = vsub.f32 %v3749, %v3806
    %v3828 = vsub.f32 %v3754, %v3809
    %v3829 = vsub.f32 %v3759, %v3812
    %v3830 = vmul.f32 %v3813, 1.442695
    %v3831 = vpow.pop %v3830
    %v3832 = vmul.f32 %v3814, 1.442695
    %v3833 = vpow.pop %v3832
    %v3834 = vmul.f32 %v3815, 1.442695
    %v3835 = vpow.pop %v3834
    %v3836 = vmul.f32 %v3816, 1.442695
    %v3837 = vpow.pop %v3836
    %v3838 = vmul.f32 %v3817, 1.442695
    %v3839 = vpow.pop %v3838
    %v3840 = vmul.f32 %v3818, 1.442695
    %v3841 = vpow.pop %v3840
    %v3842 = vmul.f32 %v3819, 1.442695
    %v3843 = vpow.pop %v3842
    %v3844 = vmul.f32 %v3820, 1.442695
    %v3845 = vpow.pop %v3844
    %v3846 = vmul.f32 %v3821, 1.442695
    %v3847 = vpow.pop %v3846
    %v3848 = vmul.f32 %v3822, 1.442695
    %v3849 = vpow.pop %v3848
    %v3850 = vmul.f32 %v3823, 1.442695
    %v3851 = vpow.pop %v3850
    %v3852 = vmul.f32 %v3824, 1.442695
    %v3853 = vpow.pop %v3852
    %v3854 = vmul.f32 %v3825, 1.442695
    %v3855 = vpow.pop %v3854
    %v3856 = vmul.f32 %v3826, 1.442695
    %v3857 = vpow.pop %v3856
    %v3858 = vmul.f32 %v3827, 1.442695
    %v3859 = vpow.pop %v3858
    %v3860 = vmul.f32 %v3828, 1.442695
    %v3861 = vpow.pop %v3860
    %v3862 = vmul.f32 %v3829, 1.442695
    %v3863 = vpow.pop %v3862
    %v3864 = vsel %vm3315, %v3831, 0.0
    %3865 = vadd.xlane.f32.xlu0 %v3864
    %v3866 = vpop.xlane.xlu0 %3865
    %v3867 = vsel %vm3315, %v3833, 0.0
    %3868 = vadd.xlane.f32.xlu0 %v3867
    %v3869 = vpop.xlane.xlu0 %3868
    %v3870 = vsel %vm3315, %v3835, 0.0
    %3871 = vadd.xlane.f32.xlu0 %v3870
    %v3872 = vpop.xlane.xlu0 %3871
    %v3873 = vsel %vm3315, %v3837, 0.0
    %3874 = vadd.xlane.f32.xlu0 %v3873
    %v3875 = vpop.xlane.xlu0 %3874
    %v3876 = vsel %vm3315, %v3839, 0.0
    %3877 = vadd.xlane.f32.xlu0 %v3876
    %v3878 = vpop.xlane.xlu0 %3877
    %v3879 = vsel %vm3315, %v3841, 0.0
    %3880 = vadd.xlane.f32.xlu0 %v3879
    %v3881 = vpop.xlane.xlu0 %3880
    %v3882 = vsel %vm3315, %v3843, 0.0
    %3883 = vadd.xlane.f32.xlu0 %v3882
    %v3884 = vpop.xlane.xlu0 %3883
    %v3885 = vsel %vm3315, %v3845, 0.0
    %3886 = vadd.xlane.f32.xlu0 %v3885
    %v3887 = vpop.xlane.xlu0 %3886
    %v3888 = vsel %vm3315, %v3847, 0.0
    %3889 = vadd.xlane.f32.xlu0 %v3888
    %v3890 = vpop.xlane.xlu0 %3889
    %v3891 = vsel %vm3315, %v3849, 0.0
    %3892 = vadd.xlane.f32.xlu0 %v3891
    %v3893 = vpop.xlane.xlu0 %3892
    %v3894 = vsel %vm3315, %v3851, 0.0
    %3895 = vadd.xlane.f32.xlu0 %v3894
    %v3896 = vpop.xlane.xlu0 %3895
    %v3897 = vsel %vm3315, %v3853, 0.0
    %3898 = vadd.xlane.f32.xlu0 %v3897
    %v3899 = vpop.xlane.xlu0 %3898
    %v3900 = vsel %vm3315, %v3855, 0.0
    %3901 = vadd.xlane.f32.xlu0 %v3900
    %v3902 = vpop.xlane.xlu0 %3901
    %v3903 = vsel %vm3315, %v3857, 0.0
    %3904 = vadd.xlane.f32.xlu0 %v3903
    %v3905 = vpop.xlane.xlu0 %3904
    %v3906 = vsel %vm3315, %v3859, 0.0
    %3907 = vadd.xlane.f32.xlu0 %v3906
    %v3908 = vpop.xlane.xlu0 %3907
    %v3909 = vsel %vm3315, %v3861, 0.0
    %3910 = vadd.xlane.f32.xlu0 %v3909
    %v3911 = vpop.xlane.xlu0 %3910
    %v3912 = vsel %vm3315, %v3863, 0.0
    %3913 = vadd.xlane.f32.xlu0 %v3912
    %v3914 = vpop.xlane.xlu0 %3913
    %v3915 = vrcp.pop %v3866
    %v3916 = vrcp.pop %v3869
    %v3917 = vrcp.pop %v3872
    %v3918 = vrcp.pop %v3875
    %v3919 = vrcp.pop %v3878
    %v3920 = vrcp.pop %v3881
    %v3921 = vrcp.pop %v3884
    %v3922 = vrcp.pop %v3887
    %v3923 = vrcp.pop %v3890
    %v3924 = vrcp.pop %v3893
    %v3925 = vrcp.pop %v3896
    %v3926 = vrcp.pop %v3899
    %v3927 = vrcp.pop %v3902
    %v3928 = vrcp.pop %v3905
    %v3929 = vrcp.pop %v3908
    %v3930 = vrcp.pop %v3911
    %v3931 = vrcp.pop %v3914
    %v3932 = vmul.f32 %v3831, %v3915
    %v3933 = vmul.f32 %v3833, %v3916
    %v3934 = vmul.f32 %v3835, %v3917
    %v3935 = vmul.f32 %v3837, %v3918
    %v3936 = vmul.f32 %v3839, %v3919
    %v3937 = vmul.f32 %v3841, %v3920
    %v3938 = vmul.f32 %v3843, %v3921
    %v3939 = vmul.f32 %v3845, %v3922
    %v3940 = vmul.f32 %v3847, %v3923
    %v3941 = vmul.f32 %v3849, %v3924
    %v3942 = vmul.f32 %v3851, %v3925
    %v3943 = vmul.f32 %v3853, %v3926
    %v3944 = vmul.f32 %v3855, %v3927
    %v3945 = vmul.f32 %v3857, %v3928
    %v3946 = vmul.f32 %v3859, %v3929
    %v3947 = vmul.f32 %v3861, %v3930
    %v3948 = vmul.f32 %v3863, %v3931
    %3949 = vrot.lane.b32.xlu0 %v3292, 64
    %v3950 = vpop.permute.xlu0 %3949
    %3951 = vrot.lane.b32.xlu0 %v3297, 64
    %v3952 = vpop.permute.xlu0 %3951
    %3953 = vrot.lane.b32.xlu0 %v3302, 64
    %v3954 = vpop.permute.xlu0 %3953
    %3955 = vrot.lane.b32.xlu0 %v3307, 64
    %v3956 = vpop.permute.xlu0 %3955
    %3957 = vrot.lane.b32.xlu0 %v3312, 64
    %v3958 = vpop.permute.xlu0 %3957
    %v3964 = vsel %vm3315, %v3932, 0
    %v3967 = vsel %vm3315, %v3933, 0
    %v3970 = vsel %vm3315, %v3934, 0
    %v3973 = vsel %vm3315, %v3935, 0
    %v3976 = vsel %vm3315, %v3936, 0
    %v3979 = vsel %vm3315, %v3937, 0
    %v3982 = vsel %vm3315, %v3938, 0
    %v3985 = vsel %vm3315, %v3939, 0
    %v3988 = vsel %vm3315, %v3940, 0
    %v3991 = vsel %vm3315, %v3941, 0
    %v3994 = vsel %vm3315, %v3942, 0
    %v3997 = vsel %vm3315, %v3943, 0
    %v4000 = vsel %vm3315, %v3944, 0
    %v4003 = vsel %vm3315, %v3945, 0
    %v4006 = vsel %vm3315, %v3946, 0
    %v4009 = vsel %vm3315, %v3947, 0
    %v4012 = vsel %vm3315, %v3948, 0
    %v4014 = vsel %vm547, %v3958, 0
    %4016 = vmatprep.subr.mxu0 0.0
    %4017 = vmatpush1.msra.mxu0 %v3950
    %4018 = vmatprep.subr.mxu0 0.0
    %4019 = vmatpush1.msra.mxu0 %v3952
    %4020 = vmatprep.subr.mxu0 0.0
    %4021 = vmatpush1.msra.mxu0 %v3954
    %4022 = vmatprep.subr.mxu0 0.0
    %4023 = vmatpush1.msra.mxu0 %v3956
    %4024 = vmatprep.subr.mxu0 0.0
    %4025 = vmatpush1.msra.mxu0 %v4014
    %4026 = vmatprep.subr.mxu0 0.0
    %4027 = vmatpush1.msra.mxu0 0.0
    %4028 = vmatprep.subr.mxu0 0.0
    %4029 = vmatpush1.msra.mxu0 0.0
    %4030 = vmatprep.subr.mxu0 0.0
    %4031 = vmatpush1.msra.mxu0 0.0
    %4032 = vmatprep.subr.mxu0 0.0
    %4033 = vmatpush1.msra.mxu0 0.0
    %4034 = vmatprep.subr.mxu0 0.0
    %4035 = vmatpush1.msra.mxu0 0.0
    %4036 = vmatprep.subr.mxu0 0.0
    %4037 = vmatpush1.msra.mxu0 0.0
    %4038 = vmatprep.subr.mxu0 0.0
    %4039 = vmatpush1.msra.mxu0 0.0
    %4040 = vmatprep.subr.mxu0 0.0
    %4041 = vmatpush1.msra.mxu0 0.0
    %4042 = vmatprep.subr.mxu0 0.0
    %4043 = vmatpush1.msra.mxu0 0.0
    %4044 = vmatprep.subr.mxu0 0.0
    %4045 = vmatpush1.msra.mxu0 0.0
    %4046 = vmatprep.subr.mxu0 0.0
    %4047 = vmatpush1.msra.mxu0 0.0
    %4048 = vmatprep.subr.mxu0 0.0
    %4049 = vmatpush1.msra.mxu0 0.0
    %4050 = vmatprep.subr.mxu0 0.0
    %4051 = vmatpush1.msra.mxu0 0.0
    %4052 = vmatprep.subr.mxu0 0.0
    %4053 = vmatpush1.msra.mxu0 0.0
    %4054 = vmatprep.subr.mxu0 0.0
    %4055 = vmatpush1.msra.mxu0 0.0
    %4056 = vmatprep.subr.mxu0 0.0
    %4057 = vmatpush1.msra.mxu0 0.0
    %4058 = vmatprep.subr.mxu0 0.0
    %4059 = vmatpush1.msra.mxu0 0.0
    %4060 = vmatprep.subr.mxu0 0.0
    %4061 = vmatpush1.msra.mxu0 0.0
    %4062 = vmatprep.subr.mxu0 0.0
    %4063 = vmatpush1.msra.mxu0 0.0
    %4064 = vmatprep.subr.mxu0 0.0
    %4065 = vmatpush1.msra.mxu0 0.0
    %4066 = vmatprep.subr.mxu0 0.0
    %4067 = vmatpush1.msra.mxu0 0.0
    %4068 = vmatprep.subr.mxu0 0.0
    %4069 = vmatpush1.msra.mxu0 0.0
    %4070 = vmatprep.subr.mxu0 0.0
    %4071 = vmatpush1.msra.mxu0 0.0
    %4072 = vmatprep.subr.mxu0 0.0
    %4073 = vmatpush1.msra.mxu0 0.0
    %4074 = vmatprep.subr.mxu0 0.0
    %4075 = vmatpush1.msra.mxu0 0.0
    %4076 = vmatprep.subr.mxu0 0.0
    %4077 = vmatpush1.msra.mxu0 0.0
    %4078 = vmatprep.subr.mxu0 0.0
    %4079 = vmatpush1.msra.mxu0 0.0
    %4080 = vmatprep.mubr.f32.mxu0 0.0
    %4081 = vmatmul.mubr.f32.gmra.mrb[0].mxu0 %v3964
    %v4082 = vpop.f32.mrb[0].mxu0
    %v4083 = vadd.f32 0.0, %v4082
    %v4084 = vpop.f32.mrb[0].mxu0
    %4085 = vmatprep.mubr.f32.mxu0 0.0
    %4086 = vmatmul.mubr.f32.gmra.mrb[0].mxu0 %v3967
    %v4087 = vpop.f32.mrb[0].mxu0
    %v4088 = vadd.f32 0.0, %v4087
    %v4089 = vpop.f32.mrb[0].mxu0
    %4090 = vmatprep.mubr.f32.mxu0 0.0
    %4091 = vmatmul.mubr.f32.gmra.mrb[0].mxu0 %v3970
    %v4092 = vpop.f32.mrb[0].mxu0
    %v4093 = vadd.f32 0.0, %v4092
    %v4094 = vpop.f32.mrb[0].mxu0
    %4095 = vmatprep.mubr.f32.mxu0 0.0
    %4096 = vmatmul.mubr.f32.gmra.mrb[0].mxu0 %v3973
    %v4097 = vpop.f32.mrb[0].mxu0
    %v4098 = vadd.f32 0.0, %v4097
    %v4099 = vpop.f32.mrb[0].mxu0
    %4100 = vmatprep.mubr.f32.mxu0 0.0
    %4101 = vmatmul.mubr.f32.gmra.mrb[0].mxu0 %v3976
    %v4102 = vpop.f32.mrb[0].mxu0
    %v4103 = vadd.f32 0.0, %v4102
    %v4104 = vpop.f32.mrb[0].mxu0
    %4105 = vmatprep.mubr.f32.mxu0 0.0
    %4106 = vmatmul.mubr.f32.gmra.mrb[0].mxu0 %v3979
    %v4107 = vpop.f32.mrb[0].mxu0
    %v4108 = vadd.f32 0.0, %v4107
    %v4109 = vpop.f32.mrb[0].mxu0
    %4110 = vmatprep.mubr.f32.mxu0 0.0
    %4111 = vmatmul.mubr.f32.gmra.mrb[0].mxu0 %v3982
    %v4112 = vpop.f32.mrb[0].mxu0
    %v4113 = vadd.f32 0.0, %v4112
    %v4114 = vpop.f32.mrb[0].mxu0
    %4115 = vmatprep.mubr.f32.mxu0 0.0
    %4116 = vmatmul.mubr.f32.gmra.mrb[0].mxu0 %v3985
    %v4117 = vpop.f32.mrb[0].mxu0
    %v4118 = vadd.f32 0.0, %v4117
    %v4119 = vpop.f32.mrb[0].mxu0
    %4120 = vmatprep.mubr.f32.mxu0 0.0
    %4121 = vmatmul.mubr.f32.gmra.mrb[0].mxu0 %v3988
    %v4122 = vpop.f32.mrb[0].mxu0
    %v4123 = vadd.f32 0.0, %v4122
    %v4124 = vpop.f32.mrb[0].mxu0
    %4125 = vmatprep.mubr.f32.mxu0 0.0
    %4126 = vmatmul.mubr.f32.gmra.mrb[0].mxu0 %v3991
    %v4127 = vpop.f32.mrb[0].mxu0
    %v4128 = vadd.f32 0.0, %v4127
    %v4129 = vpop.f32.mrb[0].mxu0
    %4130 = vmatprep.mubr.f32.mxu0 0.0
    %4131 = vmatmul.mubr.f32.gmra.mrb[0].mxu0 %v3994
    %v4132 = vpop.f32.mrb[0].mxu0
    %v4133 = vadd.f32 0.0, %v4132
    %v4134 = vpop.f32.mrb[0].mxu0
    %4135 = vmatprep.mubr.f32.mxu0 0.0
    %4136 = vmatmul.mubr.f32.gmra.mrb[0].mxu0 %v3997
    %v4137 = vpop.f32.mrb[0].mxu0
    %v4138 = vadd.f32 0.0, %v4137
    %v4139 = vpop.f32.mrb[0].mxu0
    %4140 = vmatprep.mubr.f32.mxu0 0.0
    %4141 = vmatmul.mubr.f32.gmra.mrb[0].mxu0 %v4000
    %v4142 = vpop.f32.mrb[0].mxu0
    %v4143 = vadd.f32 0.0, %v4142
    %v4144 = vpop.f32.mrb[0].mxu0
    %4145 = vmatprep.mubr.f32.mxu0 0.0
    %4146 = vmatmul.mubr.f32.gmra.mrb[0].mxu0 %v4003
    %v4147 = vpop.f32.mrb[0].mxu0
    %v4148 = vadd.f32 0.0, %v4147
    %v4149 = vpop.f32.mrb[0].mxu0
    %4150 = vmatprep.mubr.f32.mxu0 0.0
    %4151 = vmatmul.mubr.f32.gmra.mrb[0].mxu0 %v4006
    %v4152 = vpop.f32.mrb[0].mxu0
    %v4153 = vadd.f32 0.0, %v4152
    %v4154 = vpop.f32.mrb[0].mxu0
    %4155 = vmatprep.mubr.f32.mxu0 0.0
    %4156 = vmatmul.mubr.f32.gmra.mrb[0].mxu0 %v4009
    %v4157 = vpop.f32.mrb[0].mxu0
    %v4158 = vadd.f32 0.0, %v4157
    %v4159 = vpop.f32.mrb[0].mxu0
    %4160 = vmatprep.mubr.f32.mxu0 0.0
    %4161 = vmatmul.mubr.f32.gmra.mrb[0].mxu0 %v4012
    %v4162 = vpop.f32.mrb[0].mxu0
    %v4163 = vadd.f32 0.0, %v4162
    %v4164 = vpop.f32.mrb[0].mxu0
    %4165 = vdwg.mxu0
    %v4166 = vmul.f32 %v4083, %v3045
    %v4167 = vmul.f32 %v4088, %v3046
    %v4168 = vmul.f32 %v4093, %v3047
    %v4169 = vmul.f32 %v4098, %v3048
    %v4170 = vmul.f32 %v4103, %v3049
    %v4171 = vmul.f32 %v4108, %v3050
    %v4172 = vmul.f32 %v4113, %v3051
    %v4173 = vmul.f32 %v4118, %v3052
    %v4174 = vmul.f32 %v4123, %v3053
    %v4175 = vmul.f32 %v4128, %v3054
    %v4176 = vmul.f32 %v4133, %v3055
    %v4177 = vmul.f32 %v4138, %v3056
    %v4178 = vmul.f32 %v4143, %v3057
    %v4179 = vmul.f32 %v4148, %v3058
    %v4180 = vmul.f32 %v4153, %v3059
    %v4181 = vmul.f32 %v4158, %v3060
    %v4182 = vmul.f32 %v4163, %v3061
    %vm4183 = vcmask 64512
    %v4185 = vsel %vm4183, %v3036, 0
    %v4188 = vsel %vm4183, %v3038, 0
    %v4191 = vsel %vm4183, %v3040, 0
    %v4194 = vsel %vm4183, %v3042, 0
    %v4197 = vsel %vm4183, %v3044, 0
    %4199 = vmatprep.subr.mxu0 0.0
    %4200 = vmatpush1.msra.mxu0 %v4166
    %4201 = vmatprep.subr.mxu0 0.0
    %4202 = vmatpush1.msra.mxu0 %v4167
    %4203 = vmatprep.subr.mxu0 0.0
    %4204 = vmatpush1.msra.mxu0 %v4168
    %4205 = vmatprep.subr.mxu0 0.0
    %4206 = vmatpush1.msra.mxu0 %v4169
    %4207 = vmatprep.subr.mxu0 0.0
    %4208 = vmatpush1.msra.mxu0 %v4170
    %4209 = vmatprep.subr.mxu0 0.0
    %4210 = vmatpush1.msra.mxu0 %v4171
    %4211 = vmatprep.subr.mxu0 0.0
    %4212 = vmatpush1.msra.mxu0 %v4172
    %4213 = vmatprep.subr.mxu0 0.0
    %4214 = vmatpush1.msra.mxu0 %v4173
    %4215 = vmatprep.subr.mxu0 0.0
    %4216 = vmatpush1.msra.mxu0 %v4174
    %4217 = vmatprep.subr.mxu0 0.0
    %4218 = vmatpush1.msra.mxu0 %v4175
    %4219 = vmatprep.subr.mxu0 0.0
    %4220 = vmatpush1.msra.mxu0 %v4176
    %4221 = vmatprep.subr.mxu0 0.0
    %4222 = vmatpush1.msra.mxu0 %v4177
    %4223 = vmatprep.subr.mxu0 0.0
    %4224 = vmatpush1.msra.mxu0 %v4178
    %4225 = vmatprep.subr.mxu0 0.0
    %4226 = vmatpush1.msra.mxu0 %v4179
    %4227 = vmatprep.subr.mxu0 0.0
    %4228 = vmatpush1.msra.mxu0 %v4180
    %4229 = vmatprep.subr.mxu0 0.0
    %4230 = vmatpush1.msra.mxu0 %v4181
    %4231 = vmatprep.subr.mxu0 0.0
    %4232 = vmatpush1.msra.mxu0 %v4182
    %4233 = vmatprep.subr.mxu0 0.0
    %4234 = vmatpush1.msra.mxu0 0.0
    %4235 = vmatprep.subr.mxu0 0.0
    %4236 = vmatpush1.msra.mxu0 0.0
    %4237 = vmatprep.subr.mxu0 0.0
    %4238 = vmatpush1.msra.mxu0 0.0
    %4239 = vmatprep.subr.mxu0 0.0
    %4240 = vmatpush1.msra.mxu0 0.0
    %4241 = vmatprep.subr.mxu0 0.0
    %4242 = vmatpush1.msra.mxu0 0.0
    %4243 = vmatprep.subr.mxu0 0.0
    %4244 = vmatpush1.msra.mxu0 0.0
    %4245 = vmatprep.subr.mxu0 0.0
    %4246 = vmatpush1.msra.mxu0 0.0
    %4247 = vmatprep.subr.mxu0 0.0
    %4248 = vmatpush1.msra.mxu0 0.0
    %4249 = vmatprep.subr.mxu0 0.0
    %4250 = vmatpush1.msra.mxu0 0.0
    %4251 = vmatprep.subr.mxu0 0.0
    %4252 = vmatpush1.msra.mxu0 0.0
    %4253 = vmatprep.subr.mxu0 0.0
    %4254 = vmatpush1.msra.mxu0 0.0
    %4255 = vmatprep.subr.mxu0 0.0
    %4256 = vmatpush1.msra.mxu0 0.0
    %4257 = vmatprep.subr.mxu0 0.0
    %4258 = vmatpush1.msra.mxu0 0.0
    %4259 = vmatprep.subr.mxu0 0.0
    %4260 = vmatpush1.msra.mxu0 0.0
    %4261 = vmatprep.subr.mxu0 0.0
    %4262 = vmatpush1.msra.mxu0 0.0
    %4263 = vmatprep.mubr.f32.mxu0 %v4185
    %4264 = vmatmul.mubr.f32.gmra.mrb[0].mxu0 %v3035
    %v4265 = vpop.f32.mrb[0].mxu0
    %v4266 = vadd.f32 0.0, %v4265
    %v4267 = vpop.f32.mrb[0].mxu0
    %4268 = vmatprep.mubr.f32.mxu0 %v4188
    %4269 = vmatmul.mubr.f32.gmra.mrb[0].mxu0 %v3037
    %v4270 = vpop.f32.mrb[0].mxu0
    %v4271 = vadd.f32 0.0, %v4270
    %v4272 = vpop.f32.mrb[0].mxu0
    %4273 = vmatprep.mubr.f32.mxu0 %v4191
    %4274 = vmatmul.mubr.f32.gmra.mrb[0].mxu0 %v3039
    %v4275 = vpop.f32.mrb[0].mxu0
    %v4276 = vadd.f32 0.0, %v4275
    %v4277 = vpop.f32.mrb[0].mxu0
    %4278 = vmatprep.mubr.f32.mxu0 %v4194
    %4279 = vmatmul.mubr.f32.gmra.mrb[0].mxu0 %v3041
    %v4280 = vpop.f32.mrb[0].mxu0
    %v4281 = vadd.f32 0.0, %v4280
    %v4282 = vpop.f32.mrb[0].mxu0
    %4283 = vmatprep.mubr.f32.mxu0 %v4197
    %4284 = vmatmul.mubr.f32.gmra.mrb[0].mxu0 %v3043
    %v4285 = vpop.f32.mrb[0].mxu0
    %v4286 = vadd.f32 0.0, %v4285
    %v4287 = vpop.f32.mrb[0].mxu0
    %4288 = vdwg.mxu0
    %v4290 = vlaneseq
    %v4291 = vshrl.u32 %v4290, 7
    %v4292 = vsub.s32 0, %v4291
    %v4293 = vrot.slane %v3090, %v4292
    %v4296 = vsel %vm358, %v4266, 0
    %v4299 = vsel %vm358, %v4271, 0
    %v4302 = vsel %vm358, %v4276, 0
    %v4305 = vsel %vm358, %v4281, 0
    %v4308 = vsel %vm358, %v4286, 0
    %4310 = vmatprep.subr.mxu0 0.0
    %4311 = vmatpush1.msra.mxu0 %v3086
    %4312 = vmatprep.subr.mxu0 0.0
    %4313 = vmatpush1.msra.mxu0 %v3087
    %4314 = vmatprep.subr.mxu0 0.0
    %4315 = vmatpush1.msra.mxu0 %v3088
    %4316 = vmatprep.subr.mxu0 0.0
    %4317 = vmatpush1.msra.mxu0 %v3089
    %4318 = vmatprep.subr.mxu0 0.0
    %4319 = vmatpush1.msra.mxu0 0.0
    %4320 = vmatprep.subr.mxu0 0.0
    %4321 = vmatpush1.msra.mxu0 0.0
    %4322 = vmatprep.subr.mxu0 0.0
    %4323 = vmatpush1.msra.mxu0 0.0
    %4324 = vmatprep.subr.mxu0 0.0
    %4325 = vmatpush1.msra.mxu0 0.0
    %4326 = vmatprep.subr.mxu0 0.0
    %4327 = vmatpush1.msra.mxu0 0.0
    %4328 = vmatprep.subr.mxu0 0.0
    %4329 = vmatpush1.msra.mxu0 0.0
    %4330 = vmatprep.subr.mxu0 0.0
    %4331 = vmatpush1.msra.mxu0 0.0
    %4332 = vmatprep.subr.mxu0 0.0
    %4333 = vmatpush1.msra.mxu0 0.0
    %4334 = vmatprep.subr.mxu0 0.0
    %4335 = vmatpush1.msra.mxu0 0.0
    %4336 = vmatprep.subr.mxu0 0.0
    %4337 = vmatpush1.msra.mxu0 0.0
    %4338 = vmatprep.subr.mxu0 0.0
    %4339 = vmatpush1.msra.mxu0 0.0
    %4340 = vmatprep.subr.mxu0 0.0
    %4341 = vmatpush1.msra.mxu0 0.0
    %4342 = vmatprep.subr.mxu0 0.0
    %4343 = vmatpush1.msra.mxu0 0.0
    %4344 = vmatprep.subr.mxu0 0.0
    %4345 = vmatpush1.msra.mxu0 0.0
    %4346 = vmatprep.subr.mxu0 0.0
    %4347 = vmatpush1.msra.mxu0 0.0
    %4348 = vmatprep.subr.mxu0 0.0
    %4349 = vmatpush1.msra.mxu0 0.0
    %4350 = vmatprep.subr.mxu0 0.0
    %4351 = vmatpush1.msra.mxu0 0.0
    %4352 = vmatprep.subr.mxu0 0.0
    %4353 = vmatpush1.msra.mxu0 0.0
    %4354 = vmatprep.subr.mxu0 0.0
    %4355 = vmatpush1.msra.mxu0 0.0
    %4356 = vmatprep.subr.mxu0 0.0
    %4357 = vmatpush1.msra.mxu0 0.0
    %4358 = vmatprep.subr.mxu0 0.0
    %4359 = vmatpush1.msra.mxu0 0.0
    %4360 = vmatprep.subr.mxu0 0.0
    %4361 = vmatpush1.msra.mxu0 0.0
    %4362 = vmatprep.subr.mxu0 0.0
    %4363 = vmatpush1.msra.mxu0 0.0
    %4364 = vmatprep.subr.mxu0 0.0
    %4365 = vmatpush1.msra.mxu0 0.0
    %4366 = vmatprep.subr.mxu0 0.0
    %4367 = vmatpush1.msra.mxu0 0.0
    %4368 = vmatprep.subr.mxu0 0.0
    %4369 = vmatpush1.msra.mxu0 0.0
    %4370 = vmatprep.subr.mxu0 0.0
    %4371 = vmatpush1.msra.mxu0 0.0
    %4372 = vmatprep.subr.mxu0 0.0
    %4373 = vmatpush1.msra.mxu0 0.0
    %4374 = vmatprep.mubr.f32.mxu0 0.0
    %4375 = vmatmul.mubr.f32.gmra.mrb[0].mxu0 %v4296
    %v4376 = vpop.f32.mrb[0].mxu0
    %v4377 = vadd.f32 %v4293, %v4376
    %v4378 = vpop.f32.mrb[0].mxu0
    %4379 = vmatprep.mubr.f32.mxu0 0.0
    %4380 = vmatmul.mubr.f32.gmra.mrb[0].mxu0 %v4299
    %v4381 = vpop.f32.mrb[0].mxu0
    %v4382 = vadd.f32 %v4293, %v4381
    %v4383 = vpop.f32.mrb[0].mxu0
    %4384 = vmatprep.mubr.f32.mxu0 0.0
    %4385 = vmatmul.mubr.f32.gmra.mrb[0].mxu0 %v4302
    %v4386 = vpop.f32.mrb[0].mxu0
    %v4387 = vadd.f32 %v4293, %v4386
    %v4388 = vpop.f32.mrb[0].mxu0
    %4389 = vmatprep.mubr.f32.mxu0 0.0
    %4390 = vmatmul.mubr.f32.gmra.mrb[0].mxu0 %v4305
    %v4391 = vpop.f32.mrb[0].mxu0
    %v4392 = vadd.f32 %v4293, %v4391
    %v4393 = vpop.f32.mrb[0].mxu0
    %4394 = vmatprep.mubr.f32.mxu0 0.0
    %4395 = vmatmul.mubr.f32.gmra.mrb[0].mxu0 %v4308
    %v4396 = vpop.f32.mrb[0].mxu0
    %v4397 = vadd.f32 %v4293, %v4396
    %v4398 = vpop.f32.mrb[0].mxu0
    %4399 = vdwg.mxu0
    %v4400 = vadd.f32 %v2995, %v4377
    %v4401 = vadd.f32 %v3000, %v4382
    %v4402 = vadd.f32 %v3005, %v4387
    %v4403 = vadd.f32 %v3010, %v4392
    %v4404 = vadd.f32 %v3015, %v4397
    %v4405 = vsel %vm358, %v4400, 0.0
    %4406 = vadd.xlane.f32.xlu0 %v4405
    %v4407 = vpop.xlane.xlu0 %4406
    %v4408 = vsel %vm358, %v4401, 0.0
    %4409 = vadd.xlane.f32.xlu0 %v4408
    %v4410 = vpop.xlane.xlu0 %4409
    %v4411 = vsel %vm358, %v4402, 0.0
    %4412 = vadd.xlane.f32.xlu0 %v4411
    %v4413 = vpop.xlane.xlu0 %4412
    %v4414 = vsel %vm358, %v4403, 0.0
    %4415 = vadd.xlane.f32.xlu0 %v4414
    %v4416 = vpop.xlane.xlu0 %4415
    %v4417 = vsel %vm365, %v4404, 0.0
    %4418 = vadd.xlane.f32.xlu0 %v4417
    %v4419 = vpop.xlane.xlu0 %4418
    %v4420 = vmul.f32 %v4407, %v369
    %v4421 = vmul.f32 %v4410, %v369
    %v4422 = vmul.f32 %v4413, %v369
    %v4423 = vmul.f32 %v4416, %v369
    %v4424 = vmul.f32 %v4419, %v369
    %v4425 = vmul.f32 %v4400, %v4400
    %v4426 = vmul.f32 %v4401, %v4401
    %v4427 = vmul.f32 %v4402, %v4402
    %v4428 = vmul.f32 %v4403, %v4403
    %v4429 = vmul.f32 %v4404, %v4404
    %v4430 = vsel %vm358, %v4425, 0.0
    %4431 = vadd.xlane.f32.xlu0 %v4430
    %v4432 = vpop.xlane.xlu0 %4431
    %v4433 = vsel %vm358, %v4426, 0.0
    %4434 = vadd.xlane.f32.xlu0 %v4433
    %v4435 = vpop.xlane.xlu0 %4434
    %v4436 = vsel %vm358, %v4427, 0.0
    %4437 = vadd.xlane.f32.xlu0 %v4436
    %v4438 = vpop.xlane.xlu0 %4437
    %v4439 = vsel %vm358, %v4428, 0.0
    %4440 = vadd.xlane.f32.xlu0 %v4439
    %v4441 = vpop.xlane.xlu0 %4440
    %v4442 = vsel %vm365, %v4429, 0.0
    %4443 = vadd.xlane.f32.xlu0 %v4442
    %v4444 = vpop.xlane.xlu0 %4443
    %v4445 = vmul.f32 %v4432, %v369
    %v4446 = vmul.f32 %v4435, %v369
    %v4447 = vmul.f32 %v4438, %v369
    %v4448 = vmul.f32 %v4441, %v369
    %v4449 = vmul.f32 %v4444, %v369
    %v4450 = vmul.f32 %v4420, %v4420
    %v4451 = vmul.f32 %v4421, %v4421
    %v4452 = vmul.f32 %v4422, %v4422
    %v4453 = vmul.f32 %v4423, %v4423
    %v4454 = vmul.f32 %v4424, %v4424
    %v4455 = vsub.f32 %v4445, %v4450
    %v4456 = vsub.f32 %v4446, %v4451
    %v4457 = vsub.f32 %v4447, %v4452
    %v4458 = vsub.f32 %v4448, %v4453
    %v4459 = vsub.f32 %v4449, %v4454
    %v4460 = vadd.f32 %v4455, 1e-05
    %v4461 = vadd.f32 %v4456, 1e-05
    %v4462 = vadd.f32 %v4457, 1e-05
    %v4463 = vadd.f32 %v4458, 1e-05
    %v4464 = vadd.f32 %v4459, 1e-05
    %v4465 = vrsqrt.pop %v4460
    %v4466 = vrsqrt.pop %v4461
    %v4467 = vrsqrt.pop %v4462
    %v4468 = vrsqrt.pop %v4463
    %v4469 = vrsqrt.pop %v4464
    %v4470 = vsub.f32 %v4400, %v4420
    %v4471 = vsub.f32 %v4401, %v4421
    %v4472 = vsub.f32 %v4402, %v4422
    %v4473 = vsub.f32 %v4403, %v4423
    %v4474 = vsub.f32 %v4404, %v4424
    %v4475 = vmul.f32 %v4470, %v4465
    %v4476 = vmul.f32 %v4471, %v4466
    %v4477 = vmul.f32 %v4472, %v4467
    %v4478 = vmul.f32 %v4473, %v4468
    %v4479 = vmul.f32 %v4474, %v4469
    %v4481 = vlaneseq
    %v4482 = vshrl.u32 %v4481, 7
    %v4483 = vsub.s32 0, %v4482
    %v4484 = vrot.slane %v3091, %v4483
    %v4486 = vmul.f32 %v4475, %v4484
    %v4487 = vmul.f32 %v4476, %v4484
    %v4488 = vmul.f32 %v4477, %v4484
    %v4489 = vmul.f32 %v4478, %v4484
    %v4490 = vmul.f32 %v4479, %v4484
    %v4492 = vlaneseq
    %v4493 = vshrl.u32 %v4492, 7
    %v4494 = vsub.s32 0, %v4493
    %v4495 = vrot.slane %v3092, %v4494
    %v4497 = vadd.f32 %v4486, %v4495
    %v4498 = vadd.f32 %v4487, %v4495
    %v4499 = vadd.f32 %v4488, %v4495
    %v4500 = vadd.f32 %v4489, %v4495
    %v4501 = vadd.f32 %v4490, %v4495
    %v4503 = vlaneseq
    %v4504 = vshrl.u32 %v4503, 7
    %v4505 = vsub.s32 0, %v4504
    %v4506 = vrot.slane %v3097, %v4505
    %v4509 = vsel %vm358, %v4497, 0
    %v4512 = vsel %vm358, %v4498, 0
    %v4515 = vsel %vm358, %v4499, 0
    %v4518 = vsel %vm358, %v4500, 0
    %v4521 = vsel %vm358, %v4501, 0
    %4523 = vmatprep.subr.mxu0 0.0
    %4524 = vmatpush1.msra.mxu0 %v3093
    %4525 = vmatprep.subr.mxu0 0.0
    %4526 = vmatpush1.msra.mxu0 %v3094
    %4527 = vmatprep.subr.mxu0 0.0
    %4528 = vmatpush1.msra.mxu0 %v3095
    %4529 = vmatprep.subr.mxu0 0.0
    %4530 = vmatpush1.msra.mxu0 %v3096
    %4531 = vmatprep.subr.mxu0 0.0
    %4532 = vmatpush1.msra.mxu0 0.0
    %4533 = vmatprep.subr.mxu0 0.0
    %4534 = vmatpush1.msra.mxu0 0.0
    %4535 = vmatprep.subr.mxu0 0.0
    %4536 = vmatpush1.msra.mxu0 0.0
    %4537 = vmatprep.subr.mxu0 0.0
    %4538 = vmatpush1.msra.mxu0 0.0
    %4539 = vmatprep.subr.mxu0 0.0
    %4540 = vmatpush1.msra.mxu0 0.0
    %4541 = vmatprep.subr.mxu0 0.0
    %4542 = vmatpush1.msra.mxu0 0.0
    %4543 = vmatprep.subr.mxu0 0.0
    %4544 = vmatpush1.msra.mxu0 0.0
    %4545 = vmatprep.subr.mxu0 0.0
    %4546 = vmatpush1.msra.mxu0 0.0
    %4547 = vmatprep.subr.mxu0 0.0
    %4548 = vmatpush1.msra.mxu0 0.0
    %4549 = vmatprep.subr.mxu0 0.0
    %4550 = vmatpush1.msra.mxu0 0.0
    %4551 = vmatprep.subr.mxu0 0.0
    %4552 = vmatpush1.msra.mxu0 0.0
    %4553 = vmatprep.subr.mxu0 0.0
    %4554 = vmatpush1.msra.mxu0 0.0
    %4555 = vmatprep.subr.mxu0 0.0
    %4556 = vmatpush1.msra.mxu0 0.0
    %4557 = vmatprep.subr.mxu0 0.0
    %4558 = vmatpush1.msra.mxu0 0.0
    %4559 = vmatprep.subr.mxu0 0.0
    %4560 = vmatpush1.msra.mxu0 0.0
    %4561 = vmatprep.subr.mxu0 0.0
    %4562 = vmatpush1.msra.mxu0 0.0
    %4563 = vmatprep.subr.mxu0 0.0
    %4564 = vmatpush1.msra.mxu0 0.0
    %4565 = vmatprep.subr.mxu0 0.0
    %4566 = vmatpush1.msra.mxu0 0.0
    %4567 = vmatprep.subr.mxu0 0.0
    %4568 = vmatpush1.msra.mxu0 0.0
    %4569 = vmatprep.subr.mxu0 0.0
    %4570 = vmatpush1.msra.mxu0 0.0
    %4571 = vmatprep.subr.mxu0 0.0
    %4572 = vmatpush1.msra.mxu0 0.0
    %4573 = vmatprep.subr.mxu0 0.0
    %4574 = vmatpush1.msra.mxu0 0.0
    %4575 = vmatprep.subr.mxu0 0.0
    %4576 = vmatpush1.msra.mxu0 0.0
    %4577 = vmatprep.subr.mxu0 0.0
    %4578 = vmatpush1.msra.mxu0 0.0
    %4579 = vmatprep.subr.mxu0 0.0
    %4580 = vmatpush1.msra.mxu0 0.0
    %4581 = vmatprep.subr.mxu0 0.0
    %4582 = vmatpush1.msra.mxu0 0.0
    %4583 = vmatprep.subr.mxu0 0.0
    %4584 = vmatpush1.msra.mxu0 0.0
    %4585 = vmatprep.subr.mxu0 0.0
    %4586 = vmatpush1.msra.mxu0 0.0
    %4587 = vmatprep.mubr.f32.mxu0 0.0
    %4588 = vmatmul.mubr.f32.gmra.mrb[0].mxu0 %v4509
    %v4589 = vpop.f32.mrb[0].mxu0
    %v4590 = vadd.f32 %v4506, %v4589
    %v4591 = vpop.f32.mrb[0].mxu0
    %4592 = vmatprep.mubr.f32.mxu0 0.0
    %4593 = vmatmul.mubr.f32.gmra.mrb[0].mxu0 %v4512
    %v4594 = vpop.f32.mrb[0].mxu0
    %v4595 = vadd.f32 %v4506, %v4594
    %v4596 = vpop.f32.mrb[0].mxu0
    %4597 = vmatprep.mubr.f32.mxu0 0.0
    %4598 = vmatmul.mubr.f32.gmra.mrb[0].mxu0 %v4515
    %v4599 = vpop.f32.mrb[0].mxu0
    %v4600 = vadd.f32 %v4506, %v4599
    %v4601 = vpop.f32.mrb[0].mxu0
    %4602 = vmatprep.mubr.f32.mxu0 0.0
    %4603 = vmatmul.mubr.f32.gmra.mrb[0].mxu0 %v4518
    %v4604 = vpop.f32.mrb[0].mxu0
    %v4605 = vadd.f32 %v4506, %v4604
    %v4606 = vpop.f32.mrb[0].mxu0
    %4607 = vmatprep.mubr.f32.mxu0 0.0
    %4608 = vmatmul.mubr.f32.gmra.mrb[0].mxu0 %v4521
    %v4609 = vpop.f32.mrb[0].mxu0
    %v4610 = vadd.f32 %v4506, %v4609
    %v4611 = vpop.f32.mrb[0].mxu0
    %4612 = vdwg.mxu0
    %v4613 = vmul.f32 %v4590, %v4590
    %v4614 = vmul.f32 %v4595, %v4595
    %v4615 = vmul.f32 %v4600, %v4600
    %v4616 = vmul.f32 %v4605, %v4605
    %v4617 = vmul.f32 %v4610, %v4610
    %v4618 = vmul.f32 %v4590, %v4613
    %v4619 = vmul.f32 %v4595, %v4614
    %v4620 = vmul.f32 %v4600, %v4615
    %v4621 = vmul.f32 %v4605, %v4616
    %v4622 = vmul.f32 %v4610, %v4617
    %v4623 = vmul.f32 %v4618, 0.044715
    %v4624 = vmul.f32 %v4619, 0.044715
    %v4625 = vmul.f32 %v4620, 0.044715
    %v4626 = vmul.f32 %v4621, 0.044715
    %v4627 = vmul.f32 %v4622, 0.044715
    %v4628 = vadd.f32 %v4590, %v4623
    %v4629 = vadd.f32 %v4595, %v4624
    %v4630 = vadd.f32 %v4600, %v4625
    %v4631 = vadd.f32 %v4605, %v4626
    %v4632 = vadd.f32 %v4610, %v4627
    %v4633 = vmul.f32 %v4628, 0.7978846
    %v4634 = vmul.f32 %v4629, 0.7978846
    %v4635 = vmul.f32 %v4630, 0.7978846
    %v4636 = vmul.f32 %v4631, 0.7978846
    %v4637 = vmul.f32 %v4632, 0.7978846
    %v4638 = vtanh.pop %v4633
    %v4639 = vtanh.pop %v4634
    %v4640 = vtanh.pop %v4635
    %v4641 = vtanh.pop %v4636
    %v4642 = vtanh.pop %v4637
    %v4643 = vadd.f32 %v4638, 1.0
    %v4644 = vadd.f32 %v4639, 1.0
    %v4645 = vadd.f32 %v4640, 1.0
    %v4646 = vadd.f32 %v4641, 1.0
    %v4647 = vadd.f32 %v4642, 1.0
    %v4648 = vmul.f32 %v4643, 0.5
    %v4649 = vmul.f32 %v4644, 0.5
    %v4650 = vmul.f32 %v4645, 0.5
    %v4651 = vmul.f32 %v4646, 0.5
    %v4652 = vmul.f32 %v4647, 0.5
    %v4653 = vmul.f32 %v4590, %v4648
    %v4654 = vmul.f32 %v4595, %v4649
    %v4655 = vmul.f32 %v4600, %v4650
    %v4656 = vmul.f32 %v4605, %v4651
    %v4657 = vmul.f32 %v4610, %v4652
    %v4659 = vlaneseq
    %v4660 = vshrl.u32 %v4659, 7
    %v4661 = vsub.s32 0, %v4660
    %v4662 = vrot.slane %v3106, %v4661
    %v4665 = vsel %vm1455, %v4653, 0
    %v4668 = vsel %vm1455, %v4654, 0
    %v4671 = vsel %vm1455, %v4655, 0
    %v4674 = vsel %vm1455, %v4656, 0
    %v4677 = vsel %vm1455, %v4657, 0
    %4679 = vmatprep.subr.mxu0 0.0
    %4680 = vmatpush1.msra.mxu0 %v3098
    %4681 = vmatprep.subr.mxu0 0.0
    %4682 = vmatpush1.msra.mxu0 %v3099
    %4683 = vmatprep.subr.mxu0 0.0
    %4684 = vmatpush1.msra.mxu0 %v3100
    %4685 = vmatprep.subr.mxu0 0.0
    %4686 = vmatpush1.msra.mxu0 %v3101
    %4687 = vmatprep.subr.mxu0 0.0
    %4688 = vmatpush1.msra.mxu0 %v3102
    %4689 = vmatprep.subr.mxu0 0.0
    %4690 = vmatpush1.msra.mxu0 %v3103
    %4691 = vmatprep.subr.mxu0 0.0
    %4692 = vmatpush1.msra.mxu0 %v3104
    %4693 = vmatprep.subr.mxu0 0.0
    %4694 = vmatpush1.msra.mxu0 %v3105
    %4695 = vmatprep.subr.mxu0 0.0
    %4696 = vmatpush1.msra.mxu0 0.0
    %4697 = vmatprep.subr.mxu0 0.0
    %4698 = vmatpush1.msra.mxu0 0.0
    %4699 = vmatprep.subr.mxu0 0.0
    %4700 = vmatpush1.msra.mxu0 0.0
    %4701 = vmatprep.subr.mxu0 0.0
    %4702 = vmatpush1.msra.mxu0 0.0
    %4703 = vmatprep.subr.mxu0 0.0
    %4704 = vmatpush1.msra.mxu0 0.0
    %4705 = vmatprep.subr.mxu0 0.0
    %4706 = vmatpush1.msra.mxu0 0.0
    %4707 = vmatprep.subr.mxu0 0.0
    %4708 = vmatpush1.msra.mxu0 0.0
    %4709 = vmatprep.subr.mxu0 0.0
    %4710 = vmatpush1.msra.mxu0 0.0
    %4711 = vmatprep.subr.mxu0 0.0
    %4712 = vmatpush1.msra.mxu0 0.0
    %4713 = vmatprep.subr.mxu0 0.0
    %4714 = vmatpush1.msra.mxu0 0.0
    %4715 = vmatprep.subr.mxu0 0.0
    %4716 = vmatpush1.msra.mxu0 0.0
    %4717 = vmatprep.subr.mxu0 0.0
    %4718 = vmatpush1.msra.mxu0 0.0
    %4719 = vmatprep.subr.mxu0 0.0
    %4720 = vmatpush1.msra.mxu0 0.0
    %4721 = vmatprep.subr.mxu0 0.0
    %4722 = vmatpush1.msra.mxu0 0.0
    %4723 = vmatprep.subr.mxu0 0.0
    %4724 = vmatpush1.msra.mxu0 0.0
    %4725 = vmatprep.subr.mxu0 0.0
    %4726 = vmatpush1.msra.mxu0 0.0
    %4727 = vmatprep.subr.mxu0 0.0
    %4728 = vmatpush1.msra.mxu0 0.0
    %4729 = vmatprep.subr.mxu0 0.0
    %4730 = vmatpush1.msra.mxu0 0.0
    %4731 = vmatprep.subr.mxu0 0.0
    %4732 = vmatpush1.msra.mxu0 0.0
    %4733 = vmatprep.subr.mxu0 0.0
    %4734 = vmatpush1.msra.mxu0 0.0
    %4735 = vmatprep.subr.mxu0 0.0
    %4736 = vmatpush1.msra.mxu0 0.0
    %4737 = vmatprep.subr.mxu0 0.0
    %4738 = vmatpush1.msra.mxu0 0.0
    %4739 = vmatprep.subr.mxu0 0.0
    %4740 = vmatpush1.msra.mxu0 0.0
    %4741 = vmatprep.subr.mxu0 0.0
    %4742 = vmatpush1.msra.mxu0 0.0
    %4743 = vmatprep.mubr.f32.mxu0 0.0
    %4744 = vmatmul.mubr.f32.gmra.mrb[0].mxu0 %v4665
    %v4745 = vpop.f32.mrb[0].mxu0
    %v4746 = vadd.f32 %v4662, %v4745
    %v4747 = vpop.f32.mrb[0].mxu0
    %4748 = vmatprep.mubr.f32.mxu0 0.0
    %4749 = vmatmul.mubr.f32.gmra.mrb[0].mxu0 %v4668
    %v4750 = vpop.f32.mrb[0].mxu0
    %v4751 = vadd.f32 %v4662, %v4750
    %v4752 = vpop.f32.mrb[0].mxu0
    %4753 = vmatprep.mubr.f32.mxu0 0.0
    %4754 = vmatmul.mubr.f32.gmra.mrb[0].mxu0 %v4671
    %v4755 = vpop.f32.mrb[0].mxu0
    %v4756 = vadd.f32 %v4662, %v4755
    %v4757 = vpop.f32.mrb[0].mxu0
    %4758 = vmatprep.mubr.f32.mxu0 0.0
    %4759 = vmatmul.mubr.f32.gmra.mrb[0].mxu0 %v4674
    %v4760 = vpop.f32.mrb[0].mxu0
    %v4761 = vadd.f32 %v4662, %v4760
    %v4762 = vpop.f32.mrb[0].mxu0
    %4763 = vmatprep.mubr.f32.mxu0 0.0
    %4764 = vmatmul.mubr.f32.gmra.mrb[0].mxu0 %v4677
    %v4765 = vpop.f32.mrb[0].mxu0
    %v4766 = vadd.f32 %v4662, %v4765
    %v4767 = vpop.f32.mrb[0].mxu0
    %4768 = vdwg.mxu0
    %v4769 = vadd.f32 %v4400, %v4746
    %v4770 = vadd.f32 %v4401, %v4751
    %v4771 = vadd.f32 %v4402, %v4756
    %v4772 = vadd.f32 %v4403, %v4761
    %v4773 = vadd.f32 %v4404, %v4766
    %v4774 = vld [vmem:[%s83] sm:$0x1]
    %v4775 = vld [vmem:[%s85] sm:$0x1]
    %v4776 = vsel %vm358, %v4769, 0.0
    %4777 = vadd.xlane.f32.xlu0 %v4776
    %v4778 = vpop.xlane.xlu0 %4777
    %v4779 = vsel %vm358, %v4770, 0.0
    %4780 = vadd.xlane.f32.xlu0 %v4779
    %v4781 = vpop.xlane.xlu0 %4780
    %v4782 = vsel %vm358, %v4771, 0.0
    %4783 = vadd.xlane.f32.xlu0 %v4782
    %v4784 = vpop.xlane.xlu0 %4783
    %v4785 = vsel %vm358, %v4772, 0.0
    %4786 = vadd.xlane.f32.xlu0 %v4785
    %v4787 = vpop.xlane.xlu0 %4786
    %v4788 = vsel %vm365, %v4773, 0.0
    %4789 = vadd.xlane.f32.xlu0 %v4788
    %v4790 = vpop.xlane.xlu0 %4789
    %v4791 = vmul.f32 %v4778, %v369
    %v4792 = vmul.f32 %v4781, %v369
    %v4793 = vmul.f32 %v4784, %v369
    %v4794 = vmul.f32 %v4787, %v369
    %v4795 = vmul.f32 %v4790, %v369
    %v4796 = vmul.f32 %v4769, %v4769
    %v4797 = vmul.f32 %v4770, %v4770
    %v4798 = vmul.f32 %v4771, %v4771
    %v4799 = vmul.f32 %v4772, %v4772
    %v4800 = vmul.f32 %v4773, %v4773
    %v4801 = vsel %vm358, %v4796, 0.0
    %4802 = vadd.xlane.f32.xlu0 %v4801
    %v4803 = vpop.xlane.xlu0 %4802
    %v4804 = vsel %vm358, %v4797, 0.0
    %4805 = vadd.xlane.f32.xlu0 %v4804
    %v4806 = vpop.xlane.xlu0 %4805
    %v4807 = vsel %vm358, %v4798, 0.0
    %4808 = vadd.xlane.f32.xlu0 %v4807
    %v4809 = vpop.xlane.xlu0 %4808
    %v4810 = vsel %vm358, %v4799, 0.0
    %4811 = vadd.xlane.f32.xlu0 %v4810
    %v4812 = vpop.xlane.xlu0 %4811
    %v4813 = vsel %vm365, %v4800, 0.0
    %4814 = vadd.xlane.f32.xlu0 %v4813
    %v4815 = vpop.xlane.xlu0 %4814
    %v4816 = vmul.f32 %v4803, %v369
    %v4817 = vmul.f32 %v4806, %v369
    %v4818 = vmul.f32 %v4809, %v369
    %v4819 = vmul.f32 %v4812, %v369
    %v4820 = vmul.f32 %v4815, %v369
    %v4821 = vmul.f32 %v4791, %v4791
    %v4822 = vmul.f32 %v4792, %v4792
    %v4823 = vmul.f32 %v4793, %v4793
    %v4824 = vmul.f32 %v4794, %v4794
    %v4825 = vmul.f32 %v4795, %v4795
    %v4826 = vsub.f32 %v4816, %v4821
    %v4827 = vsub.f32 %v4817, %v4822
    %v4828 = vsub.f32 %v4818, %v4823
    %v4829 = vsub.f32 %v4819, %v4824
    %v4830 = vsub.f32 %v4820, %v4825
    %v4831 = vadd.f32 %v4826, 1e-05
    %v4832 = vadd.f32 %v4827, 1e-05
    %v4833 = vadd.f32 %v4828, 1e-05
    %v4834 = vadd.f32 %v4829, 1e-05
    %v4835 = vadd.f32 %v4830, 1e-05
    %v4836 = vrsqrt.pop %v4831
    %v4837 = vrsqrt.pop %v4832
    %v4838 = vrsqrt.pop %v4833
    %v4839 = vrsqrt.pop %v4834
    %v4840 = vrsqrt.pop %v4835
    %v4841 = vsub.f32 %v4769, %v4791
    %v4842 = vsub.f32 %v4770, %v4792
    %v4843 = vsub.f32 %v4771, %v4793
    %v4844 = vsub.f32 %v4772, %v4794
    %v4845 = vsub.f32 %v4773, %v4795
    %v4846 = vmul.f32 %v4841, %v4836
    %v4847 = vmul.f32 %v4842, %v4837
    %v4848 = vmul.f32 %v4843, %v4838
    %v4849 = vmul.f32 %v4844, %v4839
    %v4850 = vmul.f32 %v4845, %v4840
    %v4852 = vlaneseq
    %v4853 = vshrl.u32 %v4852, 7
    %v4854 = vsub.s32 0, %v4853
    %v4855 = vrot.slane %v4774, %v4854
    %v4857 = vmul.f32 %v4846, %v4855
    %v4858 = vmul.f32 %v4847, %v4855
    %v4859 = vmul.f32 %v4848, %v4855
    %v4860 = vmul.f32 %v4849, %v4855
    %v4861 = vmul.f32 %v4850, %v4855
    %v4863 = vlaneseq
    %v4864 = vshrl.u32 %v4863, 7
    %v4865 = vsub.s32 0, %v4864
    %v4866 = vrot.slane %v4775, %v4865
    %v4868 = vadd.f32 %v4857, %v4866
    %v4869 = vadd.f32 %v4858, %v4866
    %v4870 = vadd.f32 %v4859, %v4866
    %v4871 = vadd.f32 %v4860, %v4866
    %v4872 = vadd.f32 %v4861, %v4866
    %v4873 = vld [vmem:[%s87] sm:$0xff]
    %v4874 = vld [vmem:[%s87 + $0x8] sm:$0xff]
    %v4875 = vld [vmem:[%s87 + $0x10] sm:$0xff]
    %v4876 = vld [vmem:[%s87 + $0x18] sm:$0xff]
    %v4877 = vld [vmem:[%s89] sm:$0x1]
    %v4879 = vlaneseq
    %v4880 = vshrl.u32 %v4879, 7
    %v4881 = vsub.s32 0, %v4880
    %v4882 = vrot.slane %v4877, %v4881
    %v4885 = vsel %vm358, %v4868, 0
    %v4888 = vsel %vm358, %v4869, 0
    %v4891 = vsel %vm358, %v4870, 0
    %v4894 = vsel %vm358, %v4871, 0
    %v4897 = vsel %vm358, %v4872, 0
    %4899 = vmatprep.subr.mxu0 0.0
    %4900 = vmatpush1.msra.mxu0 %v4873
    %4901 = vmatprep.subr.mxu0 0.0
    %4902 = vmatpush1.msra.mxu0 %v4874
    %4903 = vmatprep.subr.mxu0 0.0
    %4904 = vmatpush1.msra.mxu0 %v4875
    %4905 = vmatprep.subr.mxu0 0.0
    %4906 = vmatpush1.msra.mxu0 %v4876
    %4907 = vmatprep.subr.mxu0 0.0
    %4908 = vmatpush1.msra.mxu0 0.0
    %4909 = vmatprep.subr.mxu0 0.0
    %4910 = vmatpush1.msra.mxu0 0.0
    %4911 = vmatprep.subr.mxu0 0.0
    %4912 = vmatpush1.msra.mxu0 0.0
    %4913 = vmatprep.subr.mxu0 0.0
    %4914 = vmatpush1.msra.mxu0 0.0
    %4915 = vmatprep.subr.mxu0 0.0
    %4916 = vmatpush1.msra.mxu0 0.0
    %4917 = vmatprep.subr.mxu0 0.0
    %4918 = vmatpush1.msra.mxu0 0.0
    %4919 = vmatprep.subr.mxu0 0.0
    %4920 = vmatpush1.msra.mxu0 0.0
    %4921 = vmatprep.subr.mxu0 0.0
    %4922 = vmatpush1.msra.mxu0 0.0
    %4923 = vmatprep.subr.mxu0 0.0
    %4924 = vmatpush1.msra.mxu0 0.0
    %4925 = vmatprep.subr.mxu0 0.0
    %4926 = vmatpush1.msra.mxu0 0.0
    %4927 = vmatprep.subr.mxu0 0.0
    %4928 = vmatpush1.msra.mxu0 0.0
    %4929 = vmatprep.subr.mxu0 0.0
    %4930 = vmatpush1.msra.mxu0 0.0
    %4931 = vmatprep.subr.mxu0 0.0
    %4932 = vmatpush1.msra.mxu0 0.0
    %4933 = vmatprep.subr.mxu0 0.0
    %4934 = vmatpush1.msra.mxu0 0.0
    %4935 = vmatprep.subr.mxu0 0.0
    %4936 = vmatpush1.msra.mxu0 0.0
    %4937 = vmatprep.subr.mxu0 0.0
    %4938 = vmatpush1.msra.mxu0 0.0
    %4939 = vmatprep.subr.mxu0 0.0
    %4940 = vmatpush1.msra.mxu0 0.0
    %4941 = vmatprep.subr.mxu0 0.0
    %4942 = vmatpush1.msra.mxu0 0.0
    %4943 = vmatprep.subr.mxu0 0.0
    %4944 = vmatpush1.msra.mxu0 0.0
    %4945 = vmatprep.subr.mxu0 0.0
    %4946 = vmatpush1.msra.mxu0 0.0
    %4947 = vmatprep.subr.mxu0 0.0
    %4948 = vmatpush1.msra.mxu0 0.0
    %4949 = vmatprep.subr.mxu0 0.0
    %4950 = vmatpush1.msra.mxu0 0.0
    %4951 = vmatprep.subr.mxu0 0.0
    %4952 = vmatpush1.msra.mxu0 0.0
    %4953 = vmatprep.subr.mxu0 0.0
    %4954 = vmatpush1.msra.mxu0 0.0
    %4955 = vmatprep.subr.mxu0 0.0
    %4956 = vmatpush1.msra.mxu0 0.0
    %4957 = vmatprep.subr.mxu0 0.0
    %4958 = vmatpush1.msra.mxu0 0.0
    %4959 = vmatprep.subr.mxu0 0.0
    %4960 = vmatpush1.msra.mxu0 0.0
    %4961 = vmatprep.subr.mxu0 0.0
    %4962 = vmatpush1.msra.mxu0 0.0
    %4963 = vmatprep.mubr.f32.mxu0 0.0
    %4964 = vmatmul.mubr.f32.gmra.mrb[0].mxu0 %v4885
    %v4965 = vpop.f32.mrb[0].mxu0
    %v4966 = vadd.f32 %v4882, %v4965
    %v4967 = vpop.f32.mrb[0].mxu0
    %4968 = vmatprep.mubr.f32.mxu0 0.0
    %4969 = vmatmul.mubr.f32.gmra.mrb[0].mxu0 %v4888
    %v4970 = vpop.f32.mrb[0].mxu0
    %v4971 = vadd.f32 %v4882, %v4970
    %v4972 = vpop.f32.mrb[0].mxu0
    %4973 = vmatprep.mubr.f32.mxu0 0.0
    %4974 = vmatmul.mubr.f32.gmra.mrb[0].mxu0 %v4891
    %v4975 = vpop.f32.mrb[0].mxu0
    %v4976 = vadd.f32 %v4882, %v4975
    %v4977 = vpop.f32.mrb[0].mxu0
    %4978 = vmatprep.mubr.f32.mxu0 0.0
    %4979 = vmatmul.mubr.f32.gmra.mrb[0].mxu0 %v4894
    %v4980 = vpop.f32.mrb[0].mxu0
    %v4981 = vadd.f32 %v4882, %v4980
    %v4982 = vpop.f32.mrb[0].mxu0
    %4983 = vmatprep.mubr.f32.mxu0 0.0
    %4984 = vmatmul.mubr.f32.gmra.mrb[0].mxu0 %v4897
    %v4985 = vpop.f32.mrb[0].mxu0
    %v4986 = vadd.f32 %v4882, %v4985
    %v4987 = vpop.f32.mrb[0].mxu0
    %4988 = vdwg.mxu0
    %4989 = vst [vmem:[%s95] sm:$0xff] %v4966
    %4990 = vst [vmem:[%s95 + $0x8] sm:$0xff] %v4971
    %4991 = vst [vmem:[%s95 + $0x10] sm:$0xff] %v4976
    %4992 = vst [vmem:[%s95 + $0x18] sm:$0xff] %v4981
    %4993 = vst [vmem:[%s95 + $0x20] sm:$0x3] %v4986
    %v4994 = vld [vmem:[%s91] sm:$0xff]
    %v4995 = vld [vmem:[%s91 + $0x8] sm:$0xff]
    %v4996 = vld [vmem:[%s91 + $0x10] sm:$0xff]
    %v4997 = vld [vmem:[%s91 + $0x18] sm:$0xff]
    %v4998 = vld [vmem:[%s91 + $0x20] sm:$0x3]
    %v4999 = vsub.f32 %v4994, %v4966
    %v5000 = vsub.f32 %v4995, %v4971
    %v5001 = vsub.f32 %v4996, %v4976
    %v5002 = vsub.f32 %v4997, %v4981
    %v5003 = vsub.f32 %v4998, %v4986
    %v5004 = vmul.f32 %v4999, %v4999
    %v5005 = vmul.f32 %v5000, %v5000
    %v5006 = vmul.f32 %v5001, %v5001
    %v5007 = vmul.f32 %v5002, %v5002
    %v5008 = vmul.f32 %v5003, %v5003
    %v5009 = vld [vmem:[%s93] sm:$0xff]
    %v5010 = vld [vmem:[%s93 + $0x8] sm:$0xff]
    %v5011 = vld [vmem:[%s93 + $0x10] sm:$0xff]
    %v5012 = vld [vmem:[%s93 + $0x18] sm:$0xff]
    %v5013 = vld [vmem:[%s93 + $0x20] sm:$0x3]
    %v5014 = vmul.f32 %v5004, %v5009
    %v5015 = vmul.f32 %v5005, %v5010
    %v5016 = vmul.f32 %v5006, %v5011
    %v5017 = vmul.f32 %v5007, %v5012
    %v5018 = vmul.f32 %v5008, %v5013
    %v5019 = vadd.f32 %v5014, %v5015
    %v5020 = vadd.f32 %v5019, %v5016
    %v5021 = vadd.f32 %v5020, %v5017
    %v5022 = vsel %vm547, %v5018, 0.0
    %v5023 = vadd.f32 %v5021, %v5022
    %5024 = vadd.xlane.f32.xlu0 %v5023
    %v5025 = vpop.xlane.xlu0 %5024
    %v5026 = vrot.slane %v5025, 4
    %v5027 = vadd.f32 %v5025, %v5026
    %v5028 = vrot.slane %v5027, 2
    %v5029 = vadd.f32 %v5027, %v5028
    %v5030 = vrot.slane %v5029, 1
    %v5031 = vadd.f32 %v5029, %v5030
    %s5032 = vtos %v5031
    %v5033 = vstv %s5032
    %vm5034 = vcmask 0
    %5035 = vst.msk [vmem:[#allocation2] sm:$0x1] %vm5034, %v5033
    // Predicated region
    $region190: #{mae_forward.1} parent=1 // pred_check
      _
    $region191: #{mae_forward.1} parent=1 // pred_check_branch
      %5037 = sbr.rel (0) target = $region193
    $region192: #{mae_forward.1} parent=1 // pred_region
      _
    $region193: #{mae_forward.1} parent=1 // pred_fallthru
      _
    // Predicated region
    $region194: #{mae_forward.1} parent=1 // pred_check
      _
    $region195: #{mae_forward.1} parent=1 // pred_check_branch
      %5039 = sbr.rel (0) target = $region197
    $region196: #{mae_forward.1} parent=1 // pred_region
      %s5041 = ssub.s32 16, 16
      %5042 = vsyncadd [#allocation3], %s5041
      %s5044 = sshll.u32 [#allocation2], 4
      %s5045 = int_to_ptr.vmem [resolvable:$true] %s5044
      %5047 = dma.vmem_to_hbm [thread:$0]  %s5045, 16, %s97, [#allocation3]
    $region197: #{mae_forward.1} parent=1 // pred_fallthru
      _
    // Predicated region
    $region198: #{mae_forward.1} parent=1 // pred_check
      _
    $region199: #{mae_forward.1} parent=1 // pred_check_branch
      %5049 = sbr.rel (0) target = $region201
    $region200: #{mae_forward.1} parent=1 // pred_region
      _
    $region201: #{mae_forward.1} parent=1 // pred_fallthru
      _
    // Predicated region
    $region202: #{mae_forward.1} parent=1 // pred_check
      _
    $region203: #{mae_forward.1} parent=1 // pred_check_branch
      %5051 = sbr.rel (0) target = $region205
    $region204: #{mae_forward.1} parent=1 // pred_region
      %5052 = dma.done [#allocation3], 16
    $region205: #{mae_forward.1} parent=1 // pred_fallthru
      _
    %5053 = vsyncpa [#allocation3], 1

</llo_original>
